<compile_context>
chip_gen: v7x
topology: tpu7x:2x2x1
jax: 0.10.0
libtpu: 0.0.40
codegen_flags: <defaults>
</compile_context>

<pallas_src>
import functools

import jax
import jax.numpy as jnp
import numpy as np
from jax.experimental import pallas as pl
from jax.experimental.pallas import tpu as pltpu

# ----- small, module-consistent shapes ------------------------------------------------
BATCH = 8            # module default is 128; kept small for the demo
HIDDEN = 32          # hidden_size
LATENT = 20          # latent_length
DEPTH = 3            # hidden_layer_depth (module default 5; kept small for the demo)
SEQ = 8              # sequence_length (module default 256; kept small for the demo)
OUT = 2              # output_size: mean + log-std


def decoder_kernel(latent_ref, w_l2h_ref, b_l2h_ref,
                   w_gru0_ref, w_gru_hi_ref, b_gru_ref,
                   w_out_ref, b_out_ref,
                   out_ref, hseq_scr):
    """Single grid point; everything lives in VMEM (shapes are tiny)."""
    B = latent_ref.shape[0]
    H = w_l2h_ref.shape[1]
    depth = b_gru_ref.shape[0]
    S = out_ref.shape[0] // B
    H2, H3 = 2 * H, 3 * H

    # 1) latent -> initial hidden state (nn.Linear), replicated across layers.
    h0 = (jnp.dot(latent_ref[...], w_l2h_ref[...],
                  preferred_element_type=jnp.float32)
          + b_l2h_ref[...])                                            # (B, H)

    # ---- hoisted, time-invariant bias prep (no per-step broadcast_in_dim) -----------
    # b_gru[l] = [b_ir+b_hr | b_iz+b_hz | b_in | b_hn]   (4H = 128 lanes)
    b_gru = b_gru_ref[...]                                             # (depth, 4H)
    brz = [jnp.broadcast_to(b_gru[l, :H2][None, :], (B, H2)) for l in range(depth)]
    bin_ = [jnp.broadcast_to(b_gru[l, H2:H3][None, :], (B, H)) for l in range(depth)]
    bhn = [jnp.broadcast_to(b_gru[l, H3:][None, :], (B, H)) for l in range(depth)]

    # Per-layer hidden states, carried in registers across the (unrolled) recurrence.
    h = [h0] * depth

    x = None
    for t in range(S):                       # static unroll: full scheduler visibility
        for l in range(depth):               # static unroll over layers
            h_prev = h[l]
            if l == 0:
                # decoder_inputs are all zeros -> only the hidden rows of the fused
                # weight contribute; g[:, 2H:3H] (the x-only n-gate block) is zero.
                g = jnp.dot(h_prev, w_gru0_ref[...],
                            preferred_element_type=jnp.float32)       # (B, 4H)
                ni = bin_[0]
            else:
                # One fused matmul covers input + hidden gates for all of r, z, n.
                xh = jnp.concatenate([x, h_prev], axis=-1)             # (B, 2H)
                g = jnp.dot(xh, w_gru_hi_ref[l - 1],
                            preferred_element_type=jnp.float32)       # (B, 4H)
                ni = g[:, H2:H3] + bin_[l]
            rz = jax.nn.sigmoid(g[:, :H2] + brz[l])
            r = rz[:, :H]
            z = rz[:, H:]
            n = jnp.tanh(ni + r * (g[:, H3:] + bhn[l]))
            h_new = (1.0 - z) * n + z * h_prev
            h[l] = h_new
            x = h_new                        # input to next layer

        # Stash final-layer hidden for this timestep (sublane-aligned (B, H) store).
        hseq_scr[pl.ds(t * B, B), :] = x

    # 3) one batched hidden -> output projection + a single store.
    y = (jnp.dot(hseq_scr[...], w_out_ref[...],
                 preferred_element_type=jnp.float32)
         + b_out_ref[...])                                             # (S*B, O)
    out_ref[...] = y.astype(out_ref.dtype)


@functools.partial(jax.jit, static_argnames=("seq_len",))
def decoder_forward(latent, fused_params, seq_len=SEQ):
    (w_l2h, b_l2h, w_gru0, w_gru_hi, b_gru, w_out, b_out) = fused_params
    B = latent.shape[0]
    H = w_l2h.shape[1]
    O = w_out.shape[1]

    out_flat = pl.pallas_call(
        decoder_kernel,
        out_shape=jax.ShapeDtypeStruct((seq_len * B, O), jnp.float32),
        in_specs=[pl.BlockSpec(memory_space=pltpu.MemorySpace.VMEM)] * 8,
        out_specs=pl.BlockSpec(memory_space=pltpu.MemorySpace.VMEM),
        scratch_shapes=[pltpu.VMEM((seq_len * B, H), jnp.float32)],
    )(latent, w_l2h, b_l2h, w_gru0, w_gru_hi, b_gru, w_out, b_out)

    out = out_flat.reshape(seq_len, B, O)     # (S, B, O), time-major like torch GRU
    # torch: out.permute(1, 2, 0)  -> (batch, output_size, seq_len)
    return jnp.transpose(out, (1, 2, 0))


def make_params(key):
    """Deterministic synthetic parameters matching the torch module's init shapes.

    Per-gate layout (gate order r, z, n), transposed so jnp.dot(x, W) applies:
      w_ih/w_hh: (depth, 3, H, H)   (layer-0 w_ih is unused: decoder inputs are zero;
                                     in torch its true input size is 1)
      b_ih/b_hh: (depth, 3, H)
    """
    ks = jax.random.split(key, 10)

    # latent_to_hidden: xavier_uniform on (H, L) torch weight; stored as (L, H).
    bound = float(np.sqrt(6.0 / (LATENT + HIDDEN)))
    w_l2h = jax.random.uniform(ks[0], (LATENT, HIDDEN), jnp.float32, -bound, bound)
    b_l2h = jax.random.uniform(ks[1], (1, HIDDEN), jnp.float32,
                               -1.0 / np.sqrt(LATENT), 1.0 / np.sqrt(LATENT))

    # GRU weights: torch default uniform(-1/sqrt(H), 1/sqrt(H)).
    k = 1.0 / np.sqrt(HIDDEN)
    w_ih = jax.random.uniform(ks[2], (DEPTH, 3, HIDDEN, HIDDEN), jnp.float32, -k, k)
    w_hh = jax.random.uniform(ks[3], (DEPTH, 3, HIDDEN, HIDDEN), jnp.float32, -k, k)
    b_ih = jax.random.uniform(ks[4], (DEPTH, 3, HIDDEN), jnp.float32, -k, k)
    b_hh = jax.random.uniform(ks[5], (DEPTH, 3, HIDDEN), jnp.float32, -k, k)

    # hidden_to_output: xavier_uniform on (O, H) torch weight; stored as (H, O).
    bound_o = float(np.sqrt(6.0 / (HIDDEN + OUT)))
    w_out = jax.random.uniform(ks[6], (HIDDEN, OUT), jnp.float32, -bound_o, bound_o)
    b_out = jax.random.uniform(ks[7], (1, OUT), jnp.float32,
                               -1.0 / np.sqrt(HIDDEN), 1.0 / np.sqrt(HIDDEN))

    return (w_l2h, b_l2h, w_ih, w_hh, b_ih, b_hh, w_out, b_out)


def fuse_params(params):
    """One-time wrapper-side repack into the fused kernel layout.

    Fused GRU weight per layer, shape (2H, 4H), column blocks (each H wide):
      x rows (0:H)  -> [Wi_r, Wi_z, Wi_n, 0   ]
      h rows (H:2H) -> [Wh_r, Wh_z, 0,    Wh_n]
    so  [x, h] @ W = [g_r, g_z, x@Wi_n, h@Wh_n]   (4H = 128 lanes when H = 32).
    Layer 0 only ever sees zero inputs, so only its hidden rows are passed.
    Fused bias per layer, shape (4H,): [b_ir+b_hr, b_iz+b_hz, b_in, b_hn].
    """
    (w_l2h, b_l2h, w_ih, w_hh, b_ih, b_hh, w_out, b_out) = params
    depth, _, H, _ = w_ih.shape
    zeros = jnp.zeros((depth, H, H), jnp.float32)
    w_x = jnp.concatenate([w_ih[:, 0], w_ih[:, 1], w_ih[:, 2], zeros], axis=-1)  # (d,H,4H)
    w_h = jnp.concatenate([w_hh[:, 0], w_hh[:, 1], zeros, w_hh[:, 2]], axis=-1)  # (d,H,4H)
    w_gru = jnp.concatenate([w_x, w_h], axis=1)                                  # (d,2H,4H)
    w_gru0 = w_h[0]                                                              # (H, 4H)
    if depth > 1:
        w_gru_hi = w_gru[1:]                                                     # (d-1,2H,4H)
    else:
        w_gru_hi = jnp.zeros((1, 2 * H, 4 * H), jnp.float32)                     # unused
    b_gru = jnp.concatenate([b_ih[:, 0] + b_hh[:, 0],
                             b_ih[:, 1] + b_hh[:, 1],
                             b_ih[:, 2],
                             b_hh[:, 2]], axis=-1)                               # (d, 4H)
    return (w_l2h, b_l2h, w_gru0, w_gru_hi, b_gru, w_out, b_out)


def decoder_reference(latent, params, seq_len=SEQ):
    """Pure-JAX reference mirroring torch nn.GRU semantics (for validation)."""
    (w_l2h, b_l2h, w_ih, w_hh, b_ih, b_hh, w_out, b_out) = params
    B = latent.shape[0]
    H = w_l2h.shape[1]
    depth = w_hh.shape[0]
    h_state = latent @ w_l2h + b_l2h
    h = [h_state for _ in range(depth)]
    outs = []
    for _ in range(seq_len):
        x = jnp.zeros((B, H), jnp.float32)   # decoder_inputs are zeros
        for l in range(depth):
            gi = [x @ w_ih[l, g] + b_ih[l, g] for g in range(3)]
            gh = [h[l] @ w_hh[l, g] + b_hh[l, g] for g in range(3)]
            r = jax.nn.sigmoid(gi[0] + gh[0])
            z = jax.nn.sigmoid(gi[1] + gh[1])
            n = jnp.tanh(gi[2] + r * gh[2])
            h[l] = (1.0 - z) * n + z * h[l]
            x = h[l]
        outs.append(x @ w_out + b_out)
    out = jnp.stack(outs, axis=0)             # (S, B, O)
    return jnp.transpose(out, (1, 2, 0))      # (B, O, S)


if __name__ == "__main__":
    key = jax.random.PRNGKey(0)
    k_param, k_latent = jax.random.split(key)
    params = make_params(k_param)
    fused = fuse_params(params)
    latent = jax.random.normal(k_latent, (BATCH, LATENT), jnp.float32)

    out = decoder_forward(latent, fused)
    out = jax.block_until_ready(out)
    assert out.shape == (BATCH, OUT, SEQ), out.shape

    ref = jax.block_until_ready(decoder_reference(latent, params))
    np.testing.assert_allclose(np.asarray(out), np.asarray(ref), rtol=1e-3, atol=1e-3)

    print("KERNEL_OK")
</pallas_src>

<mosaic_0001>
module attributes {stable_mosaic.version = 11 : i64} {
  func.func @decoder_kernel(%arg0: memref<8x20xf32, #tpu.memory_space<vmem>>, %arg1: memref<20x32xf32, #tpu.memory_space<vmem>>, %arg2: memref<1x32xf32, #tpu.memory_space<vmem>>, %arg3: memref<32x128xf32, #tpu.memory_space<vmem>>, %arg4: memref<2x64x128xf32, #tpu.memory_space<vmem>>, %arg5: memref<3x128xf32, #tpu.memory_space<vmem>>, %arg6: memref<32x2xf32, #tpu.memory_space<vmem>>, %arg7: memref<1x2xf32, #tpu.memory_space<vmem>>, %arg8: memref<64x2xf32, #tpu.memory_space<vmem>>, %arg9: memref<64x32xf32, #tpu.memory_space<vmem>>) attributes {dimension_semantics = [], scalar_prefetch = 0 : i64, scratch_operands = 1 : i64, tpu.core_type = #tpu.core_type<tc>} {
    %c0 = arith.constant 0 : index
    %c0_0 = arith.constant 0 : index
    %0 = vector.load %arg0[%c0, %c0_0] : memref<8x20xf32, #tpu.memory_space<vmem>>, vector<8x20xf32>
    %c0_1 = arith.constant 0 : index
    %c0_2 = arith.constant 0 : index
    %1 = vector.load %arg1[%c0_1, %c0_2] : memref<20x32xf32, #tpu.memory_space<vmem>>, vector<20x32xf32>
    %cst = arith.constant dense<0.000000e+00> : vector<8x32xf32>
    %2 = tpu.matmul %0, %1, %cst {dimension_numbers = #tpu.dot_dimension_numbers<[1], [0], [0], [1], [0, 0, 1, 1], [], []>} : vector<8x20xf32>, vector<20x32xf32>, vector<8x32xf32> -> vector<8x32xf32>
    %c0_3 = arith.constant 0 : index
    %c0_4 = arith.constant 0 : index
    %3 = vector.load %arg2[%c0_3, %c0_4] : memref<1x32xf32, #tpu.memory_space<vmem>>, vector<1x32xf32>
    %4 = vector.broadcast %3 : vector<1x32xf32> to vector<8x32xf32>
    %5 = arith.addf %2, %4 : vector<8x32xf32>
    %c0_5 = arith.constant 0 : index
    %c0_6 = arith.constant 0 : index
    %6 = vector.load %arg5[%c0_5, %c0_6] : memref<3x128xf32, #tpu.memory_space<vmem>>, vector<3x128xf32>
    %7 = vector.extract_strided_slice %6 {offsets = [0, 0], sizes = [1, 64], strides = [1, 1]} : vector<3x128xf32> to vector<1x64xf32>
    %8 = vector.shape_cast %7 : vector<1x64xf32> to vector<64xf32>
    %9 = vector.shape_cast %8 : vector<64xf32> to vector<1x64xf32>
    %10 = vector.shape_cast %9 : vector<1x64xf32> to vector<1x64xf32>
    %11 = vector.broadcast %10 : vector<1x64xf32> to vector<8x64xf32>
    %12 = vector.extract_strided_slice %6 {offsets = [1, 0], sizes = [1, 64], strides = [1, 1]} : vector<3x128xf32> to vector<1x64xf32>
    %13 = vector.shape_cast %12 : vector<1x64xf32> to vector<64xf32>
    %14 = vector.shape_cast %13 : vector<64xf32> to vector<1x64xf32>
    %15 = vector.shape_cast %14 : vector<1x64xf32> to vector<1x64xf32>
    %16 = vector.broadcast %15 : vector<1x64xf32> to vector<8x64xf32>
    %17 = vector.extract_strided_slice %6 {offsets = [2, 0], sizes = [1, 64], strides = [1, 1]} : vector<3x128xf32> to vector<1x64xf32>
    %18 = vector.shape_cast %17 : vector<1x64xf32> to vector<64xf32>
    %19 = vector.shape_cast %18 : vector<64xf32> to vector<1x64xf32>
    %20 = vector.shape_cast %19 : vector<1x64xf32> to vector<1x64xf32>
    %21 = vector.broadcast %20 : vector<1x64xf32> to vector<8x64xf32>
    %22 = vector.extract_strided_slice %6 {offsets = [0, 64], sizes = [1, 32], strides = [1, 1]} : vector<3x128xf32> to vector<1x32xf32>
    %23 = vector.shape_cast %22 : vector<1x32xf32> to vector<32xf32>
    %24 = vector.shape_cast %23 : vector<32xf32> to vector<1x32xf32>
    %25 = vector.shape_cast %24 : vector<1x32xf32> to vector<1x32xf32>
    %26 = vector.broadcast %25 : vector<1x32xf32> to vector<8x32xf32>
    %27 = vector.extract_strided_slice %6 {offsets = [1, 64], sizes = [1, 32], strides = [1, 1]} : vector<3x128xf32> to vector<1x32xf32>
    %28 = vector.shape_cast %27 : vector<1x32xf32> to vector<32xf32>
    %29 = vector.shape_cast %28 : vector<32xf32> to vector<1x32xf32>
    %30 = vector.shape_cast %29 : vector<1x32xf32> to vector<1x32xf32>
    %31 = vector.broadcast %30 : vector<1x32xf32> to vector<8x32xf32>
    %32 = vector.extract_strided_slice %6 {offsets = [2, 64], sizes = [1, 32], strides = [1, 1]} : vector<3x128xf32> to vector<1x32xf32>
    %33 = vector.shape_cast %32 : vector<1x32xf32> to vector<32xf32>
    %34 = vector.shape_cast %33 : vector<32xf32> to vector<1x32xf32>
    %35 = vector.shape_cast %34 : vector<1x32xf32> to vector<1x32xf32>
    %36 = vector.broadcast %35 : vector<1x32xf32> to vector<8x32xf32>
    %37 = vector.extract_strided_slice %6 {offsets = [0, 96], sizes = [1, 32], strides = [1, 1]} : vector<3x128xf32> to vector<1x32xf32>
    %38 = vector.shape_cast %37 : vector<1x32xf32> to vector<32xf32>
    %39 = vector.shape_cast %38 : vector<32xf32> to vector<1x32xf32>
    %40 = vector.shape_cast %39 : vector<1x32xf32> to vector<1x32xf32>
    %41 = vector.broadcast %40 : vector<1x32xf32> to vector<8x32xf32>
    %42 = vector.extract_strided_slice %6 {offsets = [1, 96], sizes = [1, 32], strides = [1, 1]} : vector<3x128xf32> to vector<1x32xf32>
    %43 = vector.shape_cast %42 : vector<1x32xf32> to vector<32xf32>
    %44 = vector.shape_cast %43 : vector<32xf32> to vector<1x32xf32>
    %45 = vector.shape_cast %44 : vector<1x32xf32> to vector<1x32xf32>
    %46 = vector.broadcast %45 : vector<1x32xf32> to vector<8x32xf32>
    %47 = vector.extract_strided_slice %6 {offsets = [2, 96], sizes = [1, 32], strides = [1, 1]} : vector<3x128xf32> to vector<1x32xf32>
    %48 = vector.shape_cast %47 : vector<1x32xf32> to vector<32xf32>
    %49 = vector.shape_cast %48 : vector<32xf32> to vector<1x32xf32>
    %50 = vector.shape_cast %49 : vector<1x32xf32> to vector<1x32xf32>
    %51 = vector.broadcast %50 : vector<1x32xf32> to vector<8x32xf32>
    %c0_7 = arith.constant 0 : index
    %c0_8 = arith.constant 0 : index
    %52 = vector.load %arg3[%c0_7, %c0_8] : memref<32x128xf32, #tpu.memory_space<vmem>>, vector<32x128xf32>
    %cst_9 = arith.constant dense<0.000000e+00> : vector<8x128xf32>
    %53 = tpu.matmul %5, %52, %cst_9 {dimension_numbers = #tpu.dot_dimension_numbers<[1], [0], [0], [1], [0, 0, 1, 1], [], []>} : vector<8x32xf32>, vector<32x128xf32>, vector<8x128xf32> -> vector<8x128xf32>
    %54 = vector.extract_strided_slice %53 {offsets = [0, 0], sizes = [8, 64], strides = [1, 1]} : vector<8x128xf32> to vector<8x64xf32>
    %55 = arith.addf %54, %11 : vector<8x64xf32>
    %56 = arith.negf %55 : vector<8x64xf32>
    %57 = math.exp %56 : vector<8x64xf32>
    %cst_10 = arith.constant 1.000000e+00 : f32
    %58 = vector.broadcast %cst_10 : f32 to vector<8x64xf32>
    %59 = arith.addf %58, %57 : vector<8x64xf32>
    %60 = arith.divf %58, %59 : vector<8x64xf32>
    %61 = vector.extract_strided_slice %60 {offsets = [0, 0], sizes = [8, 32], strides = [1, 1]} : vector<8x64xf32> to vector<8x32xf32>
    %62 = vector.extract_strided_slice %60 {offsets = [0, 32], sizes = [8, 32], strides = [1, 1]} : vector<8x64xf32> to vector<8x32xf32>
    %63 = vector.extract_strided_slice %53 {offsets = [0, 96], sizes = [8, 32], strides = [1, 1]} : vector<8x128xf32> to vector<8x32xf32>
    %64 = arith.addf %63, %41 : vector<8x32xf32>
    %65 = arith.mulf %61, %64 : vector<8x32xf32>
    %66 = arith.addf %26, %65 : vector<8x32xf32>
    %67 = math.tanh %66 : vector<8x32xf32>
    %cst_11 = arith.constant 1.000000e+00 : f32
    %68 = vector.broadcast %cst_11 : f32 to vector<8x32xf32>
    %69 = arith.subf %68, %62 : vector<8x32xf32>
    %70 = arith.mulf %69, %67 : vector<8x32xf32>
    %71 = arith.mulf %62, %5 : vector<8x32xf32>
    %72 = arith.addf %70, %71 : vector<8x32xf32>
    %73 = tpu.concatenate %72, %5 in 1 : vector<8x32xf32>, vector<8x32xf32> -> vector<8x64xf32>
    %c0_12 = arith.constant 0 : index
    %c0_13 = arith.constant 0 : index
    %c0_14 = arith.constant 0 : index
    %74 = vector.load %arg4[%c0_12, %c0_13, %c0_14] : memref<2x64x128xf32, #tpu.memory_space<vmem>>, vector<1x64x128xf32>
    %75 = vector.shape_cast %74 : vector<1x64x128xf32> to vector<64x128xf32>
    %cst_15 = arith.constant dense<0.000000e+00> : vector<8x128xf32>
    %76 = tpu.matmul %73, %75, %cst_15 {dimension_numbers = #tpu.dot_dimension_numbers<[1], [0], [0], [1], [0, 0, 1, 1], [], []>} : vector<8x64xf32>, vector<64x128xf32>, vector<8x128xf32> -> vector<8x128xf32>
    %77 = vector.extract_strided_slice %76 {offsets = [0, 64], sizes = [8, 32], strides = [1, 1]} : vector<8x128xf32> to vector<8x32xf32>
    %78 = arith.addf %77, %31 : vector<8x32xf32>
    %79 = vector.extract_strided_slice %76 {offsets = [0, 0], sizes = [8, 64], strides = [1, 1]} : vector<8x128xf32> to vector<8x64xf32>
    %80 = arith.addf %79, %16 : vector<8x64xf32>
    %81 = arith.negf %80 : vector<8x64xf32>
    %82 = math.exp %81 : vector<8x64xf32>
    %cst_16 = arith.constant 1.000000e+00 : f32
    %83 = vector.broadcast %cst_16 : f32 to vector<8x64xf32>
    %84 = arith.addf %83, %82 : vector<8x64xf32>
    %85 = arith.divf %83, %84 : vector<8x64xf32>
    %86 = vector.extract_strided_slice %85 {offsets = [0, 0], sizes = [8, 32], strides = [1, 1]} : vector<8x64xf32> to vector<8x32xf32>
    %87 = vector.extract_strided_slice %85 {offsets = [0, 32], sizes = [8, 32], strides = [1, 1]} : vector<8x64xf32> to vector<8x32xf32>
    %88 = vector.extract_strided_slice %76 {offsets = [0, 96], sizes = [8, 32], strides = [1, 1]} : vector<8x128xf32> to vector<8x32xf32>
    %89 = arith.addf %88, %46 : vector<8x32xf32>
    %90 = arith.mulf %86, %89 : vector<8x32xf32>
    %91 = arith.addf %78, %90 : vector<8x32xf32>
    %92 = math.tanh %91 : vector<8x32xf32>
    %cst_17 = arith.constant 1.000000e+00 : f32
    %93 = vector.broadcast %cst_17 : f32 to vector<8x32xf32>
    %94 = arith.subf %93, %87 : vector<8x32xf32>
    %95 = arith.mulf %94, %92 : vector<8x32xf32>
    %96 = arith.mulf %87, %5 : vector<8x32xf32>
    %97 = arith.addf %95, %96 : vector<8x32xf32>
    %98 = tpu.concatenate %97, %5 in 1 : vector<8x32xf32>, vector<8x32xf32> -> vector<8x64xf32>
    %c1 = arith.constant 1 : index
    %c0_18 = arith.constant 0 : index
    %c0_19 = arith.constant 0 : index
    %99 = vector.load %arg4[%c1, %c0_18, %c0_19] : memref<2x64x128xf32, #tpu.memory_space<vmem>>, vector<1x64x128xf32>
    %100 = vector.shape_cast %99 : vector<1x64x128xf32> to vector<64x128xf32>
    %cst_20 = arith.constant dense<0.000000e+00> : vector<8x128xf32>
    %101 = tpu.matmul %98, %100, %cst_20 {dimension_numbers = #tpu.dot_dimension_numbers<[1], [0], [0], [1], [0, 0, 1, 1], [], []>} : vector<8x64xf32>, vector<64x128xf32>, vector<8x128xf32> -> vector<8x128xf32>
    %102 = vector.extract_strided_slice %101 {offsets = [0, 64], sizes = [8, 32], strides = [1, 1]} : vector<8x128xf32> to vector<8x32xf32>
    %103 = arith.addf %102, %36 : vector<8x32xf32>
    %104 = vector.extract_strided_slice %101 {offsets = [0, 0], sizes = [8, 64], strides = [1, 1]} : vector<8x128xf32> to vector<8x64xf32>
    %105 = arith.addf %104, %21 : vector<8x64xf32>
    %106 = arith.negf %105 : vector<8x64xf32>
    %107 = math.exp %106 : vector<8x64xf32>
    %cst_21 = arith.constant 1.000000e+00 : f32
    %108 = vector.broadcast %cst_21 : f32 to vector<8x64xf32>
    %109 = arith.addf %108, %107 : vector<8x64xf32>
    %110 = arith.divf %108, %109 : vector<8x64xf32>
    %111 = vector.extract_strided_slice %110 {offsets = [0, 0], sizes = [8, 32], strides = [1, 1]} : vector<8x64xf32> to vector<8x32xf32>
    %112 = vector.extract_strided_slice %110 {offsets = [0, 32], sizes = [8, 32], strides = [1, 1]} : vector<8x64xf32> to vector<8x32xf32>
    %113 = vector.extract_strided_slice %101 {offsets = [0, 96], sizes = [8, 32], strides = [1, 1]} : vector<8x128xf32> to vector<8x32xf32>
    %114 = arith.addf %113, %51 : vector<8x32xf32>
    %115 = arith.mulf %111, %114 : vector<8x32xf32>
    %116 = arith.addf %103, %115 : vector<8x32xf32>
    %117 = math.tanh %116 : vector<8x32xf32>
    %cst_22 = arith.constant 1.000000e+00 : f32
    %118 = vector.broadcast %cst_22 : f32 to vector<8x32xf32>
    %119 = arith.subf %118, %112 : vector<8x32xf32>
    %120 = arith.mulf %119, %117 : vector<8x32xf32>
    %121 = arith.mulf %112, %5 : vector<8x32xf32>
    %122 = arith.addf %120, %121 : vector<8x32xf32>
    %c0_23 = arith.constant 0 : index
    %c0_24 = arith.constant 0 : index
    %123 = vector.load %arg9[%c0_23, %c0_24] : memref<64x32xf32, #tpu.memory_space<vmem>>, vector<8x32xf32>
    tpu.vector_store %arg9[%c0_23, %c0_24], %122 {strides = array<i32>} : memref<64x32xf32, #tpu.memory_space<vmem>>, vector<8x32xf32>,
    %c0_25 = arith.constant 0 : index
    %c0_26 = arith.constant 0 : index
    %124 = vector.load %arg3[%c0_25, %c0_26] : memref<32x128xf32, #tpu.memory_space<vmem>>, vector<32x128xf32>
    %cst_27 = arith.constant dense<0.000000e+00> : vector<8x128xf32>
    %125 = tpu.matmul %72, %124, %cst_27 {dimension_numbers = #tpu.dot_dimension_numbers<[1], [0], [0], [1], [0, 0, 1, 1], [], []>} : vector<8x32xf32>, vector<32x128xf32>, vector<8x128xf32> -> vector<8x128xf32>
    %126 = vector.extract_strided_slice %125 {offsets = [0, 0], sizes = [8, 64], strides = [1, 1]} : vector<8x128xf32> to vector<8x64xf32>
    %127 = arith.addf %126, %11 : vector<8x64xf32>
    %128 = arith.negf %127 : vector<8x64xf32>
    %129 = math.exp %128 : vector<8x64xf32>
    %cst_28 = arith.constant 1.000000e+00 : f32
    %130 = vector.broadcast %cst_28 : f32 to vector<8x64xf32>
    %131 = arith.addf %130, %129 : vector<8x64xf32>
    %132 = arith.divf %130, %131 : vector<8x64xf32>
    %133 = vector.extract_strided_slice %132 {offsets = [0, 0], sizes = [8, 32], strides = [1, 1]} : vector<8x64xf32> to vector<8x32xf32>
    %134 = vector.extract_strided_slice %132 {offsets = [0, 32], sizes = [8, 32], strides = [1, 1]} : vector<8x64xf32> to vector<8x32xf32>
    %135 = vector.extract_strided_slice %125 {offsets = [0, 96], sizes = [8, 32], strides = [1, 1]} : vector<8x128xf32> to vector<8x32xf32>
    %136 = arith.addf %135, %41 : vector<8x32xf32>
    %137 = arith.mulf %133, %136 : vector<8x32xf32>
    %138 = arith.addf %26, %137 : vector<8x32xf32>
    %139 = math.tanh %138 : vector<8x32xf32>
    %cst_29 = arith.constant 1.000000e+00 : f32
    %140 = vector.broadcast %cst_29 : f32 to vector<8x32xf32>
    %141 = arith.subf %140, %134 : vector<8x32xf32>
    %142 = arith.mulf %141, %139 : vector<8x32xf32>
    %143 = arith.mulf %134, %72 : vector<8x32xf32>
    %144 = arith.addf %142, %143 : vector<8x32xf32>
    %145 = tpu.concatenate %144, %97 in 1 : vector<8x32xf32>, vector<8x32xf32> -> vector<8x64xf32>
    %c0_30 = arith.constant 0 : index
    %c0_31 = arith.constant 0 : index
    %c0_32 = arith.constant 0 : index
    %146 = vector.load %arg4[%c0_30, %c0_31, %c0_32] : memref<2x64x128xf32, #tpu.memory_space<vmem>>, vector<1x64x128xf32>
    %147 = vector.shape_cast %146 : vector<1x64x128xf32> to vector<64x128xf32>
    %cst_33 = arith.constant dense<0.000000e+00> : vector<8x128xf32>
    %148 = tpu.matmul %145, %147, %cst_33 {dimension_numbers = #tpu.dot_dimension_numbers<[1], [0], [0], [1], [0, 0, 1, 1], [], []>} : vector<8x64xf32>, vector<64x128xf32>, vector<8x128xf32> -> vector<8x128xf32>
    %149 = vector.extract_strided_slice %148 {offsets = [0, 64], sizes = [8, 32], strides = [1, 1]} : vector<8x128xf32> to vector<8x32xf32>
    %150 = arith.addf %149, %31 : vector<8x32xf32>
    %151 = vector.extract_strided_slice %148 {offsets = [0, 0], sizes = [8, 64], strides = [1, 1]} : vector<8x128xf32> to vector<8x64xf32>
    %152 = arith.addf %151, %16 : vector<8x64xf32>
    %153 = arith.negf %152 : vector<8x64xf32>
    %154 = math.exp %153 : vector<8x64xf32>
    %cst_34 = arith.constant 1.000000e+00 : f32
    %155 = vector.broadcast %cst_34 : f32 to vector<8x64xf32>
    %156 = arith.addf %155, %154 : vector<8x64xf32>
    %157 = arith.divf %155, %156 : vector<8x64xf32>
    %158 = vector.extract_strided_slice %157 {offsets = [0, 0], sizes = [8, 32], strides = [1, 1]} : vector<8x64xf32> to vector<8x32xf32>
    %159 = vector.extract_strided_slice %157 {offsets = [0, 32], sizes = [8, 32], strides = [1, 1]} : vector<8x64xf32> to vector<8x32xf32>
    %160 = vector.extract_strided_slice %148 {offsets = [0, 96], sizes = [8, 32], strides = [1, 1]} : vector<8x128xf32> to vector<8x32xf32>
    %161 = arith.addf %160, %46 : vector<8x32xf32>
    %162 = arith.mulf %158, %161 : vector<8x32xf32>
    %163 = arith.addf %150, %162 : vector<8x32xf32>
    %164 = math.tanh %163 : vector<8x32xf32>
    %cst_35 = arith.constant 1.000000e+00 : f32
    %165 = vector.broadcast %cst_35 : f32 to vector<8x32xf32>
    %166 = arith.subf %165, %159 : vector<8x32xf32>
    %167 = arith.mulf %166, %164 : vector<8x32xf32>
    %168 = arith.mulf %159, %97 : vector<8x32xf32>
    %169 = arith.addf %167, %168 : vector<8x32xf32>
    %170 = tpu.concatenate %169, %122 in 1 : vector<8x32xf32>, vector<8x32xf32> -> vector<8x64xf32>
    %c1_36 = arith.constant 1 : index
    %c0_37 = arith.constant 0 : index
    %c0_38 = arith.constant 0 : index
    %171 = vector.load %arg4[%c1_36, %c0_37, %c0_38] : memref<2x64x128xf32, #tpu.memory_space<vmem>>, vector<1x64x128xf32>
    %172 = vector.shape_cast %171 : vector<1x64x128xf32> to vector<64x128xf32>
    %cst_39 = arith.constant dense<0.000000e+00> : vector<8x128xf32>
    %173 = tpu.matmul %170, %172, %cst_39 {dimension_numbers = #tpu.dot_dimension_numbers<[1], [0], [0], [1], [0, 0, 1, 1], [], []>} : vector<8x64xf32>, vector<64x128xf32>, vector<8x128xf32> -> vector<8x128xf32>
    %174 = vector.extract_strided_slice %173 {offsets = [0, 64], sizes = [8, 32], strides = [1, 1]} : vector<8x128xf32> to vector<8x32xf32>
    %175 = arith.addf %174, %36 : vector<8x32xf32>
    %176 = vector.extract_strided_slice %173 {offsets = [0, 0], sizes = [8, 64], strides = [1, 1]} : vector<8x128xf32> to vector<8x64xf32>
    %177 = arith.addf %176, %21 : vector<8x64xf32>
    %178 = arith.negf %177 : vector<8x64xf32>
    %179 = math.exp %178 : vector<8x64xf32>
    %cst_40 = arith.constant 1.000000e+00 : f32
    %180 = vector.broadcast %cst_40 : f32 to vector<8x64xf32>
    %181 = arith.addf %180, %179 : vector<8x64xf32>
    %182 = arith.divf %180, %181 : vector<8x64xf32>
    %183 = vector.extract_strided_slice %182 {offsets = [0, 0], sizes = [8, 32], strides = [1, 1]} : vector<8x64xf32> to vector<8x32xf32>
    %184 = vector.extract_strided_slice %182 {offsets = [0, 32], sizes = [8, 32], strides = [1, 1]} : vector<8x64xf32> to vector<8x32xf32>
    %185 = vector.extract_strided_slice %173 {offsets = [0, 96], sizes = [8, 32], strides = [1, 1]} : vector<8x128xf32> to vector<8x32xf32>
    %186 = arith.addf %185, %51 : vector<8x32xf32>
    %187 = arith.mulf %183, %186 : vector<8x32xf32>
    %188 = arith.addf %175, %187 : vector<8x32xf32>
    %189 = math.tanh %188 : vector<8x32xf32>
    %cst_41 = arith.constant 1.000000e+00 : f32
    %190 = vector.broadcast %cst_41 : f32 to vector<8x32xf32>
    %191 = arith.subf %190, %184 : vector<8x32xf32>
    %192 = arith.mulf %191, %189 : vector<8x32xf32>
    %193 = arith.mulf %184, %122 : vector<8x32xf32>
    %194 = arith.addf %192, %193 : vector<8x32xf32>
    %c8 = arith.constant 8 : index
    %c0_42 = arith.constant 0 : index
    %195 = vector.load %arg9[%c8, %c0_42] : memref<64x32xf32, #tpu.memory_space<vmem>>, vector<8x32xf32>
    tpu.vector_store %arg9[%c8, %c0_42], %194 {strides = array<i32>} : memref<64x32xf32, #tpu.memory_space<vmem>>, vector<8x32xf32>,
    %c0_43 = arith.constant 0 : index
    %c0_44 = arith.constant 0 : index
    %196 = vector.load %arg3[%c0_43, %c0_44] : memref<32x128xf32, #tpu.memory_space<vmem>>, vector<32x128xf32>
    %cst_45 = arith.constant dense<0.000000e+00> : vector<8x128xf32>
    %197 = tpu.matmul %144, %196, %cst_45 {dimension_numbers = #tpu.dot_dimension_numbers<[1], [0], [0], [1], [0, 0, 1, 1], [], []>} : vector<8x32xf32>, vector<32x128xf32>, vector<8x128xf32> -> vector<8x128xf32>
    %198 = vector.extract_strided_slice %197 {offsets = [0, 0], sizes = [8, 64], strides = [1, 1]} : vector<8x128xf32> to vector<8x64xf32>
    %199 = arith.addf %198, %11 : vector<8x64xf32>
    %200 = arith.negf %199 : vector<8x64xf32>
    %201 = math.exp %200 : vector<8x64xf32>
    %cst_46 = arith.constant 1.000000e+00 : f32
    %202 = vector.broadcast %cst_46 : f32 to vector<8x64xf32>
    %203 = arith.addf %202, %201 : vector<8x64xf32>
    %204 = arith.divf %202, %203 : vector<8x64xf32>
    %205 = vector.extract_strided_slice %204 {offsets = [0, 0], sizes = [8, 32], strides = [1, 1]} : vector<8x64xf32> to vector<8x32xf32>
    %206 = vector.extract_strided_slice %204 {offsets = [0, 32], sizes = [8, 32], strides = [1, 1]} : vector<8x64xf32> to vector<8x32xf32>
    %207 = vector.extract_strided_slice %197 {offsets = [0, 96], sizes = [8, 32], strides = [1, 1]} : vector<8x128xf32> to vector<8x32xf32>
    %208 = arith.addf %207, %41 : vector<8x32xf32>
    %209 = arith.mulf %205, %208 : vector<8x32xf32>
    %210 = arith.addf %26, %209 : vector<8x32xf32>
    %211 = math.tanh %210 : vector<8x32xf32>
    %cst_47 = arith.constant 1.000000e+00 : f32
    %212 = vector.broadcast %cst_47 : f32 to vector<8x32xf32>
    %213 = arith.subf %212, %206 : vector<8x32xf32>
    %214 = arith.mulf %213, %211 : vector<8x32xf32>
    %215 = arith.mulf %206, %144 : vector<8x32xf32>
    %216 = arith.addf %214, %215 : vector<8x32xf32>
    %217 = tpu.concatenate %216, %169 in 1 : vector<8x32xf32>, vector<8x32xf32> -> vector<8x64xf32>
    %c0_48 = arith.constant 0 : index
    %c0_49 = arith.constant 0 : index
    %c0_50 = arith.constant 0 : index
    %218 = vector.load %arg4[%c0_48, %c0_49, %c0_50] : memref<2x64x128xf32, #tpu.memory_space<vmem>>, vector<1x64x128xf32>
    %219 = vector.shape_cast %218 : vector<1x64x128xf32> to vector<64x128xf32>
    %cst_51 = arith.constant dense<0.000000e+00> : vector<8x128xf32>
    %220 = tpu.matmul %217, %219, %cst_51 {dimension_numbers = #tpu.dot_dimension_numbers<[1], [0], [0], [1], [0, 0, 1, 1], [], []>} : vector<8x64xf32>, vector<64x128xf32>, vector<8x128xf32> -> vector<8x128xf32>
    %221 = vector.extract_strided_slice %220 {offsets = [0, 64], sizes = [8, 32], strides = [1, 1]} : vector<8x128xf32> to vector<8x32xf32>
    %222 = arith.addf %221, %31 : vector<8x32xf32>
    %223 = vector.extract_strided_slice %220 {offsets = [0, 0], sizes = [8, 64], strides = [1, 1]} : vector<8x128xf32> to vector<8x64xf32>
    %224 = arith.addf %223, %16 : vector<8x64xf32>
    %225 = arith.negf %224 : vector<8x64xf32>
    %226 = math.exp %225 : vector<8x64xf32>
    %cst_52 = arith.constant 1.000000e+00 : f32
    %227 = vector.broadcast %cst_52 : f32 to vector<8x64xf32>
    %228 = arith.addf %227, %226 : vector<8x64xf32>
    %229 = arith.divf %227, %228 : vector<8x64xf32>
    %230 = vector.extract_strided_slice %229 {offsets = [0, 0], sizes = [8, 32], strides = [1, 1]} : vector<8x64xf32> to vector<8x32xf32>
    %231 = vector.extract_strided_slice %229 {offsets = [0, 32], sizes = [8, 32], strides = [1, 1]} : vector<8x64xf32> to vector<8x32xf32>
    %232 = vector.extract_strided_slice %220 {offsets = [0, 96], sizes = [8, 32], strides = [1, 1]} : vector<8x128xf32> to vector<8x32xf32>
    %233 = arith.addf %232, %46 : vector<8x32xf32>
    %234 = arith.mulf %230, %233 : vector<8x32xf32>
    %235 = arith.addf %222, %234 : vector<8x32xf32>
    %236 = math.tanh %235 : vector<8x32xf32>
    %cst_53 = arith.constant 1.000000e+00 : f32
    %237 = vector.broadcast %cst_53 : f32 to vector<8x32xf32>
    %238 = arith.subf %237, %231 : vector<8x32xf32>
    %239 = arith.mulf %238, %236 : vector<8x32xf32>
    %240 = arith.mulf %231, %169 : vector<8x32xf32>
    %241 = arith.addf %239, %240 : vector<8x32xf32>
    %242 = tpu.concatenate %241, %194 in 1 : vector<8x32xf32>, vector<8x32xf32> -> vector<8x64xf32>
    %c1_54 = arith.constant 1 : index
    %c0_55 = arith.constant 0 : index
    %c0_56 = arith.constant 0 : index
    %243 = vector.load %arg4[%c1_54, %c0_55, %c0_56] : memref<2x64x128xf32, #tpu.memory_space<vmem>>, vector<1x64x128xf32>
    %244 = vector.shape_cast %243 : vector<1x64x128xf32> to vector<64x128xf32>
    %cst_57 = arith.constant dense<0.000000e+00> : vector<8x128xf32>
    %245 = tpu.matmul %242, %244, %cst_57 {dimension_numbers = #tpu.dot_dimension_numbers<[1], [0], [0], [1], [0, 0, 1, 1], [], []>} : vector<8x64xf32>, vector<64x128xf32>, vector<8x128xf32> -> vector<8x128xf32>
    %246 = vector.extract_strided_slice %245 {offsets = [0, 64], sizes = [8, 32], strides = [1, 1]} : vector<8x128xf32> to vector<8x32xf32>
    %247 = arith.addf %246, %36 : vector<8x32xf32>
    %248 = vector.extract_strided_slice %245 {offsets = [0, 0], sizes = [8, 64], strides = [1, 1]} : vector<8x128xf32> to vector<8x64xf32>
    %249 = arith.addf %248, %21 : vector<8x64xf32>
    %250 = arith.negf %249 : vector<8x64xf32>
    %251 = math.exp %250 : vector<8x64xf32>
    %cst_58 = arith.constant 1.000000e+00 : f32
    %252 = vector.broadcast %cst_58 : f32 to vector<8x64xf32>
    %253 = arith.addf %252, %251 : vector<8x64xf32>
    %254 = arith.divf %252, %253 : vector<8x64xf32>
    %255 = vector.extract_strided_slice %254 {offsets = [0, 0], sizes = [8, 32], strides = [1, 1]} : vector<8x64xf32> to vector<8x32xf32>
    %256 = vector.extract_strided_slice %254 {offsets = [0, 32], sizes = [8, 32], strides = [1, 1]} : vector<8x64xf32> to vector<8x32xf32>
    %257 = vector.extract_strided_slice %245 {offsets = [0, 96], sizes = [8, 32], strides = [1, 1]} : vector<8x128xf32> to vector<8x32xf32>
    %258 = arith.addf %257, %51 : vector<8x32xf32>
    %259 = arith.mulf %255, %258 : vector<8x32xf32>
    %260 = arith.addf %247, %259 : vector<8x32xf32>
    %261 = math.tanh %260 : vector<8x32xf32>
    %cst_59 = arith.constant 1.000000e+00 : f32
    %262 = vector.broadcast %cst_59 : f32 to vector<8x32xf32>
    %263 = arith.subf %262, %256 : vector<8x32xf32>
    %264 = arith.mulf %263, %261 : vector<8x32xf32>
    %265 = arith.mulf %256, %194 : vector<8x32xf32>
    %266 = arith.addf %264, %265 : vector<8x32xf32>
    %c16 = arith.constant 16 : index
    %c0_60 = arith.constant 0 : index
    %267 = vector.load %arg9[%c16, %c0_60] : memref<64x32xf32, #tpu.memory_space<vmem>>, vector<8x32xf32>
    tpu.vector_store %arg9[%c16, %c0_60], %266 {strides = array<i32>} : memref<64x32xf32, #tpu.memory_space<vmem>>, vector<8x32xf32>,
    %c0_61 = arith.constant 0 : index
    %c0_62 = arith.constant 0 : index
    %268 = vector.load %arg3[%c0_61, %c0_62] : memref<32x128xf32, #tpu.memory_space<vmem>>, vector<32x128xf32>
    %cst_63 = arith.constant dense<0.000000e+00> : vector<8x128xf32>
    %269 = tpu.matmul %216, %268, %cst_63 {dimension_numbers = #tpu.dot_dimension_numbers<[1], [0], [0], [1], [0, 0, 1, 1], [], []>} : vector<8x32xf32>, vector<32x128xf32>, vector<8x128xf32> -> vector<8x128xf32>
    %270 = vector.extract_strided_slice %269 {offsets = [0, 0], sizes = [8, 64], strides = [1, 1]} : vector<8x128xf32> to vector<8x64xf32>
    %271 = arith.addf %270, %11 : vector<8x64xf32>
    %272 = arith.negf %271 : vector<8x64xf32>
    %273 = math.exp %272 : vector<8x64xf32>
    %cst_64 = arith.constant 1.000000e+00 : f32
    %274 = vector.broadcast %cst_64 : f32 to vector<8x64xf32>
    %275 = arith.addf %274, %273 : vector<8x64xf32>
    %276 = arith.divf %274, %275 : vector<8x64xf32>
    %277 = vector.extract_strided_slice %276 {offsets = [0, 0], sizes = [8, 32], strides = [1, 1]} : vector<8x64xf32> to vector<8x32xf32>
    %278 = vector.extract_strided_slice %276 {offsets = [0, 32], sizes = [8, 32], strides = [1, 1]} : vector<8x64xf32> to vector<8x32xf32>
    %279 = vector.extract_strided_slice %269 {offsets = [0, 96], sizes = [8, 32], strides = [1, 1]} : vector<8x128xf32> to vector<8x32xf32>
    %280 = arith.addf %279, %41 : vector<8x32xf32>
    %281 = arith.mulf %277, %280 : vector<8x32xf32>
    %282 = arith.addf %26, %281 : vector<8x32xf32>
    %283 = math.tanh %282 : vector<8x32xf32>
    %cst_65 = arith.constant 1.000000e+00 : f32
    %284 = vector.broadcast %cst_65 : f32 to vector<8x32xf32>
    %285 = arith.subf %284, %278 : vector<8x32xf32>
    %286 = arith.mulf %285, %283 : vector<8x32xf32>
    %287 = arith.mulf %278, %216 : vector<8x32xf32>
    %288 = arith.addf %286, %287 : vector<8x32xf32>
    %289 = tpu.concatenate %288, %241 in 1 : vector<8x32xf32>, vector<8x32xf32> -> vector<8x64xf32>
    %c0_66 = arith.constant 0 : index
    %c0_67 = arith.constant 0 : index
    %c0_68 = arith.constant 0 : index
    %290 = vector.load %arg4[%c0_66, %c0_67, %c0_68] : memref<2x64x128xf32, #tpu.memory_space<vmem>>, vector<1x64x128xf32>
    %291 = vector.shape_cast %290 : vector<1x64x128xf32> to vector<64x128xf32>
    %cst_69 = arith.constant dense<0.000000e+00> : vector<8x128xf32>
    %292 = tpu.matmul %289, %291, %cst_69 {dimension_numbers = #tpu.dot_dimension_numbers<[1], [0], [0], [1], [0, 0, 1, 1], [], []>} : vector<8x64xf32>, vector<64x128xf32>, vector<8x128xf32> -> vector<8x128xf32>
    %293 = vector.extract_strided_slice %292 {offsets = [0, 64], sizes = [8, 32], strides = [1, 1]} : vector<8x128xf32> to vector<8x32xf32>
    %294 = arith.addf %293, %31 : vector<8x32xf32>
    %295 = vector.extract_strided_slice %292 {offsets = [0, 0], sizes = [8, 64], strides = [1, 1]} : vector<8x128xf32> to vector<8x64xf32>
    %296 = arith.addf %295, %16 : vector<8x64xf32>
    %297 = arith.negf %296 : vector<8x64xf32>
    %298 = math.exp %297 : vector<8x64xf32>
    %cst_70 = arith.constant 1.000000e+00 : f32
    %299 = vector.broadcast %cst_70 : f32 to vector<8x64xf32>
    %300 = arith.addf %299, %298 : vector<8x64xf32>
    %301 = arith.divf %299, %300 : vector<8x64xf32>
    %302 = vector.extract_strided_slice %301 {offsets = [0, 0], sizes = [8, 32], strides = [1, 1]} : vector<8x64xf32> to vector<8x32xf32>
    %303 = vector.extract_strided_slice %301 {offsets = [0, 32], sizes = [8, 32], strides = [1, 1]} : vector<8x64xf32> to vector<8x32xf32>
    %304 = vector.extract_strided_slice %292 {offsets = [0, 96], sizes = [8, 32], strides = [1, 1]} : vector<8x128xf32> to vector<8x32xf32>
    %305 = arith.addf %304, %46 : vector<8x32xf32>
    %306 = arith.mulf %302, %305 : vector<8x32xf32>
    %307 = arith.addf %294, %306 : vector<8x32xf32>
    %308 = math.tanh %307 : vector<8x32xf32>
    %cst_71 = arith.constant 1.000000e+00 : f32
    %309 = vector.broadcast %cst_71 : f32 to vector<8x32xf32>
    %310 = arith.subf %309, %303 : vector<8x32xf32>
    %311 = arith.mulf %310, %308 : vector<8x32xf32>
    %312 = arith.mulf %303, %241 : vector<8x32xf32>
    %313 = arith.addf %311, %312 : vector<8x32xf32>
    %314 = tpu.concatenate %313, %266 in 1 : vector<8x32xf32>, vector<8x32xf32> -> vector<8x64xf32>
    %c1_72 = arith.constant 1 : index
    %c0_73 = arith.constant 0 : index
    %c0_74 = arith.constant 0 : index
    %315 = vector.load %arg4[%c1_72, %c0_73, %c0_74] : memref<2x64x128xf32, #tpu.memory_space<vmem>>, vector<1x64x128xf32>
    %316 = vector.shape_cast %315 : vector<1x64x128xf32> to vector<64x128xf32>
    %cst_75 = arith.constant dense<0.000000e+00> : vector<8x128xf32>
    %317 = tpu.matmul %314, %316, %cst_75 {dimension_numbers = #tpu.dot_dimension_numbers<[1], [0], [0], [1], [0, 0, 1, 1], [], []>} : vector<8x64xf32>, vector<64x128xf32>, vector<8x128xf32> -> vector<8x128xf32>
    %318 = vector.extract_strided_slice %317 {offsets = [0, 64], sizes = [8, 32], strides = [1, 1]} : vector<8x128xf32> to vector<8x32xf32>
    %319 = arith.addf %318, %36 : vector<8x32xf32>
    %320 = vector.extract_strided_slice %317 {offsets = [0, 0], sizes = [8, 64], strides = [1, 1]} : vector<8x128xf32> to vector<8x64xf32>
    %321 = arith.addf %320, %21 : vector<8x64xf32>
    %322 = arith.negf %321 : vector<8x64xf32>
    %323 = math.exp %322 : vector<8x64xf32>
    %cst_76 = arith.constant 1.000000e+00 : f32
    %324 = vector.broadcast %cst_76 : f32 to vector<8x64xf32>
    %325 = arith.addf %324, %323 : vector<8x64xf32>
    %326 = arith.divf %324, %325 : vector<8x64xf32>
    %327 = vector.extract_strided_slice %326 {offsets = [0, 0], sizes = [8, 32], strides = [1, 1]} : vector<8x64xf32> to vector<8x32xf32>
    %328 = vector.extract_strided_slice %326 {offsets = [0, 32], sizes = [8, 32], strides = [1, 1]} : vector<8x64xf32> to vector<8x32xf32>
    %329 = vector.extract_strided_slice %317 {offsets = [0, 96], sizes = [8, 32], strides = [1, 1]} : vector<8x128xf32> to vector<8x32xf32>
    %330 = arith.addf %329, %51 : vector<8x32xf32>
    %331 = arith.mulf %327, %330 : vector<8x32xf32>
    %332 = arith.addf %319, %331 : vector<8x32xf32>
    %333 = math.tanh %332 : vector<8x32xf32>
    %cst_77 = arith.constant 1.000000e+00 : f32
    %334 = vector.broadcast %cst_77 : f32 to vector<8x32xf32>
    %335 = arith.subf %334, %328 : vector<8x32xf32>
    %336 = arith.mulf %335, %333 : vector<8x32xf32>
    %337 = arith.mulf %328, %266 : vector<8x32xf32>
    %338 = arith.addf %336, %337 : vector<8x32xf32>
    %c24 = arith.constant 24 : index
    %c0_78 = arith.constant 0 : index
    %339 = vector.load %arg9[%c24, %c0_78] : memref<64x32xf32, #tpu.memory_space<vmem>>, vector<8x32xf32>
    tpu.vector_store %arg9[%c24, %c0_78], %338 {strides = array<i32>} : memref<64x32xf32, #tpu.memory_space<vmem>>, vector<8x32xf32>,
    %c0_79 = arith.constant 0 : index
    %c0_80 = arith.constant 0 : index
    %340 = vector.load %arg3[%c0_79, %c0_80] : memref<32x128xf32, #tpu.memory_space<vmem>>, vector<32x128xf32>
    %cst_81 = arith.constant dense<0.000000e+00> : vector<8x128xf32>
    %341 = tpu.matmul %288, %340, %cst_81 {dimension_numbers = #tpu.dot_dimension_numbers<[1], [0], [0], [1], [0, 0, 1, 1], [], []>} : vector<8x32xf32>, vector<32x128xf32>, vector<8x128xf32> -> vector<8x128xf32>
    %342 = vector.extract_strided_slice %341 {offsets = [0, 0], sizes = [8, 64], strides = [1, 1]} : vector<8x128xf32> to vector<8x64xf32>
    %343 = arith.addf %342, %11 : vector<8x64xf32>
    %344 = arith.negf %343 : vector<8x64xf32>
    %345 = math.exp %344 : vector<8x64xf32>
    %cst_82 = arith.constant 1.000000e+00 : f32
    %346 = vector.broadcast %cst_82 : f32 to vector<8x64xf32>
    %347 = arith.addf %346, %345 : vector<8x64xf32>
    %348 = arith.divf %346, %347 : vector<8x64xf32>
    %349 = vector.extract_strided_slice %348 {offsets = [0, 0], sizes = [8, 32], strides = [1, 1]} : vector<8x64xf32> to vector<8x32xf32>
    %350 = vector.extract_strided_slice %348 {offsets = [0, 32], sizes = [8, 32], strides = [1, 1]} : vector<8x64xf32> to vector<8x32xf32>
    %351 = vector.extract_strided_slice %341 {offsets = [0, 96], sizes = [8, 32], strides = [1, 1]} : vector<8x128xf32> to vector<8x32xf32>
    %352 = arith.addf %351, %41 : vector<8x32xf32>
    %353 = arith.mulf %349, %352 : vector<8x32xf32>
    %354 = arith.addf %26, %353 : vector<8x32xf32>
    %355 = math.tanh %354 : vector<8x32xf32>
    %cst_83 = arith.constant 1.000000e+00 : f32
    %356 = vector.broadcast %cst_83 : f32 to vector<8x32xf32>
    %357 = arith.subf %356, %350 : vector<8x32xf32>
    %358 = arith.mulf %357, %355 : vector<8x32xf32>
    %359 = arith.mulf %350, %288 : vector<8x32xf32>
    %360 = arith.addf %358, %359 : vector<8x32xf32>
    %361 = tpu.concatenate %360, %313 in 1 : vector<8x32xf32>, vector<8x32xf32> -> vector<8x64xf32>
    %c0_84 = arith.constant 0 : index
    %c0_85 = arith.constant 0 : index
    %c0_86 = arith.constant 0 : index
    %362 = vector.load %arg4[%c0_84, %c0_85, %c0_86] : memref<2x64x128xf32, #tpu.memory_space<vmem>>, vector<1x64x128xf32>
    %363 = vector.shape_cast %362 : vector<1x64x128xf32> to vector<64x128xf32>
    %cst_87 = arith.constant dense<0.000000e+00> : vector<8x128xf32>
    %364 = tpu.matmul %361, %363, %cst_87 {dimension_numbers = #tpu.dot_dimension_numbers<[1], [0], [0], [1], [0, 0, 1, 1], [], []>} : vector<8x64xf32>, vector<64x128xf32>, vector<8x128xf32> -> vector<8x128xf32>
    %365 = vector.extract_strided_slice %364 {offsets = [0, 64], sizes = [8, 32], strides = [1, 1]} : vector<8x128xf32> to vector<8x32xf32>
    %366 = arith.addf %365, %31 : vector<8x32xf32>
    %367 = vector.extract_strided_slice %364 {offsets = [0, 0], sizes = [8, 64], strides = [1, 1]} : vector<8x128xf32> to vector<8x64xf32>
    %368 = arith.addf %367, %16 : vector<8x64xf32>
    %369 = arith.negf %368 : vector<8x64xf32>
    %370 = math.exp %369 : vector<8x64xf32>
    %cst_88 = arith.constant 1.000000e+00 : f32
    %371 = vector.broadcast %cst_88 : f32 to vector<8x64xf32>
    %372 = arith.addf %371, %370 : vector<8x64xf32>
    %373 = arith.divf %371, %372 : vector<8x64xf32>
    %374 = vector.extract_strided_slice %373 {offsets = [0, 0], sizes = [8, 32], strides = [1, 1]} : vector<8x64xf32> to vector<8x32xf32>
    %375 = vector.extract_strided_slice %373 {offsets = [0, 32], sizes = [8, 32], strides = [1, 1]} : vector<8x64xf32> to vector<8x32xf32>
    %376 = vector.extract_strided_slice %364 {offsets = [0, 96], sizes = [8, 32], strides = [1, 1]} : vector<8x128xf32> to vector<8x32xf32>
    %377 = arith.addf %376, %46 : vector<8x32xf32>
    %378 = arith.mulf %374, %377 : vector<8x32xf32>
    %379 = arith.addf %366, %378 : vector<8x32xf32>
    %380 = math.tanh %379 : vector<8x32xf32>
    %cst_89 = arith.constant 1.000000e+00 : f32
    %381 = vector.broadcast %cst_89 : f32 to vector<8x32xf32>
    %382 = arith.subf %381, %375 : vector<8x32xf32>
    %383 = arith.mulf %382, %380 : vector<8x32xf32>
    %384 = arith.mulf %375, %313 : vector<8x32xf32>
    %385 = arith.addf %383, %384 : vector<8x32xf32>
    %386 = tpu.concatenate %385, %338 in 1 : vector<8x32xf32>, vector<8x32xf32> -> vector<8x64xf32>
    %c1_90 = arith.constant 1 : index
    %c0_91 = arith.constant 0 : index
    %c0_92 = arith.constant 0 : index
    %387 = vector.load %arg4[%c1_90, %c0_91, %c0_92] : memref<2x64x128xf32, #tpu.memory_space<vmem>>, vector<1x64x128xf32>
    %388 = vector.shape_cast %387 : vector<1x64x128xf32> to vector<64x128xf32>
    %cst_93 = arith.constant dense<0.000000e+00> : vector<8x128xf32>
    %389 = tpu.matmul %386, %388, %cst_93 {dimension_numbers = #tpu.dot_dimension_numbers<[1], [0], [0], [1], [0, 0, 1, 1], [], []>} : vector<8x64xf32>, vector<64x128xf32>, vector<8x128xf32> -> vector<8x128xf32>
    %390 = vector.extract_strided_slice %389 {offsets = [0, 64], sizes = [8, 32], strides = [1, 1]} : vector<8x128xf32> to vector<8x32xf32>
    %391 = arith.addf %390, %36 : vector<8x32xf32>
    %392 = vector.extract_strided_slice %389 {offsets = [0, 0], sizes = [8, 64], strides = [1, 1]} : vector<8x128xf32> to vector<8x64xf32>
    %393 = arith.addf %392, %21 : vector<8x64xf32>
    %394 = arith.negf %393 : vector<8x64xf32>
    %395 = math.exp %394 : vector<8x64xf32>
    %cst_94 = arith.constant 1.000000e+00 : f32
    %396 = vector.broadcast %cst_94 : f32 to vector<8x64xf32>
    %397 = arith.addf %396, %395 : vector<8x64xf32>
    %398 = arith.divf %396, %397 : vector<8x64xf32>
    %399 = vector.extract_strided_slice %398 {offsets = [0, 0], sizes = [8, 32], strides = [1, 1]} : vector<8x64xf32> to vector<8x32xf32>
    %400 = vector.extract_strided_slice %398 {offsets = [0, 32], sizes = [8, 32], strides = [1, 1]} : vector<8x64xf32> to vector<8x32xf32>
    %401 = vector.extract_strided_slice %389 {offsets = [0, 96], sizes = [8, 32], strides = [1, 1]} : vector<8x128xf32> to vector<8x32xf32>
    %402 = arith.addf %401, %51 : vector<8x32xf32>
    %403 = arith.mulf %399, %402 : vector<8x32xf32>
    %404 = arith.addf %391, %403 : vector<8x32xf32>
    %405 = math.tanh %404 : vector<8x32xf32>
    %cst_95 = arith.constant 1.000000e+00 : f32
    %406 = vector.broadcast %cst_95 : f32 to vector<8x32xf32>
    %407 = arith.subf %406, %400 : vector<8x32xf32>
    %408 = arith.mulf %407, %405 : vector<8x32xf32>
    %409 = arith.mulf %400, %338 : vector<8x32xf32>
    %410 = arith.addf %408, %409 : vector<8x32xf32>
    %c32 = arith.constant 32 : index
    %c0_96 = arith.constant 0 : index
    %411 = vector.load %arg9[%c32, %c0_96] : memref<64x32xf32, #tpu.memory_space<vmem>>, vector<8x32xf32>
    tpu.vector_store %arg9[%c32, %c0_96], %410 {strides = array<i32>} : memref<64x32xf32, #tpu.memory_space<vmem>>, vector<8x32xf32>,
    %c0_97 = arith.constant 0 : index
    %c0_98 = arith.constant 0 : index
    %412 = vector.load %arg3[%c0_97, %c0_98] : memref<32x128xf32, #tpu.memory_space<vmem>>, vector<32x128xf32>
    %cst_99 = arith.constant dense<0.000000e+00> : vector<8x128xf32>
    %413 = tpu.matmul %360, %412, %cst_99 {dimension_numbers = #tpu.dot_dimension_numbers<[1], [0], [0], [1], [0, 0, 1, 1], [], []>} : vector<8x32xf32>, vector<32x128xf32>, vector<8x128xf32> -> vector<8x128xf32>
    %414 = vector.extract_strided_slice %413 {offsets = [0, 0], sizes = [8, 64], strides = [1, 1]} : vector<8x128xf32> to vector<8x64xf32>
    %415 = arith.addf %414, %11 : vector<8x64xf32>
    %416 = arith.negf %415 : vector<8x64xf32>
    %417 = math.exp %416 : vector<8x64xf32>
    %cst_100 = arith.constant 1.000000e+00 : f32
    %418 = vector.broadcast %cst_100 : f32 to vector<8x64xf32>
    %419 = arith.addf %418, %417 : vector<8x64xf32>
    %420 = arith.divf %418, %419 : vector<8x64xf32>
    %421 = vector.extract_strided_slice %420 {offsets = [0, 0], sizes = [8, 32], strides = [1, 1]} : vector<8x64xf32> to vector<8x32xf32>
    %422 = vector.extract_strided_slice %420 {offsets = [0, 32], sizes = [8, 32], strides = [1, 1]} : vector<8x64xf32> to vector<8x32xf32>
    %423 = vector.extract_strided_slice %413 {offsets = [0, 96], sizes = [8, 32], strides = [1, 1]} : vector<8x128xf32> to vector<8x32xf32>
    %424 = arith.addf %423, %41 : vector<8x32xf32>
    %425 = arith.mulf %421, %424 : vector<8x32xf32>
    %426 = arith.addf %26, %425 : vector<8x32xf32>
    %427 = math.tanh %426 : vector<8x32xf32>
    %cst_101 = arith.constant 1.000000e+00 : f32
    %428 = vector.broadcast %cst_101 : f32 to vector<8x32xf32>
    %429 = arith.subf %428, %422 : vector<8x32xf32>
    %430 = arith.mulf %429, %427 : vector<8x32xf32>
    %431 = arith.mulf %422, %360 : vector<8x32xf32>
    %432 = arith.addf %430, %431 : vector<8x32xf32>
    %433 = tpu.concatenate %432, %385 in 1 : vector<8x32xf32>, vector<8x32xf32> -> vector<8x64xf32>
    %c0_102 = arith.constant 0 : index
    %c0_103 = arith.constant 0 : index
    %c0_104 = arith.constant 0 : index
    %434 = vector.load %arg4[%c0_102, %c0_103, %c0_104] : memref<2x64x128xf32, #tpu.memory_space<vmem>>, vector<1x64x128xf32>
    %435 = vector.shape_cast %434 : vector<1x64x128xf32> to vector<64x128xf32>
    %cst_105 = arith.constant dense<0.000000e+00> : vector<8x128xf32>
    %436 = tpu.matmul %433, %435, %cst_105 {dimension_numbers = #tpu.dot_dimension_numbers<[1], [0], [0], [1], [0, 0, 1, 1], [], []>} : vector<8x64xf32>, vector<64x128xf32>, vector<8x128xf32> -> vector<8x128xf32>
    %437 = vector.extract_strided_slice %436 {offsets = [0, 64], sizes = [8, 32], strides = [1, 1]} : vector<8x128xf32> to vector<8x32xf32>
    %438 = arith.addf %437, %31 : vector<8x32xf32>
    %439 = vector.extract_strided_slice %436 {offsets = [0, 0], sizes = [8, 64], strides = [1, 1]} : vector<8x128xf32> to vector<8x64xf32>
    %440 = arith.addf %439, %16 : vector<8x64xf32>
    %441 = arith.negf %440 : vector<8x64xf32>
    %442 = math.exp %441 : vector<8x64xf32>
    %cst_106 = arith.constant 1.000000e+00 : f32
    %443 = vector.broadcast %cst_106 : f32 to vector<8x64xf32>
    %444 = arith.addf %443, %442 : vector<8x64xf32>
    %445 = arith.divf %443, %444 : vector<8x64xf32>
    %446 = vector.extract_strided_slice %445 {offsets = [0, 0], sizes = [8, 32], strides = [1, 1]} : vector<8x64xf32> to vector<8x32xf32>
    %447 = vector.extract_strided_slice %445 {offsets = [0, 32], sizes = [8, 32], strides = [1, 1]} : vector<8x64xf32> to vector<8x32xf32>
    %448 = vector.extract_strided_slice %436 {offsets = [0, 96], sizes = [8, 32], strides = [1, 1]} : vector<8x128xf32> to vector<8x32xf32>
    %449 = arith.addf %448, %46 : vector<8x32xf32>
    %450 = arith.mulf %446, %449 : vector<8x32xf32>
    %451 = arith.addf %438, %450 : vector<8x32xf32>
    %452 = math.tanh %451 : vector<8x32xf32>
    %cst_107 = arith.constant 1.000000e+00 : f32
    %453 = vector.broadcast %cst_107 : f32 to vector<8x32xf32>
    %454 = arith.subf %453, %447 : vector<8x32xf32>
    %455 = arith.mulf %454, %452 : vector<8x32xf32>
    %456 = arith.mulf %447, %385 : vector<8x32xf32>
    %457 = arith.addf %455, %456 : vector<8x32xf32>
    %458 = tpu.concatenate %457, %410 in 1 : vector<8x32xf32>, vector<8x32xf32> -> vector<8x64xf32>
    %c1_108 = arith.constant 1 : index
    %c0_109 = arith.constant 0 : index
    %c0_110 = arith.constant 0 : index
    %459 = vector.load %arg4[%c1_108, %c0_109, %c0_110] : memref<2x64x128xf32, #tpu.memory_space<vmem>>, vector<1x64x128xf32>
    %460 = vector.shape_cast %459 : vector<1x64x128xf32> to vector<64x128xf32>
    %cst_111 = arith.constant dense<0.000000e+00> : vector<8x128xf32>
    %461 = tpu.matmul %458, %460, %cst_111 {dimension_numbers = #tpu.dot_dimension_numbers<[1], [0], [0], [1], [0, 0, 1, 1], [], []>} : vector<8x64xf32>, vector<64x128xf32>, vector<8x128xf32> -> vector<8x128xf32>
    %462 = vector.extract_strided_slice %461 {offsets = [0, 64], sizes = [8, 32], strides = [1, 1]} : vector<8x128xf32> to vector<8x32xf32>
    %463 = arith.addf %462, %36 : vector<8x32xf32>
    %464 = vector.extract_strided_slice %461 {offsets = [0, 0], sizes = [8, 64], strides = [1, 1]} : vector<8x128xf32> to vector<8x64xf32>
    %465 = arith.addf %464, %21 : vector<8x64xf32>
    %466 = arith.negf %465 : vector<8x64xf32>
    %467 = math.exp %466 : vector<8x64xf32>
    %cst_112 = arith.constant 1.000000e+00 : f32
    %468 = vector.broadcast %cst_112 : f32 to vector<8x64xf32>
    %469 = arith.addf %468, %467 : vector<8x64xf32>
    %470 = arith.divf %468, %469 : vector<8x64xf32>
    %471 = vector.extract_strided_slice %470 {offsets = [0, 0], sizes = [8, 32], strides = [1, 1]} : vector<8x64xf32> to vector<8x32xf32>
    %472 = vector.extract_strided_slice %470 {offsets = [0, 32], sizes = [8, 32], strides = [1, 1]} : vector<8x64xf32> to vector<8x32xf32>
    %473 = vector.extract_strided_slice %461 {offsets = [0, 96], sizes = [8, 32], strides = [1, 1]} : vector<8x128xf32> to vector<8x32xf32>
    %474 = arith.addf %473, %51 : vector<8x32xf32>
    %475 = arith.mulf %471, %474 : vector<8x32xf32>
    %476 = arith.addf %463, %475 : vector<8x32xf32>
    %477 = math.tanh %476 : vector<8x32xf32>
    %cst_113 = arith.constant 1.000000e+00 : f32
    %478 = vector.broadcast %cst_113 : f32 to vector<8x32xf32>
    %479 = arith.subf %478, %472 : vector<8x32xf32>
    %480 = arith.mulf %479, %477 : vector<8x32xf32>
    %481 = arith.mulf %472, %410 : vector<8x32xf32>
    %482 = arith.addf %480, %481 : vector<8x32xf32>
    %c40 = arith.constant 40 : index
    %c0_114 = arith.constant 0 : index
    %483 = vector.load %arg9[%c40, %c0_114] : memref<64x32xf32, #tpu.memory_space<vmem>>, vector<8x32xf32>
    tpu.vector_store %arg9[%c40, %c0_114], %482 {strides = array<i32>} : memref<64x32xf32, #tpu.memory_space<vmem>>, vector<8x32xf32>,
    %c0_115 = arith.constant 0 : index
    %c0_116 = arith.constant 0 : index
    %484 = vector.load %arg3[%c0_115, %c0_116] : memref<32x128xf32, #tpu.memory_space<vmem>>, vector<32x128xf32>
    %cst_117 = arith.constant dense<0.000000e+00> : vector<8x128xf32>
    %485 = tpu.matmul %432, %484, %cst_117 {dimension_numbers = #tpu.dot_dimension_numbers<[1], [0], [0], [1], [0, 0, 1, 1], [], []>} : vector<8x32xf32>, vector<32x128xf32>, vector<8x128xf32> -> vector<8x128xf32>
    %486 = vector.extract_strided_slice %485 {offsets = [0, 0], sizes = [8, 64], strides = [1, 1]} : vector<8x128xf32> to vector<8x64xf32>
    %487 = arith.addf %486, %11 : vector<8x64xf32>
    %488 = arith.negf %487 : vector<8x64xf32>
    %489 = math.exp %488 : vector<8x64xf32>
    %cst_118 = arith.constant 1.000000e+00 : f32
    %490 = vector.broadcast %cst_118 : f32 to vector<8x64xf32>
    %491 = arith.addf %490, %489 : vector<8x64xf32>
    %492 = arith.divf %490, %491 : vector<8x64xf32>
    %493 = vector.extract_strided_slice %492 {offsets = [0, 0], sizes = [8, 32], strides = [1, 1]} : vector<8x64xf32> to vector<8x32xf32>
    %494 = vector.extract_strided_slice %492 {offsets = [0, 32], sizes = [8, 32], strides = [1, 1]} : vector<8x64xf32> to vector<8x32xf32>
    %495 = vector.extract_strided_slice %485 {offsets = [0, 96], sizes = [8, 32], strides = [1, 1]} : vector<8x128xf32> to vector<8x32xf32>
    %496 = arith.addf %495, %41 : vector<8x32xf32>
    %497 = arith.mulf %493, %496 : vector<8x32xf32>
    %498 = arith.addf %26, %497 : vector<8x32xf32>
    %499 = math.tanh %498 : vector<8x32xf32>
    %cst_119 = arith.constant 1.000000e+00 : f32
    %500 = vector.broadcast %cst_119 : f32 to vector<8x32xf32>
    %501 = arith.subf %500, %494 : vector<8x32xf32>
    %502 = arith.mulf %501, %499 : vector<8x32xf32>
    %503 = arith.mulf %494, %432 : vector<8x32xf32>
    %504 = arith.addf %502, %503 : vector<8x32xf32>
    %505 = tpu.concatenate %504, %457 in 1 : vector<8x32xf32>, vector<8x32xf32> -> vector<8x64xf32>
    %c0_120 = arith.constant 0 : index
    %c0_121 = arith.constant 0 : index
    %c0_122 = arith.constant 0 : index
    %506 = vector.load %arg4[%c0_120, %c0_121, %c0_122] : memref<2x64x128xf32, #tpu.memory_space<vmem>>, vector<1x64x128xf32>
    %507 = vector.shape_cast %506 : vector<1x64x128xf32> to vector<64x128xf32>
    %cst_123 = arith.constant dense<0.000000e+00> : vector<8x128xf32>
    %508 = tpu.matmul %505, %507, %cst_123 {dimension_numbers = #tpu.dot_dimension_numbers<[1], [0], [0], [1], [0, 0, 1, 1], [], []>} : vector<8x64xf32>, vector<64x128xf32>, vector<8x128xf32> -> vector<8x128xf32>
    %509 = vector.extract_strided_slice %508 {offsets = [0, 64], sizes = [8, 32], strides = [1, 1]} : vector<8x128xf32> to vector<8x32xf32>
    %510 = arith.addf %509, %31 : vector<8x32xf32>
    %511 = vector.extract_strided_slice %508 {offsets = [0, 0], sizes = [8, 64], strides = [1, 1]} : vector<8x128xf32> to vector<8x64xf32>
    %512 = arith.addf %511, %16 : vector<8x64xf32>
    %513 = arith.negf %512 : vector<8x64xf32>
    %514 = math.exp %513 : vector<8x64xf32>
    %cst_124 = arith.constant 1.000000e+00 : f32
    %515 = vector.broadcast %cst_124 : f32 to vector<8x64xf32>
    %516 = arith.addf %515, %514 : vector<8x64xf32>
    %517 = arith.divf %515, %516 : vector<8x64xf32>
    %518 = vector.extract_strided_slice %517 {offsets = [0, 0], sizes = [8, 32], strides = [1, 1]} : vector<8x64xf32> to vector<8x32xf32>
    %519 = vector.extract_strided_slice %517 {offsets = [0, 32], sizes = [8, 32], strides = [1, 1]} : vector<8x64xf32> to vector<8x32xf32>
    %520 = vector.extract_strided_slice %508 {offsets = [0, 96], sizes = [8, 32], strides = [1, 1]} : vector<8x128xf32> to vector<8x32xf32>
    %521 = arith.addf %520, %46 : vector<8x32xf32>
    %522 = arith.mulf %518, %521 : vector<8x32xf32>
    %523 = arith.addf %510, %522 : vector<8x32xf32>
    %524 = math.tanh %523 : vector<8x32xf32>
    %cst_125 = arith.constant 1.000000e+00 : f32
    %525 = vector.broadcast %cst_125 : f32 to vector<8x32xf32>
    %526 = arith.subf %525, %519 : vector<8x32xf32>
    %527 = arith.mulf %526, %524 : vector<8x32xf32>
    %528 = arith.mulf %519, %457 : vector<8x32xf32>
    %529 = arith.addf %527, %528 : vector<8x32xf32>
    %530 = tpu.concatenate %529, %482 in 1 : vector<8x32xf32>, vector<8x32xf32> -> vector<8x64xf32>
    %c1_126 = arith.constant 1 : index
    %c0_127 = arith.constant 0 : index
    %c0_128 = arith.constant 0 : index
    %531 = vector.load %arg4[%c1_126, %c0_127, %c0_128] : memref<2x64x128xf32, #tpu.memory_space<vmem>>, vector<1x64x128xf32>
    %532 = vector.shape_cast %531 : vector<1x64x128xf32> to vector<64x128xf32>
    %cst_129 = arith.constant dense<0.000000e+00> : vector<8x128xf32>
    %533 = tpu.matmul %530, %532, %cst_129 {dimension_numbers = #tpu.dot_dimension_numbers<[1], [0], [0], [1], [0, 0, 1, 1], [], []>} : vector<8x64xf32>, vector<64x128xf32>, vector<8x128xf32> -> vector<8x128xf32>
    %534 = vector.extract_strided_slice %533 {offsets = [0, 64], sizes = [8, 32], strides = [1, 1]} : vector<8x128xf32> to vector<8x32xf32>
    %535 = arith.addf %534, %36 : vector<8x32xf32>
    %536 = vector.extract_strided_slice %533 {offsets = [0, 0], sizes = [8, 64], strides = [1, 1]} : vector<8x128xf32> to vector<8x64xf32>
    %537 = arith.addf %536, %21 : vector<8x64xf32>
    %538 = arith.negf %537 : vector<8x64xf32>
    %539 = math.exp %538 : vector<8x64xf32>
    %cst_130 = arith.constant 1.000000e+00 : f32
    %540 = vector.broadcast %cst_130 : f32 to vector<8x64xf32>
    %541 = arith.addf %540, %539 : vector<8x64xf32>
    %542 = arith.divf %540, %541 : vector<8x64xf32>
    %543 = vector.extract_strided_slice %542 {offsets = [0, 0], sizes = [8, 32], strides = [1, 1]} : vector<8x64xf32> to vector<8x32xf32>
    %544 = vector.extract_strided_slice %542 {offsets = [0, 32], sizes = [8, 32], strides = [1, 1]} : vector<8x64xf32> to vector<8x32xf32>
    %545 = vector.extract_strided_slice %533 {offsets = [0, 96], sizes = [8, 32], strides = [1, 1]} : vector<8x128xf32> to vector<8x32xf32>
    %546 = arith.addf %545, %51 : vector<8x32xf32>
    %547 = arith.mulf %543, %546 : vector<8x32xf32>
    %548 = arith.addf %535, %547 : vector<8x32xf32>
    %549 = math.tanh %548 : vector<8x32xf32>
    %cst_131 = arith.constant 1.000000e+00 : f32
    %550 = vector.broadcast %cst_131 : f32 to vector<8x32xf32>
    %551 = arith.subf %550, %544 : vector<8x32xf32>
    %552 = arith.mulf %551, %549 : vector<8x32xf32>
    %553 = arith.mulf %544, %482 : vector<8x32xf32>
    %554 = arith.addf %552, %553 : vector<8x32xf32>
    %c48 = arith.constant 48 : index
    %c0_132 = arith.constant 0 : index
    %555 = vector.load %arg9[%c48, %c0_132] : memref<64x32xf32, #tpu.memory_space<vmem>>, vector<8x32xf32>
    tpu.vector_store %arg9[%c48, %c0_132], %554 {strides = array<i32>} : memref<64x32xf32, #tpu.memory_space<vmem>>, vector<8x32xf32>,
    %c0_133 = arith.constant 0 : index
    %c0_134 = arith.constant 0 : index
    %556 = vector.load %arg3[%c0_133, %c0_134] : memref<32x128xf32, #tpu.memory_space<vmem>>, vector<32x128xf32>
    %cst_135 = arith.constant dense<0.000000e+00> : vector<8x128xf32>
    %557 = tpu.matmul %504, %556, %cst_135 {dimension_numbers = #tpu.dot_dimension_numbers<[1], [0], [0], [1], [0, 0, 1, 1], [], []>} : vector<8x32xf32>, vector<32x128xf32>, vector<8x128xf32> -> vector<8x128xf32>
    %558 = vector.extract_strided_slice %557 {offsets = [0, 0], sizes = [8, 64], strides = [1, 1]} : vector<8x128xf32> to vector<8x64xf32>
    %559 = arith.addf %558, %11 : vector<8x64xf32>
    %560 = arith.negf %559 : vector<8x64xf32>
    %561 = math.exp %560 : vector<8x64xf32>
    %cst_136 = arith.constant 1.000000e+00 : f32
    %562 = vector.broadcast %cst_136 : f32 to vector<8x64xf32>
    %563 = arith.addf %562, %561 : vector<8x64xf32>
    %564 = arith.divf %562, %563 : vector<8x64xf32>
    %565 = vector.extract_strided_slice %564 {offsets = [0, 0], sizes = [8, 32], strides = [1, 1]} : vector<8x64xf32> to vector<8x32xf32>
    %566 = vector.extract_strided_slice %564 {offsets = [0, 32], sizes = [8, 32], strides = [1, 1]} : vector<8x64xf32> to vector<8x32xf32>
    %567 = vector.extract_strided_slice %557 {offsets = [0, 96], sizes = [8, 32], strides = [1, 1]} : vector<8x128xf32> to vector<8x32xf32>
    %568 = arith.addf %567, %41 : vector<8x32xf32>
    %569 = arith.mulf %565, %568 : vector<8x32xf32>
    %570 = arith.addf %26, %569 : vector<8x32xf32>
    %571 = math.tanh %570 : vector<8x32xf32>
    %cst_137 = arith.constant 1.000000e+00 : f32
    %572 = vector.broadcast %cst_137 : f32 to vector<8x32xf32>
    %573 = arith.subf %572, %566 : vector<8x32xf32>
    %574 = arith.mulf %573, %571 : vector<8x32xf32>
    %575 = arith.mulf %566, %504 : vector<8x32xf32>
    %576 = arith.addf %574, %575 : vector<8x32xf32>
    %577 = tpu.concatenate %576, %529 in 1 : vector<8x32xf32>, vector<8x32xf32> -> vector<8x64xf32>
    %c0_138 = arith.constant 0 : index
    %c0_139 = arith.constant 0 : index
    %c0_140 = arith.constant 0 : index
    %578 = vector.load %arg4[%c0_138, %c0_139, %c0_140] : memref<2x64x128xf32, #tpu.memory_space<vmem>>, vector<1x64x128xf32>
    %579 = vector.shape_cast %578 : vector<1x64x128xf32> to vector<64x128xf32>
    %cst_141 = arith.constant dense<0.000000e+00> : vector<8x128xf32>
    %580 = tpu.matmul %577, %579, %cst_141 {dimension_numbers = #tpu.dot_dimension_numbers<[1], [0], [0], [1], [0, 0, 1, 1], [], []>} : vector<8x64xf32>, vector<64x128xf32>, vector<8x128xf32> -> vector<8x128xf32>
    %581 = vector.extract_strided_slice %580 {offsets = [0, 64], sizes = [8, 32], strides = [1, 1]} : vector<8x128xf32> to vector<8x32xf32>
    %582 = arith.addf %581, %31 : vector<8x32xf32>
    %583 = vector.extract_strided_slice %580 {offsets = [0, 0], sizes = [8, 64], strides = [1, 1]} : vector<8x128xf32> to vector<8x64xf32>
    %584 = arith.addf %583, %16 : vector<8x64xf32>
    %585 = arith.negf %584 : vector<8x64xf32>
    %586 = math.exp %585 : vector<8x64xf32>
    %cst_142 = arith.constant 1.000000e+00 : f32
    %587 = vector.broadcast %cst_142 : f32 to vector<8x64xf32>
    %588 = arith.addf %587, %586 : vector<8x64xf32>
    %589 = arith.divf %587, %588 : vector<8x64xf32>
    %590 = vector.extract_strided_slice %589 {offsets = [0, 0], sizes = [8, 32], strides = [1, 1]} : vector<8x64xf32> to vector<8x32xf32>
    %591 = vector.extract_strided_slice %589 {offsets = [0, 32], sizes = [8, 32], strides = [1, 1]} : vector<8x64xf32> to vector<8x32xf32>
    %592 = vector.extract_strided_slice %580 {offsets = [0, 96], sizes = [8, 32], strides = [1, 1]} : vector<8x128xf32> to vector<8x32xf32>
    %593 = arith.addf %592, %46 : vector<8x32xf32>
    %594 = arith.mulf %590, %593 : vector<8x32xf32>
    %595 = arith.addf %582, %594 : vector<8x32xf32>
    %596 = math.tanh %595 : vector<8x32xf32>
    %cst_143 = arith.constant 1.000000e+00 : f32
    %597 = vector.broadcast %cst_143 : f32 to vector<8x32xf32>
    %598 = arith.subf %597, %591 : vector<8x32xf32>
    %599 = arith.mulf %598, %596 : vector<8x32xf32>
    %600 = arith.mulf %591, %529 : vector<8x32xf32>
    %601 = arith.addf %599, %600 : vector<8x32xf32>
    %602 = tpu.concatenate %601, %554 in 1 : vector<8x32xf32>, vector<8x32xf32> -> vector<8x64xf32>
    %c1_144 = arith.constant 1 : index
    %c0_145 = arith.constant 0 : index
    %c0_146 = arith.constant 0 : index
    %603 = vector.load %arg4[%c1_144, %c0_145, %c0_146] : memref<2x64x128xf32, #tpu.memory_space<vmem>>, vector<1x64x128xf32>
    %604 = vector.shape_cast %603 : vector<1x64x128xf32> to vector<64x128xf32>
    %cst_147 = arith.constant dense<0.000000e+00> : vector<8x128xf32>
    %605 = tpu.matmul %602, %604, %cst_147 {dimension_numbers = #tpu.dot_dimension_numbers<[1], [0], [0], [1], [0, 0, 1, 1], [], []>} : vector<8x64xf32>, vector<64x128xf32>, vector<8x128xf32> -> vector<8x128xf32>
    %606 = vector.extract_strided_slice %605 {offsets = [0, 64], sizes = [8, 32], strides = [1, 1]} : vector<8x128xf32> to vector<8x32xf32>
    %607 = arith.addf %606, %36 : vector<8x32xf32>
    %608 = vector.extract_strided_slice %605 {offsets = [0, 0], sizes = [8, 64], strides = [1, 1]} : vector<8x128xf32> to vector<8x64xf32>
    %609 = arith.addf %608, %21 : vector<8x64xf32>
    %610 = arith.negf %609 : vector<8x64xf32>
    %611 = math.exp %610 : vector<8x64xf32>
    %cst_148 = arith.constant 1.000000e+00 : f32
    %612 = vector.broadcast %cst_148 : f32 to vector<8x64xf32>
    %613 = arith.addf %612, %611 : vector<8x64xf32>
    %614 = arith.divf %612, %613 : vector<8x64xf32>
    %615 = vector.extract_strided_slice %614 {offsets = [0, 0], sizes = [8, 32], strides = [1, 1]} : vector<8x64xf32> to vector<8x32xf32>
    %616 = vector.extract_strided_slice %614 {offsets = [0, 32], sizes = [8, 32], strides = [1, 1]} : vector<8x64xf32> to vector<8x32xf32>
    %617 = vector.extract_strided_slice %605 {offsets = [0, 96], sizes = [8, 32], strides = [1, 1]} : vector<8x128xf32> to vector<8x32xf32>
    %618 = arith.addf %617, %51 : vector<8x32xf32>
    %619 = arith.mulf %615, %618 : vector<8x32xf32>
    %620 = arith.addf %607, %619 : vector<8x32xf32>
    %621 = math.tanh %620 : vector<8x32xf32>
    %cst_149 = arith.constant 1.000000e+00 : f32
    %622 = vector.broadcast %cst_149 : f32 to vector<8x32xf32>
    %623 = arith.subf %622, %616 : vector<8x32xf32>
    %624 = arith.mulf %623, %621 : vector<8x32xf32>
    %625 = arith.mulf %616, %554 : vector<8x32xf32>
    %626 = arith.addf %624, %625 : vector<8x32xf32>
    %c56 = arith.constant 56 : index
    %c0_150 = arith.constant 0 : index
    %627 = vector.load %arg9[%c56, %c0_150] : memref<64x32xf32, #tpu.memory_space<vmem>>, vector<8x32xf32>
    tpu.vector_store %arg9[%c56, %c0_150], %626 {strides = array<i32>} : memref<64x32xf32, #tpu.memory_space<vmem>>, vector<8x32xf32>,
    %c0_151 = arith.constant 0 : index
    %c0_152 = arith.constant 0 : index
    %628 = vector.load %arg9[%c0_151, %c0_152] : memref<64x32xf32, #tpu.memory_space<vmem>>, vector<64x32xf32>
    %c0_153 = arith.constant 0 : index
    %c0_154 = arith.constant 0 : index
    %629 = vector.load %arg6[%c0_153, %c0_154] : memref<32x2xf32, #tpu.memory_space<vmem>>, vector<32x2xf32>
    %cst_155 = arith.constant dense<0.000000e+00> : vector<64x2xf32>
    %630 = tpu.matmul %628, %629, %cst_155 {dimension_numbers = #tpu.dot_dimension_numbers<[1], [0], [0], [1], [0, 0, 1, 1], [], []>} : vector<64x32xf32>, vector<32x2xf32>, vector<64x2xf32> -> vector<64x2xf32>
    %c0_156 = arith.constant 0 : index
    %c0_157 = arith.constant 0 : index
    %631 = vector.load %arg7[%c0_156, %c0_157] : memref<1x2xf32, #tpu.memory_space<vmem>>, vector<1x2xf32>
    %632 = vector.broadcast %631 : vector<1x2xf32> to vector<64x2xf32>
    %633 = arith.addf %630, %632 : vector<64x2xf32>
    %c0_158 = arith.constant 0 : index
    %c0_159 = arith.constant 0 : index
    %634 = vector.load %arg8[%c0_158, %c0_159] : memref<64x2xf32, #tpu.memory_space<vmem>>, vector<64x2xf32>
    tpu.vector_store %arg8[%c0_158, %c0_159], %633 {strides = array<i32>} : memref<64x2xf32, #tpu.memory_space<vmem>>, vector<64x2xf32>,
    return
  }
}

</mosaic_0001>

<llo_original>
// kernel: decoder_forward.1
$region0: #{decoder_forward.1}
  #allocation0 [shape = 'u32[]', space=smem, size = 0x4, offset = 0x4, fixed_abs, tag = 'smem constant byte address 0x4 - core index']
  #allocation1 [shape = 'u32[144,128]{1,0:T(1,128)}', space=vmem, size = 0x12000, scoped, tag = 'internal scratch']
  #allocation2 [shape = 'f32[64,32]{1,0:T(8,128)}', space=vmem, size = 0x8000, scoped, tag = 'scratch operand']
  %s0 = inlined_call_operand.vmem [shape: f32[8,20], index: 0, kind: input, shape index: {}]
  %s1 = inlined_call_operand.hbm [shape: f32[20,32], index: 1, kind: input, shape index: {}]
  %s2 = inlined_call_operand.vmem [shape: f32[1,32], index: 2, kind: input, shape index: {}]
  %s3 = inlined_call_operand.vmem [shape: f32[32,128], index: 3, kind: input, shape index: {}]
  %s4 = inlined_call_operand.hbm [shape: f32[2,64,128], index: 4, kind: input, shape index: {}]
  %s5 = inlined_call_operand.vmem [shape: f32[3,128], index: 5, kind: input, shape index: {}]
  %s6 = inlined_call_operand.vmem [shape: f32[32,2], index: 6, kind: input, shape index: {}]
  %s7 = inlined_call_operand.vmem [shape: f32[1,2], index: 7, kind: input, shape index: {}]
  %s8 = inlined_call_operand.vmem [shape: f32[64,2], index: 8, kind: output, shape index: {}]
  %s9 = sld [smem:[#allocation0]]
  $region50: #{decoder_forward.1} parent=0
    _
  %s11 = ssub.s32 1, %s9
  %s12 = scalar_select 0, %s11, %s9
  $region1: #{decoder_forward.1} parent=0
    #allocation3 [shape = 'u8[12288]{0}', space=vmem, size = 0x3000, scoped, tag = 'input window, operand 1, single buffered']
    #allocation4 [shape = 's32[1]{0}', space=sflag, size = 0x4, scoped, tag = 'scoped memory for decoder_forward.1']
    #allocation5 [shape = 'u8[65536]{0}', space=vmem, size = 0x10000, scoped, tag = 'input window, operand 4, single buffered']
    #allocation6 [shape = 's32[1]{0}', space=sflag, size = 0x4, scoped, tag = 'scoped memory for decoder_forward.1']
    %13 = vsyncpa [#allocation4], 0
    %14 = vsyncpa [#allocation6], 0
    // Predicated region
    $region2: #{decoder_forward.1} parent=1 // pred_check
      _
    $region3: #{decoder_forward.1} parent=1 // pred_check_branch
      %16 = sbr.rel (0) target = $region5
    $region4: #{decoder_forward.1} parent=1 // pred_region
      _
    $region5: #{decoder_forward.1} parent=1 // pred_fallthru
      _
    // Predicated region
    $region6: #{decoder_forward.1} parent=1 // pred_check
      _
    $region7: #{decoder_forward.1} parent=1 // pred_check_branch
      %18 = sbr.rel (0) target = $region9
    $region8: #{decoder_forward.1} parent=1 // pred_region
      %s20 = ssub.s32 384, 384
      %21 = vsyncadd [#allocation4], %s20
      %s22 = sshll.u32 [#allocation3], 4
      %s23 = int_to_ptr.vmem [resolvable:$true] %s22
      %28 = dma.hbm_to_vmem [thread:$0]  %s1, 384, %s23, [#allocation4], 128, 128, 8
    $region9: #{decoder_forward.1} parent=1 // pred_fallthru
      _
    // Predicated region
    $region10: #{decoder_forward.1} parent=1 // pred_check
      _
    $region11: #{decoder_forward.1} parent=1 // pred_check_branch
      %30 = sbr.rel (0) target = $region13
    $region12: #{decoder_forward.1} parent=1 // pred_region
      _
    $region13: #{decoder_forward.1} parent=1 // pred_fallthru
      _
    // Predicated region
    $region14: #{decoder_forward.1} parent=1 // pred_check
      _
    $region15: #{decoder_forward.1} parent=1 // pred_check_branch
      %32 = sbr.rel (0) target = $region17
    $region16: #{decoder_forward.1} parent=1 // pred_region
      _
    $region17: #{decoder_forward.1} parent=1 // pred_fallthru
      _
    // Predicated region
    $region18: #{decoder_forward.1} parent=1 // pred_check
      _
    $region19: #{decoder_forward.1} parent=1 // pred_check_branch
      %34 = sbr.rel (0) target = $region21
    $region20: #{decoder_forward.1} parent=1 // pred_region
      %s36 = ssub.s32 2048, 2048
      %37 = vsyncadd [#allocation6], %s36
      %s38 = sshll.u32 [#allocation5], 4
      %s39 = int_to_ptr.vmem [resolvable:$true] %s38
      %44 = dma.hbm_to_vmem [thread:$0]  %s4, 2048, %s39, [#allocation6], 128, 128, 8
    $region21: #{decoder_forward.1} parent=1 // pred_fallthru
      _
    // Predicated region
    $region22: #{decoder_forward.1} parent=1 // pred_check
      _
    $region23: #{decoder_forward.1} parent=1 // pred_check_branch
      %46 = sbr.rel (0) target = $region25
    $region24: #{decoder_forward.1} parent=1 // pred_region
      _
    $region25: #{decoder_forward.1} parent=1 // pred_fallthru
      _
    // Predicated region
    $region26: #{decoder_forward.1} parent=1 // pred_check
      _
    $region27: #{decoder_forward.1} parent=1 // pred_check_branch
      %48 = sbr.rel (0) target = $region29
    $region28: #{decoder_forward.1} parent=1 // pred_region
      _
    $region29: #{decoder_forward.1} parent=1 // pred_fallthru
      _
    // Predicated region
    $region30: #{decoder_forward.1} parent=1 // pred_check
      _
    $region31: #{decoder_forward.1} parent=1 // pred_check_branch
      %50 = sbr.rel (0) target = $region33
    $region32: #{decoder_forward.1} parent=1 // pred_region
      _
    $region33: #{decoder_forward.1} parent=1 // pred_fallthru
      _
    // Predicated region
    $region34: #{decoder_forward.1} parent=1 // pred_check
      _
    $region35: #{decoder_forward.1} parent=1 // pred_check_branch
      %52 = sbr.rel (0) target = $region37
    $region36: #{decoder_forward.1} parent=1 // pred_region
      %53 = dma.done [#allocation4], 384
    $region37: #{decoder_forward.1} parent=1 // pred_fallthru
      _
    // Predicated region
    $region38: #{decoder_forward.1} parent=1 // pred_check
      _
    $region39: #{decoder_forward.1} parent=1 // pred_check_branch
      %55 = sbr.rel (0) target = $region41
    $region40: #{decoder_forward.1} parent=1 // pred_region
      %56 = dma.done [#allocation6], 2048
    $region41: #{decoder_forward.1} parent=1 // pred_fallthru
      _
    %v57 = vld [vmem:[%s0] sm:$0xff]
    %v58 = vld [vmem:[#allocation3] sm:$0xff]
    %v59 = vld [vmem:[#allocation3 + $0x8] sm:$0xff]
    %v60 = vld [vmem:[#allocation3 + $0x10] sm:$0xf]
    %v61 = vld [vmem:[%s2] sm:$0x1]
    %v63 = vlaneseq
    %v64 = vshrl.u32 %v63, 7
    %v65 = vsub.s32 0, %v64
    %v66 = vrot.slane %v61, %v65
    %vm68 = vcmask 162816
    %v70 = vsel %vm68, %v57, 0
    %vm72 = vcmask 1043456
    %v74 = vsel %vm72, %v60, 0
    %76 = vmatprep.subr.mxu0 0.0
    %77 = vmatpush1.msra.mxu0 %v58
    %78 = vmatprep.subr.mxu0 0.0
    %79 = vmatpush1.msra.mxu0 %v59
    %80 = vmatprep.subr.mxu0 0.0
    %81 = vmatpush1.msra.mxu0 %v74
    %82 = vmatprep.subr.mxu0 0.0
    %83 = vmatpush1.msra.mxu0 0.0
    %84 = vmatprep.subr.mxu0 0.0
    %85 = vmatpush1.msra.mxu0 0.0
    %86 = vmatprep.subr.mxu0 0.0
    %87 = vmatpush1.msra.mxu0 0.0
    %88 = vmatprep.subr.mxu0 0.0
    %89 = vmatpush1.msra.mxu0 0.0
    %90 = vmatprep.subr.mxu0 0.0
    %91 = vmatpush1.msra.mxu0 0.0
    %92 = vmatprep.subr.mxu0 0.0
    %93 = vmatpush1.msra.mxu0 0.0
    %94 = vmatprep.subr.mxu0 0.0
    %95 = vmatpush1.msra.mxu0 0.0
    %96 = vmatprep.subr.mxu0 0.0
    %97 = vmatpush1.msra.mxu0 0.0
    %98 = vmatprep.subr.mxu0 0.0
    %99 = vmatpush1.msra.mxu0 0.0
    %100 = vmatprep.subr.mxu0 0.0
    %101 = vmatpush1.msra.mxu0 0.0
    %102 = vmatprep.subr.mxu0 0.0
    %103 = vmatpush1.msra.mxu0 0.0
    %104 = vmatprep.subr.mxu0 0.0
    %105 = vmatpush1.msra.mxu0 0.0
    %106 = vmatprep.subr.mxu0 0.0
    %107 = vmatpush1.msra.mxu0 0.0
    %108 = vmatprep.subr.mxu0 0.0
    %109 = vmatpush1.msra.mxu0 0.0
    %110 = vmatprep.subr.mxu0 0.0
    %111 = vmatpush1.msra.mxu0 0.0
    %112 = vmatprep.subr.mxu0 0.0
    %113 = vmatpush1.msra.mxu0 0.0
    %114 = vmatprep.subr.mxu0 0.0
    %115 = vmatpush1.msra.mxu0 0.0
    %116 = vmatprep.subr.mxu0 0.0
    %117 = vmatpush1.msra.mxu0 0.0
    %118 = vmatprep.subr.mxu0 0.0
    %119 = vmatpush1.msra.mxu0 0.0
    %120 = vmatprep.subr.mxu0 0.0
    %121 = vmatpush1.msra.mxu0 0.0
    %122 = vmatprep.subr.mxu0 0.0
    %123 = vmatpush1.msra.mxu0 0.0
    %124 = vmatprep.subr.mxu0 0.0
    %125 = vmatpush1.msra.mxu0 0.0
    %126 = vmatprep.subr.mxu0 0.0
    %127 = vmatpush1.msra.mxu0 0.0
    %128 = vmatprep.subr.mxu0 0.0
    %129 = vmatpush1.msra.mxu0 0.0
    %130 = vmatprep.subr.mxu0 0.0
    %131 = vmatpush1.msra.mxu0 0.0
    %132 = vmatprep.subr.mxu0 0.0
    %133 = vmatpush1.msra.mxu0 0.0
    %134 = vmatprep.subr.mxu0 0.0
    %135 = vmatpush1.msra.mxu0 0.0
    %136 = vmatprep.subr.mxu0 0.0
    %137 = vmatpush1.msra.mxu0 0.0
    %138 = vmatprep.subr.mxu0 0.0
    %139 = vmatpush1.msra.mxu0 0.0
    %140 = vmatprep.mubr.f32.mxu0 0.0
    %141 = vmatmul.mubr.f32.gmra.mrb[0].mxu0 %v70
    %v142 = vpop.f32.mrb[0].mxu0
    %v143 = vadd.f32 %v66, %v142
    %v144 = vpop.f32.mrb[0].mxu0
    %145 = vdwg.mxu0
    %v146 = vld [vmem:[%s5] sm:$0x7]
    %v147 = vlaneseq
    %v148 = vshrl.u32 %v147, 7
    %v149 = vsub.s32 0, %v148
    %v150 = vrot.slane %v146, %v149
    %v151 = vlaneseq
    %v152 = vshrl.u32 %v151, 7
    %v153 = vsub.s32 1, %v152
    %v154 = vrot.slane %v146, %v153
    %v155 = vlaneseq
    %v156 = vshrl.u32 %v155, 7
    %v157 = vsub.s32 2, %v156
    %v158 = vrot.slane %v146, %v157
    %v159 = vld [vmem:[%s3] sm:$0xff]
    %v160 = vld [vmem:[%s3 + $0x8] sm:$0xff]
    %v161 = vld [vmem:[%s3 + $0x10] sm:$0xff]
    %v162 = vld [vmem:[%s3 + $0x18] sm:$0xff]
    %vm163 = vcmask 261120
    %v165 = vsel %vm163, %v143, 0
    %167 = vmatprep.subr.mxu0 0.0
    %168 = vmatpush1.msra.mxu0 %v159
    %169 = vmatprep.subr.mxu0 0.0
    %170 = vmatpush1.msra.mxu0 %v160
    %171 = vmatprep.subr.mxu0 0.0
    %172 = vmatpush1.msra.mxu0 %v161
    %173 = vmatprep.subr.mxu0 0.0
    %174 = vmatpush1.msra.mxu0 %v162
    %175 = vmatprep.subr.mxu0 0.0
    %176 = vmatpush1.msra.mxu0 0.0
    %177 = vmatprep.subr.mxu0 0.0
    %178 = vmatpush1.msra.mxu0 0.0
    %179 = vmatprep.subr.mxu0 0.0
    %180 = vmatpush1.msra.mxu0 0.0
    %181 = vmatprep.subr.mxu0 0.0
    %182 = vmatpush1.msra.mxu0 0.0
    %183 = vmatprep.subr.mxu0 0.0
    %184 = vmatpush1.msra.mxu0 0.0
    %185 = vmatprep.subr.mxu0 0.0
    %186 = vmatpush1.msra.mxu0 0.0
    %187 = vmatprep.subr.mxu0 0.0
    %188 = vmatpush1.msra.mxu0 0.0
    %189 = vmatprep.subr.mxu0 0.0
    %190 = vmatpush1.msra.mxu0 0.0
    %191 = vmatprep.subr.mxu0 0.0
    %192 = vmatpush1.msra.mxu0 0.0
    %193 = vmatprep.subr.mxu0 0.0
    %194 = vmatpush1.msra.mxu0 0.0
    %195 = vmatprep.subr.mxu0 0.0
    %196 = vmatpush1.msra.mxu0 0.0
    %197 = vmatprep.subr.mxu0 0.0
    %198 = vmatpush1.msra.mxu0 0.0
    %199 = vmatprep.subr.mxu0 0.0
    %200 = vmatpush1.msra.mxu0 0.0
    %201 = vmatprep.subr.mxu0 0.0
    %202 = vmatpush1.msra.mxu0 0.0
    %203 = vmatprep.subr.mxu0 0.0
    %204 = vmatpush1.msra.mxu0 0.0
    %205 = vmatprep.subr.mxu0 0.0
    %206 = vmatpush1.msra.mxu0 0.0
    %207 = vmatprep.subr.mxu0 0.0
    %208 = vmatpush1.msra.mxu0 0.0
    %209 = vmatprep.subr.mxu0 0.0
    %210 = vmatpush1.msra.mxu0 0.0
    %211 = vmatprep.subr.mxu0 0.0
    %212 = vmatpush1.msra.mxu0 0.0
    %213 = vmatprep.subr.mxu0 0.0
    %214 = vmatpush1.msra.mxu0 0.0
    %215 = vmatprep.subr.mxu0 0.0
    %216 = vmatpush1.msra.mxu0 0.0
    %217 = vmatprep.subr.mxu0 0.0
    %218 = vmatpush1.msra.mxu0 0.0
    %219 = vmatprep.subr.mxu0 0.0
    %220 = vmatpush1.msra.mxu0 0.0
    %221 = vmatprep.subr.mxu0 0.0
    %222 = vmatpush1.msra.mxu0 0.0
    %223 = vmatprep.subr.mxu0 0.0
    %224 = vmatpush1.msra.mxu0 0.0
    %225 = vmatprep.subr.mxu0 0.0
    %226 = vmatpush1.msra.mxu0 0.0
    %227 = vmatprep.subr.mxu0 0.0
    %228 = vmatpush1.msra.mxu0 0.0
    %229 = vmatprep.subr.mxu0 0.0
    %230 = vmatpush1.msra.mxu0 0.0
    %231 = vmatprep.mubr.f32.mxu0 0.0
    %232 = vmatmul.mubr.f32.gmra.mrb[0].mxu0 %v165
    %v233 = vpop.f32.mrb[0].mxu0
    %v234 = vadd.f32 0.0, %v233
    %v235 = vpop.f32.mrb[0].mxu0
    %236 = vdwg.mxu0
    %v237 = vadd.f32 %v234, %v150
    %v238 = vxor.u32 %v237, 2147483648
    %v239 = vmul.f32 %v238, 1.442695
    %v240 = vpow.pop %v239
    %v241 = vadd.f32 %v240, 1.0
    %v242 = vrcp.pop %v241
    %v243 = vmul.f32 1.0, %v242
    %245 = vrot.lane.b32.xlu0 %v237, 32
    %v246 = vpop.permute.xlu0 %245
    %v248 = vmul.f32 %v243, %v246
    %250 = vrot.lane.b32.xlu0 %v248, 64
    %v251 = vpop.permute.xlu0 %250
    %v253 = vadd.f32 %v150, %v251
    %v254 = vtanh.pop %v253
    %v255 = vsub.f32 1.0, %v243
    %257 = vrot.lane.b32.xlu0 %v254, 96
    %v258 = vpop.permute.xlu0 %257
    %v260 = vmul.f32 %v255, %v258
    %261 = vrot.lane.b32.xlu0 %v143, 32
    %v262 = vpop.permute.xlu0 %261
    %v264 = vmul.f32 %v243, %v262
    %v265 = vadd.f32 %v260, %v264
    %267 = vrot.lane.b32.xlu0 %v265, 96
    %v268 = vpop.permute.xlu0 %267
    %v270 = vsel %vm163, %v268, %v262
    %v271 = vld [vmem:[#allocation5] sm:$0xff]
    %v272 = vld [vmem:[#allocation5 + $0x8] sm:$0xff]
    %v273 = vld [vmem:[#allocation5 + $0x10] sm:$0xff]
    %v274 = vld [vmem:[#allocation5 + $0x18] sm:$0xff]
    %v275 = vld [vmem:[#allocation5 + $0x20] sm:$0xff]
    %v276 = vld [vmem:[#allocation5 + $0x28] sm:$0xff]
    %v277 = vld [vmem:[#allocation5 + $0x30] sm:$0xff]
    %v278 = vld [vmem:[#allocation5 + $0x38] sm:$0xff]
    %vm279 = vcmask 523264
    %v281 = vsel %vm279, %v270, 0
    %283 = vmatprep.subr.mxu0 0.0
    %284 = vmatpush1.msra.mxu0 %v271
    %285 = vmatprep.subr.mxu0 0.0
    %286 = vmatpush1.msra.mxu0 %v272
    %287 = vmatprep.subr.mxu0 0.0
    %288 = vmatpush1.msra.mxu0 %v273
    %289 = vmatprep.subr.mxu0 0.0
    %290 = vmatpush1.msra.mxu0 %v274
    %291 = vmatprep.subr.mxu0 0.0
    %292 = vmatpush1.msra.mxu0 %v275
    %293 = vmatprep.subr.mxu0 0.0
    %294 = vmatpush1.msra.mxu0 %v276
    %295 = vmatprep.subr.mxu0 0.0
    %296 = vmatpush1.msra.mxu0 %v277
    %297 = vmatprep.subr.mxu0 0.0
    %298 = vmatpush1.msra.mxu0 %v278
    %299 = vmatprep.subr.mxu0 0.0
    %300 = vmatpush1.msra.mxu0 0.0
    %301 = vmatprep.subr.mxu0 0.0
    %302 = vmatpush1.msra.mxu0 0.0
    %303 = vmatprep.subr.mxu0 0.0
    %304 = vmatpush1.msra.mxu0 0.0
    %305 = vmatprep.subr.mxu0 0.0
    %306 = vmatpush1.msra.mxu0 0.0
    %307 = vmatprep.subr.mxu0 0.0
    %308 = vmatpush1.msra.mxu0 0.0
    %309 = vmatprep.subr.mxu0 0.0
    %310 = vmatpush1.msra.mxu0 0.0
    %311 = vmatprep.subr.mxu0 0.0
    %312 = vmatpush1.msra.mxu0 0.0
    %313 = vmatprep.subr.mxu0 0.0
    %314 = vmatpush1.msra.mxu0 0.0
    %315 = vmatprep.subr.mxu0 0.0
    %316 = vmatpush1.msra.mxu0 0.0
    %317 = vmatprep.subr.mxu0 0.0
    %318 = vmatpush1.msra.mxu0 0.0
    %319 = vmatprep.subr.mxu0 0.0
    %320 = vmatpush1.msra.mxu0 0.0
    %321 = vmatprep.subr.mxu0 0.0
    %322 = vmatpush1.msra.mxu0 0.0
    %323 = vmatprep.subr.mxu0 0.0
    %324 = vmatpush1.msra.mxu0 0.0
    %325 = vmatprep.subr.mxu0 0.0
    %326 = vmatpush1.msra.mxu0 0.0
    %327 = vmatprep.subr.mxu0 0.0
    %328 = vmatpush1.msra.mxu0 0.0
    %329 = vmatprep.subr.mxu0 0.0
    %330 = vmatpush1.msra.mxu0 0.0
    %331 = vmatprep.subr.mxu0 0.0
    %332 = vmatpush1.msra.mxu0 0.0
    %333 = vmatprep.subr.mxu0 0.0
    %334 = vmatpush1.msra.mxu0 0.0
    %335 = vmatprep.subr.mxu0 0.0
    %336 = vmatpush1.msra.mxu0 0.0
    %337 = vmatprep.subr.mxu0 0.0
    %338 = vmatpush1.msra.mxu0 0.0
    %339 = vmatprep.subr.mxu0 0.0
    %340 = vmatpush1.msra.mxu0 0.0
    %341 = vmatprep.subr.mxu0 0.0
    %342 = vmatpush1.msra.mxu0 0.0
    %343 = vmatprep.subr.mxu0 0.0
    %344 = vmatpush1.msra.mxu0 0.0
    %345 = vmatprep.subr.mxu0 0.0
    %346 = vmatpush1.msra.mxu0 0.0
    %347 = vmatprep.mubr.f32.mxu0 0.0
    %348 = vmatmul.mubr.f32.gmra.mrb[0].mxu0 %v281
    %v349 = vpop.f32.mrb[0].mxu0
    %v350 = vadd.f32 0.0, %v349
    %v351 = vpop.f32.mrb[0].mxu0
    %352 = vdwg.mxu0
    %v353 = vadd.f32 %v350, %v154
    %v354 = vxor.u32 %v353, 2147483648
    %v355 = vmul.f32 %v354, 1.442695
    %v356 = vpow.pop %v355
    %v357 = vadd.f32 %v356, 1.0
    %v358 = vrcp.pop %v357
    %v359 = vmul.f32 1.0, %v358
    %361 = vrot.lane.b32.xlu0 %v353, 32
    %v362 = vpop.permute.xlu0 %361
    %v364 = vmul.f32 %v359, %v362
    %366 = vrot.lane.b32.xlu0 %v364, 64
    %v367 = vpop.permute.xlu0 %366
    %v369 = vadd.f32 %v353, %v367
    %v370 = vtanh.pop %v369
    %v371 = vsub.f32 1.0, %v359
    %373 = vrot.lane.b32.xlu0 %v370, 96
    %v374 = vpop.permute.xlu0 %373
    %v376 = vmul.f32 %v371, %v374
    %v377 = vmul.f32 %v359, %v262
    %v378 = vadd.f32 %v376, %v377
    %380 = vrot.lane.b32.xlu0 %v378, 96
    %v381 = vpop.permute.xlu0 %380
    %v383 = vsel %vm163, %v381, %v262
    %s384 = scalar_lea.vmem [#allocation5], 64
    %v385 = vld [vmem:[%s384] sm:$0xff]
    %v386 = vld [vmem:[%s384 + $0x8] sm:$0xff]
    %v387 = vld [vmem:[%s384 + $0x10] sm:$0xff]
    %v388 = vld [vmem:[%s384 + $0x18] sm:$0xff]
    %v389 = vld [vmem:[%s384 + $0x20] sm:$0xff]
    %v390 = vld [vmem:[%s384 + $0x28] sm:$0xff]
    %v391 = vld [vmem:[%s384 + $0x30] sm:$0xff]
    %v392 = vld [vmem:[%s384 + $0x38] sm:$0xff]
    %v394 = vsel %vm279, %v383, 0
    %396 = vmatprep.subr.mxu0 0.0
    %397 = vmatpush1.msra.mxu0 %v385
    %398 = vmatprep.subr.mxu0 0.0
    %399 = vmatpush1.msra.mxu0 %v386
    %400 = vmatprep.subr.mxu0 0.0
    %401 = vmatpush1.msra.mxu0 %v387
    %402 = vmatprep.subr.mxu0 0.0
    %403 = vmatpush1.msra.mxu0 %v388
    %404 = vmatprep.subr.mxu0 0.0
    %405 = vmatpush1.msra.mxu0 %v389
    %406 = vmatprep.subr.mxu0 0.0
    %407 = vmatpush1.msra.mxu0 %v390
    %408 = vmatprep.subr.mxu0 0.0
    %409 = vmatpush1.msra.mxu0 %v391
    %410 = vmatprep.subr.mxu0 0.0
    %411 = vmatpush1.msra.mxu0 %v392
    %412 = vmatprep.subr.mxu0 0.0
    %413 = vmatpush1.msra.mxu0 0.0
    %414 = vmatprep.subr.mxu0 0.0
    %415 = vmatpush1.msra.mxu0 0.0
    %416 = vmatprep.subr.mxu0 0.0
    %417 = vmatpush1.msra.mxu0 0.0
    %418 = vmatprep.subr.mxu0 0.0
    %419 = vmatpush1.msra.mxu0 0.0
    %420 = vmatprep.subr.mxu0 0.0
    %421 = vmatpush1.msra.mxu0 0.0
    %422 = vmatprep.subr.mxu0 0.0
    %423 = vmatpush1.msra.mxu0 0.0
    %424 = vmatprep.subr.mxu0 0.0
    %425 = vmatpush1.msra.mxu0 0.0
    %426 = vmatprep.subr.mxu0 0.0
    %427 = vmatpush1.msra.mxu0 0.0
    %428 = vmatprep.subr.mxu0 0.0
    %429 = vmatpush1.msra.mxu0 0.0
    %430 = vmatprep.subr.mxu0 0.0
    %431 = vmatpush1.msra.mxu0 0.0
    %432 = vmatprep.subr.mxu0 0.0
    %433 = vmatpush1.msra.mxu0 0.0
    %434 = vmatprep.subr.mxu0 0.0
    %435 = vmatpush1.msra.mxu0 0.0
    %436 = vmatprep.subr.mxu0 0.0
    %437 = vmatpush1.msra.mxu0 0.0
    %438 = vmatprep.subr.mxu0 0.0
    %439 = vmatpush1.msra.mxu0 0.0
    %440 = vmatprep.subr.mxu0 0.0
    %441 = vmatpush1.msra.mxu0 0.0
    %442 = vmatprep.subr.mxu0 0.0
    %443 = vmatpush1.msra.mxu0 0.0
    %444 = vmatprep.subr.mxu0 0.0
    %445 = vmatpush1.msra.mxu0 0.0
    %446 = vmatprep.subr.mxu0 0.0
    %447 = vmatpush1.msra.mxu0 0.0
    %448 = vmatprep.subr.mxu0 0.0
    %449 = vmatpush1.msra.mxu0 0.0
    %450 = vmatprep.subr.mxu0 0.0
    %451 = vmatpush1.msra.mxu0 0.0
    %452 = vmatprep.subr.mxu0 0.0
    %453 = vmatpush1.msra.mxu0 0.0
    %454 = vmatprep.subr.mxu0 0.0
    %455 = vmatpush1.msra.mxu0 0.0
    %456 = vmatprep.subr.mxu0 0.0
    %457 = vmatpush1.msra.mxu0 0.0
    %458 = vmatprep.subr.mxu0 0.0
    %459 = vmatpush1.msra.mxu0 0.0
    %460 = vmatprep.mubr.f32.mxu0 0.0
    %461 = vmatmul.mubr.f32.gmra.mrb[0].mxu0 %v394
    %v462 = vpop.f32.mrb[0].mxu0
    %v463 = vadd.f32 0.0, %v462
    %v464 = vpop.f32.mrb[0].mxu0
    %465 = vdwg.mxu0
    %v466 = vadd.f32 %v463, %v158
    %v467 = vxor.u32 %v466, 2147483648
    %v468 = vmul.f32 %v467, 1.442695
    %v469 = vpow.pop %v468
    %v470 = vadd.f32 %v469, 1.0
    %v471 = vrcp.pop %v470
    %v472 = vmul.f32 1.0, %v471
    %474 = vrot.lane.b32.xlu0 %v466, 32
    %v475 = vpop.permute.xlu0 %474
    %v477 = vmul.f32 %v472, %v475
    %479 = vrot.lane.b32.xlu0 %v477, 64
    %v480 = vpop.permute.xlu0 %479
    %v482 = vadd.f32 %v466, %v480
    %v483 = vtanh.pop %v482
    %v484 = vsub.f32 1.0, %v472
    %486 = vrot.lane.b32.xlu0 %v483, 96
    %v487 = vpop.permute.xlu0 %486
    %v489 = vmul.f32 %v484, %v487
    %v490 = vmul.f32 %v472, %v262
    %v491 = vadd.f32 %v489, %v490
    %493 = vrot.lane.b32.xlu0 %v491, 96
    %v494 = vpop.permute.xlu0 %493
    %496 = vst.msk [vmem:[#allocation2] sm:$0xff] %vm163, %v494
    %v497 = vld [vmem:[%s3] sm:$0xff]
    %v498 = vld [vmem:[%s3 + $0x8] sm:$0xff]
    %v499 = vld [vmem:[%s3 + $0x10] sm:$0xff]
    %v500 = vld [vmem:[%s3 + $0x18] sm:$0xff]
    %v501 = vsel %vm163, %v268, 0
    %503 = vmatprep.subr.mxu0 0.0
    %504 = vmatpush1.msra.mxu0 %v497
    %505 = vmatprep.subr.mxu0 0.0
    %506 = vmatpush1.msra.mxu0 %v498
    %507 = vmatprep.subr.mxu0 0.0
    %508 = vmatpush1.msra.mxu0 %v499
    %509 = vmatprep.subr.mxu0 0.0
    %510 = vmatpush1.msra.mxu0 %v500
    %511 = vmatprep.subr.mxu0 0.0
    %512 = vmatpush1.msra.mxu0 0.0
    %513 = vmatprep.subr.mxu0 0.0
    %514 = vmatpush1.msra.mxu0 0.0
    %515 = vmatprep.subr.mxu0 0.0
    %516 = vmatpush1.msra.mxu0 0.0
    %517 = vmatprep.subr.mxu0 0.0
    %518 = vmatpush1.msra.mxu0 0.0
    %519 = vmatprep.subr.mxu0 0.0
    %520 = vmatpush1.msra.mxu0 0.0
    %521 = vmatprep.subr.mxu0 0.0
    %522 = vmatpush1.msra.mxu0 0.0
    %523 = vmatprep.subr.mxu0 0.0
    %524 = vmatpush1.msra.mxu0 0.0
    %525 = vmatprep.subr.mxu0 0.0
    %526 = vmatpush1.msra.mxu0 0.0
    %527 = vmatprep.subr.mxu0 0.0
    %528 = vmatpush1.msra.mxu0 0.0
    %529 = vmatprep.subr.mxu0 0.0
    %530 = vmatpush1.msra.mxu0 0.0
    %531 = vmatprep.subr.mxu0 0.0
    %532 = vmatpush1.msra.mxu0 0.0
    %533 = vmatprep.subr.mxu0 0.0
    %534 = vmatpush1.msra.mxu0 0.0
    %535 = vmatprep.subr.mxu0 0.0
    %536 = vmatpush1.msra.mxu0 0.0
    %537 = vmatprep.subr.mxu0 0.0
    %538 = vmatpush1.msra.mxu0 0.0
    %539 = vmatprep.subr.mxu0 0.0
    %540 = vmatpush1.msra.mxu0 0.0
    %541 = vmatprep.subr.mxu0 0.0
    %542 = vmatpush1.msra.mxu0 0.0
    %543 = vmatprep.subr.mxu0 0.0
    %544 = vmatpush1.msra.mxu0 0.0
    %545 = vmatprep.subr.mxu0 0.0
    %546 = vmatpush1.msra.mxu0 0.0
    %547 = vmatprep.subr.mxu0 0.0
    %548 = vmatpush1.msra.mxu0 0.0
    %549 = vmatprep.subr.mxu0 0.0
    %550 = vmatpush1.msra.mxu0 0.0
    %551 = vmatprep.subr.mxu0 0.0
    %552 = vmatpush1.msra.mxu0 0.0
    %553 = vmatprep.subr.mxu0 0.0
    %554 = vmatpush1.msra.mxu0 0.0
    %555 = vmatprep.subr.mxu0 0.0
    %556 = vmatpush1.msra.mxu0 0.0
    %557 = vmatprep.subr.mxu0 0.0
    %558 = vmatpush1.msra.mxu0 0.0
    %559 = vmatprep.subr.mxu0 0.0
    %560 = vmatpush1.msra.mxu0 0.0
    %561 = vmatprep.subr.mxu0 0.0
    %562 = vmatpush1.msra.mxu0 0.0
    %563 = vmatprep.subr.mxu0 0.0
    %564 = vmatpush1.msra.mxu0 0.0
    %565 = vmatprep.subr.mxu0 0.0
    %566 = vmatpush1.msra.mxu0 0.0
    %567 = vmatprep.mubr.f32.mxu0 0.0
    %568 = vmatmul.mubr.f32.gmra.mrb[0].mxu0 %v501
    %v569 = vpop.f32.mrb[0].mxu0
    %v570 = vadd.f32 0.0, %v569
    %v571 = vpop.f32.mrb[0].mxu0
    %572 = vdwg.mxu0
    %v573 = vadd.f32 %v570, %v150
    %v574 = vxor.u32 %v573, 2147483648
    %v575 = vmul.f32 %v574, 1.442695
    %v576 = vpow.pop %v575
    %v577 = vadd.f32 %v576, 1.0
    %v578 = vrcp.pop %v577
    %v579 = vmul.f32 1.0, %v578
    %581 = vrot.lane.b32.xlu0 %v573, 32
    %v582 = vpop.permute.xlu0 %581
    %v584 = vmul.f32 %v579, %v582
    %586 = vrot.lane.b32.xlu0 %v584, 64
    %v587 = vpop.permute.xlu0 %586
    %v589 = vadd.f32 %v150, %v587
    %v590 = vtanh.pop %v589
    %v591 = vsub.f32 1.0, %v579
    %593 = vrot.lane.b32.xlu0 %v590, 96
    %v594 = vpop.permute.xlu0 %593
    %v596 = vmul.f32 %v591, %v594
    %v597 = vmul.f32 %v579, %v265
    %v598 = vadd.f32 %v596, %v597
    %600 = vrot.lane.b32.xlu0 %v598, 96
    %v601 = vpop.permute.xlu0 %600
    %v603 = vsel %vm163, %v601, %v378
    %v604 = vld [vmem:[#allocation5] sm:$0xff]
    %v605 = vld [vmem:[#allocation5 + $0x8] sm:$0xff]
    %v606 = vld [vmem:[#allocation5 + $0x10] sm:$0xff]
    %v607 = vld [vmem:[#allocation5 + $0x18] sm:$0xff]
    %v608 = vld [vmem:[#allocation5 + $0x20] sm:$0xff]
    %v609 = vld [vmem:[#allocation5 + $0x28] sm:$0xff]
    %v610 = vld [vmem:[#allocation5 + $0x30] sm:$0xff]
    %v611 = vld [vmem:[#allocation5 + $0x38] sm:$0xff]
    %v613 = vsel %vm279, %v603, 0
    %615 = vmatprep.subr.mxu0 0.0
    %616 = vmatpush1.msra.mxu0 %v604
    %617 = vmatprep.subr.mxu0 0.0
    %618 = vmatpush1.msra.mxu0 %v605
    %619 = vmatprep.subr.mxu0 0.0
    %620 = vmatpush1.msra.mxu0 %v606
    %621 = vmatprep.subr.mxu0 0.0
    %622 = vmatpush1.msra.mxu0 %v607
    %623 = vmatprep.subr.mxu0 0.0
    %624 = vmatpush1.msra.mxu0 %v608
    %625 = vmatprep.subr.mxu0 0.0
    %626 = vmatpush1.msra.mxu0 %v609
    %627 = vmatprep.subr.mxu0 0.0
    %628 = vmatpush1.msra.mxu0 %v610
    %629 = vmatprep.subr.mxu0 0.0
    %630 = vmatpush1.msra.mxu0 %v611
    %631 = vmatprep.subr.mxu0 0.0
    %632 = vmatpush1.msra.mxu0 0.0
    %633 = vmatprep.subr.mxu0 0.0
    %634 = vmatpush1.msra.mxu0 0.0
    %635 = vmatprep.subr.mxu0 0.0
    %636 = vmatpush1.msra.mxu0 0.0
    %637 = vmatprep.subr.mxu0 0.0
    %638 = vmatpush1.msra.mxu0 0.0
    %639 = vmatprep.subr.mxu0 0.0
    %640 = vmatpush1.msra.mxu0 0.0
    %641 = vmatprep.subr.mxu0 0.0
    %642 = vmatpush1.msra.mxu0 0.0
    %643 = vmatprep.subr.mxu0 0.0
    %644 = vmatpush1.msra.mxu0 0.0
    %645 = vmatprep.subr.mxu0 0.0
    %646 = vmatpush1.msra.mxu0 0.0
    %647 = vmatprep.subr.mxu0 0.0
    %648 = vmatpush1.msra.mxu0 0.0
    %649 = vmatprep.subr.mxu0 0.0
    %650 = vmatpush1.msra.mxu0 0.0
    %651 = vmatprep.subr.mxu0 0.0
    %652 = vmatpush1.msra.mxu0 0.0
    %653 = vmatprep.subr.mxu0 0.0
    %654 = vmatpush1.msra.mxu0 0.0
    %655 = vmatprep.subr.mxu0 0.0
    %656 = vmatpush1.msra.mxu0 0.0
    %657 = vmatprep.subr.mxu0 0.0
    %658 = vmatpush1.msra.mxu0 0.0
    %659 = vmatprep.subr.mxu0 0.0
    %660 = vmatpush1.msra.mxu0 0.0
    %661 = vmatprep.subr.mxu0 0.0
    %662 = vmatpush1.msra.mxu0 0.0
    %663 = vmatprep.subr.mxu0 0.0
    %664 = vmatpush1.msra.mxu0 0.0
    %665 = vmatprep.subr.mxu0 0.0
    %666 = vmatpush1.msra.mxu0 0.0
    %667 = vmatprep.subr.mxu0 0.0
    %668 = vmatpush1.msra.mxu0 0.0
    %669 = vmatprep.subr.mxu0 0.0
    %670 = vmatpush1.msra.mxu0 0.0
    %671 = vmatprep.subr.mxu0 0.0
    %672 = vmatpush1.msra.mxu0 0.0
    %673 = vmatprep.subr.mxu0 0.0
    %674 = vmatpush1.msra.mxu0 0.0
    %675 = vmatprep.subr.mxu0 0.0
    %676 = vmatpush1.msra.mxu0 0.0
    %677 = vmatprep.subr.mxu0 0.0
    %678 = vmatpush1.msra.mxu0 0.0
    %679 = vmatprep.mubr.f32.mxu0 0.0
    %680 = vmatmul.mubr.f32.gmra.mrb[0].mxu0 %v613
    %v681 = vpop.f32.mrb[0].mxu0
    %v682 = vadd.f32 0.0, %v681
    %v683 = vpop.f32.mrb[0].mxu0
    %684 = vdwg.mxu0
    %v685 = vadd.f32 %v682, %v154
    %v686 = vxor.u32 %v685, 2147483648
    %v687 = vmul.f32 %v686, 1.442695
    %v688 = vpow.pop %v687
    %v689 = vadd.f32 %v688, 1.0
    %v690 = vrcp.pop %v689
    %v691 = vmul.f32 1.0, %v690
    %693 = vrot.lane.b32.xlu0 %v685, 32
    %v694 = vpop.permute.xlu0 %693
    %v696 = vmul.f32 %v691, %v694
    %698 = vrot.lane.b32.xlu0 %v696, 64
    %v699 = vpop.permute.xlu0 %698
    %v701 = vadd.f32 %v685, %v699
    %v702 = vtanh.pop %v701
    %v703 = vsub.f32 1.0, %v691
    %705 = vrot.lane.b32.xlu0 %v702, 96
    %v706 = vpop.permute.xlu0 %705
    %v708 = vmul.f32 %v703, %v706
    %v709 = vmul.f32 %v691, %v378
    %v710 = vadd.f32 %v708, %v709
    %712 = vrot.lane.b32.xlu0 %v710, 96
    %v713 = vpop.permute.xlu0 %712
    %v715 = vsel %vm163, %v713, %v491
    %v716 = vld [vmem:[%s384] sm:$0xff]
    %v717 = vld [vmem:[%s384 + $0x8] sm:$0xff]
    %v718 = vld [vmem:[%s384 + $0x10] sm:$0xff]
    %v719 = vld [vmem:[%s384 + $0x18] sm:$0xff]
    %v720 = vld [vmem:[%s384 + $0x20] sm:$0xff]
    %v721 = vld [vmem:[%s384 + $0x28] sm:$0xff]
    %v722 = vld [vmem:[%s384 + $0x30] sm:$0xff]
    %v723 = vld [vmem:[%s384 + $0x38] sm:$0xff]
    %v725 = vsel %vm279, %v715, 0
    %727 = vmatprep.subr.mxu0 0.0
    %728 = vmatpush1.msra.mxu0 %v716
    %729 = vmatprep.subr.mxu0 0.0
    %730 = vmatpush1.msra.mxu0 %v717
    %731 = vmatprep.subr.mxu0 0.0
    %732 = vmatpush1.msra.mxu0 %v718
    %733 = vmatprep.subr.mxu0 0.0
    %734 = vmatpush1.msra.mxu0 %v719
    %735 = vmatprep.subr.mxu0 0.0
    %736 = vmatpush1.msra.mxu0 %v720
    %737 = vmatprep.subr.mxu0 0.0
    %738 = vmatpush1.msra.mxu0 %v721
    %739 = vmatprep.subr.mxu0 0.0
    %740 = vmatpush1.msra.mxu0 %v722
    %741 = vmatprep.subr.mxu0 0.0
    %742 = vmatpush1.msra.mxu0 %v723
    %743 = vmatprep.subr.mxu0 0.0
    %744 = vmatpush1.msra.mxu0 0.0
    %745 = vmatprep.subr.mxu0 0.0
    %746 = vmatpush1.msra.mxu0 0.0
    %747 = vmatprep.subr.mxu0 0.0
    %748 = vmatpush1.msra.mxu0 0.0
    %749 = vmatprep.subr.mxu0 0.0
    %750 = vmatpush1.msra.mxu0 0.0
    %751 = vmatprep.subr.mxu0 0.0
    %752 = vmatpush1.msra.mxu0 0.0
    %753 = vmatprep.subr.mxu0 0.0
    %754 = vmatpush1.msra.mxu0 0.0
    %755 = vmatprep.subr.mxu0 0.0
    %756 = vmatpush1.msra.mxu0 0.0
    %757 = vmatprep.subr.mxu0 0.0
    %758 = vmatpush1.msra.mxu0 0.0
    %759 = vmatprep.subr.mxu0 0.0
    %760 = vmatpush1.msra.mxu0 0.0
    %761 = vmatprep.subr.mxu0 0.0
    %762 = vmatpush1.msra.mxu0 0.0
    %763 = vmatprep.subr.mxu0 0.0
    %764 = vmatpush1.msra.mxu0 0.0
    %765 = vmatprep.subr.mxu0 0.0
    %766 = vmatpush1.msra.mxu0 0.0
    %767 = vmatprep.subr.mxu0 0.0
    %768 = vmatpush1.msra.mxu0 0.0
    %769 = vmatprep.subr.mxu0 0.0
    %770 = vmatpush1.msra.mxu0 0.0
    %771 = vmatprep.subr.mxu0 0.0
    %772 = vmatpush1.msra.mxu0 0.0
    %773 = vmatprep.subr.mxu0 0.0
    %774 = vmatpush1.msra.mxu0 0.0
    %775 = vmatprep.subr.mxu0 0.0
    %776 = vmatpush1.msra.mxu0 0.0
    %777 = vmatprep.subr.mxu0 0.0
    %778 = vmatpush1.msra.mxu0 0.0
    %779 = vmatprep.subr.mxu0 0.0
    %780 = vmatpush1.msra.mxu0 0.0
    %781 = vmatprep.subr.mxu0 0.0
    %782 = vmatpush1.msra.mxu0 0.0
    %783 = vmatprep.subr.mxu0 0.0
    %784 = vmatpush1.msra.mxu0 0.0
    %785 = vmatprep.subr.mxu0 0.0
    %786 = vmatpush1.msra.mxu0 0.0
    %787 = vmatprep.subr.mxu0 0.0
    %788 = vmatpush1.msra.mxu0 0.0
    %789 = vmatprep.subr.mxu0 0.0
    %790 = vmatpush1.msra.mxu0 0.0
    %791 = vmatprep.mubr.f32.mxu0 0.0
    %792 = vmatmul.mubr.f32.gmra.mrb[0].mxu0 %v725
    %v793 = vpop.f32.mrb[0].mxu0
    %v794 = vadd.f32 0.0, %v793
    %v795 = vpop.f32.mrb[0].mxu0
    %796 = vdwg.mxu0
    %v797 = vadd.f32 %v794, %v158
    %v798 = vxor.u32 %v797, 2147483648
    %v799 = vmul.f32 %v798, 1.442695
    %v800 = vpow.pop %v799
    %v801 = vadd.f32 %v800, 1.0
    %v802 = vrcp.pop %v801
    %v803 = vmul.f32 1.0, %v802
    %805 = vrot.lane.b32.xlu0 %v797, 32
    %v806 = vpop.permute.xlu0 %805
    %v808 = vmul.f32 %v803, %v806
    %810 = vrot.lane.b32.xlu0 %v808, 64
    %v811 = vpop.permute.xlu0 %810
    %v813 = vadd.f32 %v797, %v811
    %v814 = vtanh.pop %v813
    %v815 = vsub.f32 1.0, %v803
    %817 = vrot.lane.b32.xlu0 %v814, 96
    %v818 = vpop.permute.xlu0 %817
    %v820 = vmul.f32 %v815, %v818
    %v821 = vmul.f32 %v803, %v491
    %v822 = vadd.f32 %v820, %v821
    %824 = vrot.lane.b32.xlu0 %v822, 96
    %v825 = vpop.permute.xlu0 %824
    %827 = vst.msk [vmem:[#allocation2 + $0x8] sm:$0xff] %vm163, %v825
    %v828 = vld [vmem:[%s3] sm:$0xff]
    %v829 = vld [vmem:[%s3 + $0x8] sm:$0xff]
    %v830 = vld [vmem:[%s3 + $0x10] sm:$0xff]
    %v831 = vld [vmem:[%s3 + $0x18] sm:$0xff]
    %v832 = vsel %vm163, %v601, 0
    %834 = vmatprep.subr.mxu0 0.0
    %835 = vmatpush1.msra.mxu0 %v828
    %836 = vmatprep.subr.mxu0 0.0
    %837 = vmatpush1.msra.mxu0 %v829
    %838 = vmatprep.subr.mxu0 0.0
    %839 = vmatpush1.msra.mxu0 %v830
    %840 = vmatprep.subr.mxu0 0.0
    %841 = vmatpush1.msra.mxu0 %v831
    %842 = vmatprep.subr.mxu0 0.0
    %843 = vmatpush1.msra.mxu0 0.0
    %844 = vmatprep.subr.mxu0 0.0
    %845 = vmatpush1.msra.mxu0 0.0
    %846 = vmatprep.subr.mxu0 0.0
    %847 = vmatpush1.msra.mxu0 0.0
    %848 = vmatprep.subr.mxu0 0.0
    %849 = vmatpush1.msra.mxu0 0.0
    %850 = vmatprep.subr.mxu0 0.0
    %851 = vmatpush1.msra.mxu0 0.0
    %852 = vmatprep.subr.mxu0 0.0
    %853 = vmatpush1.msra.mxu0 0.0
    %854 = vmatprep.subr.mxu0 0.0
    %855 = vmatpush1.msra.mxu0 0.0
    %856 = vmatprep.subr.mxu0 0.0
    %857 = vmatpush1.msra.mxu0 0.0
    %858 = vmatprep.subr.mxu0 0.0
    %859 = vmatpush1.msra.mxu0 0.0
    %860 = vmatprep.subr.mxu0 0.0
    %861 = vmatpush1.msra.mxu0 0.0
    %862 = vmatprep.subr.mxu0 0.0
    %863 = vmatpush1.msra.mxu0 0.0
    %864 = vmatprep.subr.mxu0 0.0
    %865 = vmatpush1.msra.mxu0 0.0
    %866 = vmatprep.subr.mxu0 0.0
    %867 = vmatpush1.msra.mxu0 0.0
    %868 = vmatprep.subr.mxu0 0.0
    %869 = vmatpush1.msra.mxu0 0.0
    %870 = vmatprep.subr.mxu0 0.0
    %871 = vmatpush1.msra.mxu0 0.0
    %872 = vmatprep.subr.mxu0 0.0
    %873 = vmatpush1.msra.mxu0 0.0
    %874 = vmatprep.subr.mxu0 0.0
    %875 = vmatpush1.msra.mxu0 0.0
    %876 = vmatprep.subr.mxu0 0.0
    %877 = vmatpush1.msra.mxu0 0.0
    %878 = vmatprep.subr.mxu0 0.0
    %879 = vmatpush1.msra.mxu0 0.0
    %880 = vmatprep.subr.mxu0 0.0
    %881 = vmatpush1.msra.mxu0 0.0
    %882 = vmatprep.subr.mxu0 0.0
    %883 = vmatpush1.msra.mxu0 0.0
    %884 = vmatprep.subr.mxu0 0.0
    %885 = vmatpush1.msra.mxu0 0.0
    %886 = vmatprep.subr.mxu0 0.0
    %887 = vmatpush1.msra.mxu0 0.0
    %888 = vmatprep.subr.mxu0 0.0
    %889 = vmatpush1.msra.mxu0 0.0
    %890 = vmatprep.subr.mxu0 0.0
    %891 = vmatpush1.msra.mxu0 0.0
    %892 = vmatprep.subr.mxu0 0.0
    %893 = vmatpush1.msra.mxu0 0.0
    %894 = vmatprep.subr.mxu0 0.0
    %895 = vmatpush1.msra.mxu0 0.0
    %896 = vmatprep.subr.mxu0 0.0
    %897 = vmatpush1.msra.mxu0 0.0
    %898 = vmatprep.mubr.f32.mxu0 0.0
    %899 = vmatmul.mubr.f32.gmra.mrb[0].mxu0 %v832
    %v900 = vpop.f32.mrb[0].mxu0
    %v901 = vadd.f32 0.0, %v900
    %v902 = vpop.f32.mrb[0].mxu0
    %903 = vdwg.mxu0
    %v904 = vadd.f32 %v901, %v150
    %v905 = vxor.u32 %v904, 2147483648
    %v906 = vmul.f32 %v905, 1.442695
    %v907 = vpow.pop %v906
    %v908 = vadd.f32 %v907, 1.0
    %v909 = vrcp.pop %v908
    %v910 = vmul.f32 1.0, %v909
    %912 = vrot.lane.b32.xlu0 %v904, 32
    %v913 = vpop.permute.xlu0 %912
    %v915 = vmul.f32 %v910, %v913
    %917 = vrot.lane.b32.xlu0 %v915, 64
    %v918 = vpop.permute.xlu0 %917
    %v920 = vadd.f32 %v150, %v918
    %v921 = vtanh.pop %v920
    %v922 = vsub.f32 1.0, %v910
    %924 = vrot.lane.b32.xlu0 %v921, 96
    %v925 = vpop.permute.xlu0 %924
    %v927 = vmul.f32 %v922, %v925
    %v928 = vmul.f32 %v910, %v598
    %v929 = vadd.f32 %v927, %v928
    %931 = vrot.lane.b32.xlu0 %v929, 96
    %v932 = vpop.permute.xlu0 %931
    %v934 = vsel %vm163, %v932, %v710
    %v935 = vld [vmem:[#allocation5] sm:$0xff]
    %v936 = vld [vmem:[#allocation5 + $0x8] sm:$0xff]
    %v937 = vld [vmem:[#allocation5 + $0x10] sm:$0xff]
    %v938 = vld [vmem:[#allocation5 + $0x18] sm:$0xff]
    %v939 = vld [vmem:[#allocation5 + $0x20] sm:$0xff]
    %v940 = vld [vmem:[#allocation5 + $0x28] sm:$0xff]
    %v941 = vld [vmem:[#allocation5 + $0x30] sm:$0xff]
    %v942 = vld [vmem:[#allocation5 + $0x38] sm:$0xff]
    %v944 = vsel %vm279, %v934, 0
    %946 = vmatprep.subr.mxu0 0.0
    %947 = vmatpush1.msra.mxu0 %v935
    %948 = vmatprep.subr.mxu0 0.0
    %949 = vmatpush1.msra.mxu0 %v936
    %950 = vmatprep.subr.mxu0 0.0
    %951 = vmatpush1.msra.mxu0 %v937
    %952 = vmatprep.subr.mxu0 0.0
    %953 = vmatpush1.msra.mxu0 %v938
    %954 = vmatprep.subr.mxu0 0.0
    %955 = vmatpush1.msra.mxu0 %v939
    %956 = vmatprep.subr.mxu0 0.0
    %957 = vmatpush1.msra.mxu0 %v940
    %958 = vmatprep.subr.mxu0 0.0
    %959 = vmatpush1.msra.mxu0 %v941
    %960 = vmatprep.subr.mxu0 0.0
    %961 = vmatpush1.msra.mxu0 %v942
    %962 = vmatprep.subr.mxu0 0.0
    %963 = vmatpush1.msra.mxu0 0.0
    %964 = vmatprep.subr.mxu0 0.0
    %965 = vmatpush1.msra.mxu0 0.0
    %966 = vmatprep.subr.mxu0 0.0
    %967 = vmatpush1.msra.mxu0 0.0
    %968 = vmatprep.subr.mxu0 0.0
    %969 = vmatpush1.msra.mxu0 0.0
    %970 = vmatprep.subr.mxu0 0.0
    %971 = vmatpush1.msra.mxu0 0.0
    %972 = vmatprep.subr.mxu0 0.0
    %973 = vmatpush1.msra.mxu0 0.0
    %974 = vmatprep.subr.mxu0 0.0
    %975 = vmatpush1.msra.mxu0 0.0
    %976 = vmatprep.subr.mxu0 0.0
    %977 = vmatpush1.msra.mxu0 0.0
    %978 = vmatprep.subr.mxu0 0.0
    %979 = vmatpush1.msra.mxu0 0.0
    %980 = vmatprep.subr.mxu0 0.0
    %981 = vmatpush1.msra.mxu0 0.0
    %982 = vmatprep.subr.mxu0 0.0
    %983 = vmatpush1.msra.mxu0 0.0
    %984 = vmatprep.subr.mxu0 0.0
    %985 = vmatpush1.msra.mxu0 0.0
    %986 = vmatprep.subr.mxu0 0.0
    %987 = vmatpush1.msra.mxu0 0.0
    %988 = vmatprep.subr.mxu0 0.0
    %989 = vmatpush1.msra.mxu0 0.0
    %990 = vmatprep.subr.mxu0 0.0
    %991 = vmatpush1.msra.mxu0 0.0
    %992 = vmatprep.subr.mxu0 0.0
    %993 = vmatpush1.msra.mxu0 0.0
    %994 = vmatprep.subr.mxu0 0.0
    %995 = vmatpush1.msra.mxu0 0.0
    %996 = vmatprep.subr.mxu0 0.0
    %997 = vmatpush1.msra.mxu0 0.0
    %998 = vmatprep.subr.mxu0 0.0
    %999 = vmatpush1.msra.mxu0 0.0
    %1000 = vmatprep.subr.mxu0 0.0
    %1001 = vmatpush1.msra.mxu0 0.0
    %1002 = vmatprep.subr.mxu0 0.0
    %1003 = vmatpush1.msra.mxu0 0.0
    %1004 = vmatprep.subr.mxu0 0.0
    %1005 = vmatpush1.msra.mxu0 0.0
    %1006 = vmatprep.subr.mxu0 0.0
    %1007 = vmatpush1.msra.mxu0 0.0
    %1008 = vmatprep.subr.mxu0 0.0
    %1009 = vmatpush1.msra.mxu0 0.0
    %1010 = vmatprep.mubr.f32.mxu0 0.0
    %1011 = vmatmul.mubr.f32.gmra.mrb[0].mxu0 %v944
    %v1012 = vpop.f32.mrb[0].mxu0
    %v1013 = vadd.f32 0.0, %v1012
    %v1014 = vpop.f32.mrb[0].mxu0
    %1015 = vdwg.mxu0
    %v1016 = vadd.f32 %v1013, %v154
    %v1017 = vxor.u32 %v1016, 2147483648
    %v1018 = vmul.f32 %v1017, 1.442695
    %v1019 = vpow.pop %v1018
    %v1020 = vadd.f32 %v1019, 1.0
    %v1021 = vrcp.pop %v1020
    %v1022 = vmul.f32 1.0, %v1021
    %1024 = vrot.lane.b32.xlu0 %v1016, 32
    %v1025 = vpop.permute.xlu0 %1024
    %v1027 = vmul.f32 %v1022, %v1025
    %1029 = vrot.lane.b32.xlu0 %v1027, 64
    %v1030 = vpop.permute.xlu0 %1029
    %v1032 = vadd.f32 %v1016, %v1030
    %v1033 = vtanh.pop %v1032
    %v1034 = vsub.f32 1.0, %v1022
    %1036 = vrot.lane.b32.xlu0 %v1033, 96
    %v1037 = vpop.permute.xlu0 %1036
    %v1039 = vmul.f32 %v1034, %v1037
    %v1040 = vmul.f32 %v1022, %v710
    %v1041 = vadd.f32 %v1039, %v1040
    %1043 = vrot.lane.b32.xlu0 %v1041, 96
    %v1044 = vpop.permute.xlu0 %1043
    %v1046 = vsel %vm163, %v1044, %v822
    %v1047 = vld [vmem:[%s384] sm:$0xff]
    %v1048 = vld [vmem:[%s384 + $0x8] sm:$0xff]
    %v1049 = vld [vmem:[%s384 + $0x10] sm:$0xff]
    %v1050 = vld [vmem:[%s384 + $0x18] sm:$0xff]
    %v1051 = vld [vmem:[%s384 + $0x20] sm:$0xff]
    %v1052 = vld [vmem:[%s384 + $0x28] sm:$0xff]
    %v1053 = vld [vmem:[%s384 + $0x30] sm:$0xff]
    %v1054 = vld [vmem:[%s384 + $0x38] sm:$0xff]
    %v1056 = vsel %vm279, %v1046, 0
    %1058 = vmatprep.subr.mxu0 0.0
    %1059 = vmatpush1.msra.mxu0 %v1047
    %1060 = vmatprep.subr.mxu0 0.0
    %1061 = vmatpush1.msra.mxu0 %v1048
    %1062 = vmatprep.subr.mxu0 0.0
    %1063 = vmatpush1.msra.mxu0 %v1049
    %1064 = vmatprep.subr.mxu0 0.0
    %1065 = vmatpush1.msra.mxu0 %v1050
    %1066 = vmatprep.subr.mxu0 0.0
    %1067 = vmatpush1.msra.mxu0 %v1051
    %1068 = vmatprep.subr.mxu0 0.0
    %1069 = vmatpush1.msra.mxu0 %v1052
    %1070 = vmatprep.subr.mxu0 0.0
    %1071 = vmatpush1.msra.mxu0 %v1053
    %1072 = vmatprep.subr.mxu0 0.0
    %1073 = vmatpush1.msra.mxu0 %v1054
    %1074 = vmatprep.subr.mxu0 0.0
    %1075 = vmatpush1.msra.mxu0 0.0
    %1076 = vmatprep.subr.mxu0 0.0
    %1077 = vmatpush1.msra.mxu0 0.0
    %1078 = vmatprep.subr.mxu0 0.0
    %1079 = vmatpush1.msra.mxu0 0.0
    %1080 = vmatprep.subr.mxu0 0.0
    %1081 = vmatpush1.msra.mxu0 0.0
    %1082 = vmatprep.subr.mxu0 0.0
    %1083 = vmatpush1.msra.mxu0 0.0
    %1084 = vmatprep.subr.mxu0 0.0
    %1085 = vmatpush1.msra.mxu0 0.0
    %1086 = vmatprep.subr.mxu0 0.0
    %1087 = vmatpush1.msra.mxu0 0.0
    %1088 = vmatprep.subr.mxu0 0.0
    %1089 = vmatpush1.msra.mxu0 0.0
    %1090 = vmatprep.subr.mxu0 0.0
    %1091 = vmatpush1.msra.mxu0 0.0
    %1092 = vmatprep.subr.mxu0 0.0
    %1093 = vmatpush1.msra.mxu0 0.0
    %1094 = vmatprep.subr.mxu0 0.0
    %1095 = vmatpush1.msra.mxu0 0.0
    %1096 = vmatprep.subr.mxu0 0.0
    %1097 = vmatpush1.msra.mxu0 0.0
    %1098 = vmatprep.subr.mxu0 0.0
    %1099 = vmatpush1.msra.mxu0 0.0
    %1100 = vmatprep.subr.mxu0 0.0
    %1101 = vmatpush1.msra.mxu0 0.0
    %1102 = vmatprep.subr.mxu0 0.0
    %1103 = vmatpush1.msra.mxu0 0.0
    %1104 = vmatprep.subr.mxu0 0.0
    %1105 = vmatpush1.msra.mxu0 0.0
    %1106 = vmatprep.subr.mxu0 0.0
    %1107 = vmatpush1.msra.mxu0 0.0
    %1108 = vmatprep.subr.mxu0 0.0
    %1109 = vmatpush1.msra.mxu0 0.0
    %1110 = vmatprep.subr.mxu0 0.0
    %1111 = vmatpush1.msra.mxu0 0.0
    %1112 = vmatprep.subr.mxu0 0.0
    %1113 = vmatpush1.msra.mxu0 0.0
    %1114 = vmatprep.subr.mxu0 0.0
    %1115 = vmatpush1.msra.mxu0 0.0
    %1116 = vmatprep.subr.mxu0 0.0
    %1117 = vmatpush1.msra.mxu0 0.0
    %1118 = vmatprep.subr.mxu0 0.0
    %1119 = vmatpush1.msra.mxu0 0.0
    %1120 = vmatprep.subr.mxu0 0.0
    %1121 = vmatpush1.msra.mxu0 0.0
    %1122 = vmatprep.mubr.f32.mxu0 0.0
    %1123 = vmatmul.mubr.f32.gmra.mrb[0].mxu0 %v1056
    %v1124 = vpop.f32.mrb[0].mxu0
    %v1125 = vadd.f32 0.0, %v1124
    %v1126 = vpop.f32.mrb[0].mxu0
    %1127 = vdwg.mxu0
    %v1128 = vadd.f32 %v1125, %v158
    %v1129 = vxor.u32 %v1128, 2147483648
    %v1130 = vmul.f32 %v1129, 1.442695
    %v1131 = vpow.pop %v1130
    %v1132 = vadd.f32 %v1131, 1.0
    %v1133 = vrcp.pop %v1132
    %v1134 = vmul.f32 1.0, %v1133
    %1136 = vrot.lane.b32.xlu0 %v1128, 32
    %v1137 = vpop.permute.xlu0 %1136
    %v1139 = vmul.f32 %v1134, %v1137
    %1141 = vrot.lane.b32.xlu0 %v1139, 64
    %v1142 = vpop.permute.xlu0 %1141
    %v1144 = vadd.f32 %v1128, %v1142
    %v1145 = vtanh.pop %v1144
    %v1146 = vsub.f32 1.0, %v1134
    %1148 = vrot.lane.b32.xlu0 %v1145, 96
    %v1149 = vpop.permute.xlu0 %1148
    %v1151 = vmul.f32 %v1146, %v1149
    %v1152 = vmul.f32 %v1134, %v822
    %v1153 = vadd.f32 %v1151, %v1152
    %1155 = vrot.lane.b32.xlu0 %v1153, 96
    %v1156 = vpop.permute.xlu0 %1155
    %1158 = vst.msk [vmem:[#allocation2 + $0x10] sm:$0xff] %vm163, %v1156
    %v1159 = vld [vmem:[%s3] sm:$0xff]
    %v1160 = vld [vmem:[%s3 + $0x8] sm:$0xff]
    %v1161 = vld [vmem:[%s3 + $0x10] sm:$0xff]
    %v1162 = vld [vmem:[%s3 + $0x18] sm:$0xff]
    %v1163 = vsel %vm163, %v932, 0
    %1165 = vmatprep.subr.mxu0 0.0
    %1166 = vmatpush1.msra.mxu0 %v1159
    %1167 = vmatprep.subr.mxu0 0.0
    %1168 = vmatpush1.msra.mxu0 %v1160
    %1169 = vmatprep.subr.mxu0 0.0
    %1170 = vmatpush1.msra.mxu0 %v1161
    %1171 = vmatprep.subr.mxu0 0.0
    %1172 = vmatpush1.msra.mxu0 %v1162
    %1173 = vmatprep.subr.mxu0 0.0
    %1174 = vmatpush1.msra.mxu0 0.0
    %1175 = vmatprep.subr.mxu0 0.0
    %1176 = vmatpush1.msra.mxu0 0.0
    %1177 = vmatprep.subr.mxu0 0.0
    %1178 = vmatpush1.msra.mxu0 0.0
    %1179 = vmatprep.subr.mxu0 0.0
    %1180 = vmatpush1.msra.mxu0 0.0
    %1181 = vmatprep.subr.mxu0 0.0
    %1182 = vmatpush1.msra.mxu0 0.0
    %1183 = vmatprep.subr.mxu0 0.0
    %1184 = vmatpush1.msra.mxu0 0.0
    %1185 = vmatprep.subr.mxu0 0.0
    %1186 = vmatpush1.msra.mxu0 0.0
    %1187 = vmatprep.subr.mxu0 0.0
    %1188 = vmatpush1.msra.mxu0 0.0
    %1189 = vmatprep.subr.mxu0 0.0
    %1190 = vmatpush1.msra.mxu0 0.0
    %1191 = vmatprep.subr.mxu0 0.0
    %1192 = vmatpush1.msra.mxu0 0.0
    %1193 = vmatprep.subr.mxu0 0.0
    %1194 = vmatpush1.msra.mxu0 0.0
    %1195 = vmatprep.subr.mxu0 0.0
    %1196 = vmatpush1.msra.mxu0 0.0
    %1197 = vmatprep.subr.mxu0 0.0
    %1198 = vmatpush1.msra.mxu0 0.0
    %1199 = vmatprep.subr.mxu0 0.0
    %1200 = vmatpush1.msra.mxu0 0.0
    %1201 = vmatprep.subr.mxu0 0.0
    %1202 = vmatpush1.msra.mxu0 0.0
    %1203 = vmatprep.subr.mxu0 0.0
    %1204 = vmatpush1.msra.mxu0 0.0
    %1205 = vmatprep.subr.mxu0 0.0
    %1206 = vmatpush1.msra.mxu0 0.0
    %1207 = vmatprep.subr.mxu0 0.0
    %1208 = vmatpush1.msra.mxu0 0.0
    %1209 = vmatprep.subr.mxu0 0.0
    %1210 = vmatpush1.msra.mxu0 0.0
    %1211 = vmatprep.subr.mxu0 0.0
    %1212 = vmatpush1.msra.mxu0 0.0
    %1213 = vmatprep.subr.mxu0 0.0
    %1214 = vmatpush1.msra.mxu0 0.0
    %1215 = vmatprep.subr.mxu0 0.0
    %1216 = vmatpush1.msra.mxu0 0.0
    %1217 = vmatprep.subr.mxu0 0.0
    %1218 = vmatpush1.msra.mxu0 0.0
    %1219 = vmatprep.subr.mxu0 0.0
    %1220 = vmatpush1.msra.mxu0 0.0
    %1221 = vmatprep.subr.mxu0 0.0
    %1222 = vmatpush1.msra.mxu0 0.0
    %1223 = vmatprep.subr.mxu0 0.0
    %1224 = vmatpush1.msra.mxu0 0.0
    %1225 = vmatprep.subr.mxu0 0.0
    %1226 = vmatpush1.msra.mxu0 0.0
    %1227 = vmatprep.subr.mxu0 0.0
    %1228 = vmatpush1.msra.mxu0 0.0
    %1229 = vmatprep.mubr.f32.mxu0 0.0
    %1230 = vmatmul.mubr.f32.gmra.mrb[0].mxu0 %v1163
    %v1231 = vpop.f32.mrb[0].mxu0
    %v1232 = vadd.f32 0.0, %v1231
    %v1233 = vpop.f32.mrb[0].mxu0
    %1234 = vdwg.mxu0
    %v1235 = vadd.f32 %v1232, %v150
    %v1236 = vxor.u32 %v1235, 2147483648
    %v1237 = vmul.f32 %v1236, 1.442695
    %v1238 = vpow.pop %v1237
    %v1239 = vadd.f32 %v1238, 1.0
    %v1240 = vrcp.pop %v1239
    %v1241 = vmul.f32 1.0, %v1240
    %1243 = vrot.lane.b32.xlu0 %v1235, 32
    %v1244 = vpop.permute.xlu0 %1243
    %v1246 = vmul.f32 %v1241, %v1244
    %1248 = vrot.lane.b32.xlu0 %v1246, 64
    %v1249 = vpop.permute.xlu0 %1248
    %v1251 = vadd.f32 %v150, %v1249
    %v1252 = vtanh.pop %v1251
    %v1253 = vsub.f32 1.0, %v1241
    %1255 = vrot.lane.b32.xlu0 %v1252, 96
    %v1256 = vpop.permute.xlu0 %1255
    %v1258 = vmul.f32 %v1253, %v1256
    %v1259 = vmul.f32 %v1241, %v929
    %v1260 = vadd.f32 %v1258, %v1259
    %1262 = vrot.lane.b32.xlu0 %v1260, 96
    %v1263 = vpop.permute.xlu0 %1262
    %v1265 = vsel %vm163, %v1263, %v1041
    %v1266 = vld [vmem:[#allocation5] sm:$0xff]
    %v1267 = vld [vmem:[#allocation5 + $0x8] sm:$0xff]
    %v1268 = vld [vmem:[#allocation5 + $0x10] sm:$0xff]
    %v1269 = vld [vmem:[#allocation5 + $0x18] sm:$0xff]
    %v1270 = vld [vmem:[#allocation5 + $0x20] sm:$0xff]
    %v1271 = vld [vmem:[#allocation5 + $0x28] sm:$0xff]
    %v1272 = vld [vmem:[#allocation5 + $0x30] sm:$0xff]
    %v1273 = vld [vmem:[#allocation5 + $0x38] sm:$0xff]
    %v1275 = vsel %vm279, %v1265, 0
    %1277 = vmatprep.subr.mxu0 0.0
    %1278 = vmatpush1.msra.mxu0 %v1266
    %1279 = vmatprep.subr.mxu0 0.0
    %1280 = vmatpush1.msra.mxu0 %v1267
    %1281 = vmatprep.subr.mxu0 0.0
    %1282 = vmatpush1.msra.mxu0 %v1268
    %1283 = vmatprep.subr.mxu0 0.0
    %1284 = vmatpush1.msra.mxu0 %v1269
    %1285 = vmatprep.subr.mxu0 0.0
    %1286 = vmatpush1.msra.mxu0 %v1270
    %1287 = vmatprep.subr.mxu0 0.0
    %1288 = vmatpush1.msra.mxu0 %v1271
    %1289 = vmatprep.subr.mxu0 0.0
    %1290 = vmatpush1.msra.mxu0 %v1272
    %1291 = vmatprep.subr.mxu0 0.0
    %1292 = vmatpush1.msra.mxu0 %v1273
    %1293 = vmatprep.subr.mxu0 0.0
    %1294 = vmatpush1.msra.mxu0 0.0
    %1295 = vmatprep.subr.mxu0 0.0
    %1296 = vmatpush1.msra.mxu0 0.0
    %1297 = vmatprep.subr.mxu0 0.0
    %1298 = vmatpush1.msra.mxu0 0.0
    %1299 = vmatprep.subr.mxu0 0.0
    %1300 = vmatpush1.msra.mxu0 0.0
    %1301 = vmatprep.subr.mxu0 0.0
    %1302 = vmatpush1.msra.mxu0 0.0
    %1303 = vmatprep.subr.mxu0 0.0
    %1304 = vmatpush1.msra.mxu0 0.0
    %1305 = vmatprep.subr.mxu0 0.0
    %1306 = vmatpush1.msra.mxu0 0.0
    %1307 = vmatprep.subr.mxu0 0.0
    %1308 = vmatpush1.msra.mxu0 0.0
    %1309 = vmatprep.subr.mxu0 0.0
    %1310 = vmatpush1.msra.mxu0 0.0
    %1311 = vmatprep.subr.mxu0 0.0
    %1312 = vmatpush1.msra.mxu0 0.0
    %1313 = vmatprep.subr.mxu0 0.0
    %1314 = vmatpush1.msra.mxu0 0.0
    %1315 = vmatprep.subr.mxu0 0.0
    %1316 = vmatpush1.msra.mxu0 0.0
    %1317 = vmatprep.subr.mxu0 0.0
    %1318 = vmatpush1.msra.mxu0 0.0
    %1319 = vmatprep.subr.mxu0 0.0
    %1320 = vmatpush1.msra.mxu0 0.0
    %1321 = vmatprep.subr.mxu0 0.0
    %1322 = vmatpush1.msra.mxu0 0.0
    %1323 = vmatprep.subr.mxu0 0.0
    %1324 = vmatpush1.msra.mxu0 0.0
    %1325 = vmatprep.subr.mxu0 0.0
    %1326 = vmatpush1.msra.mxu0 0.0
    %1327 = vmatprep.subr.mxu0 0.0
    %1328 = vmatpush1.msra.mxu0 0.0
    %1329 = vmatprep.subr.mxu0 0.0
    %1330 = vmatpush1.msra.mxu0 0.0
    %1331 = vmatprep.subr.mxu0 0.0
    %1332 = vmatpush1.msra.mxu0 0.0
    %1333 = vmatprep.subr.mxu0 0.0
    %1334 = vmatpush1.msra.mxu0 0.0
    %1335 = vmatprep.subr.mxu0 0.0
    %1336 = vmatpush1.msra.mxu0 0.0
    %1337 = vmatprep.subr.mxu0 0.0
    %1338 = vmatpush1.msra.mxu0 0.0
    %1339 = vmatprep.subr.mxu0 0.0
    %1340 = vmatpush1.msra.mxu0 0.0
    %1341 = vmatprep.mubr.f32.mxu0 0.0
    %1342 = vmatmul.mubr.f32.gmra.mrb[0].mxu0 %v1275
    %v1343 = vpop.f32.mrb[0].mxu0
    %v1344 = vadd.f32 0.0, %v1343
    %v1345 = vpop.f32.mrb[0].mxu0
    %1346 = vdwg.mxu0
    %v1347 = vadd.f32 %v1344, %v154
    %v1348 = vxor.u32 %v1347, 2147483648
    %v1349 = vmul.f32 %v1348, 1.442695
    %v1350 = vpow.pop %v1349
    %v1351 = vadd.f32 %v1350, 1.0
    %v1352 = vrcp.pop %v1351
    %v1353 = vmul.f32 1.0, %v1352
    %1355 = vrot.lane.b32.xlu0 %v1347, 32
    %v1356 = vpop.permute.xlu0 %1355
    %v1358 = vmul.f32 %v1353, %v1356
    %1360 = vrot.lane.b32.xlu0 %v1358, 64
    %v1361 = vpop.permute.xlu0 %1360
    %v1363 = vadd.f32 %v1347, %v1361
    %v1364 = vtanh.pop %v1363
    %v1365 = vsub.f32 1.0, %v1353
    %1367 = vrot.lane.b32.xlu0 %v1364, 96
    %v1368 = vpop.permute.xlu0 %1367
    %v1370 = vmul.f32 %v1365, %v1368
    %v1371 = vmul.f32 %v1353, %v1041
    %v1372 = vadd.f32 %v1370, %v1371
    %1374 = vrot.lane.b32.xlu0 %v1372, 96
    %v1375 = vpop.permute.xlu0 %1374
    %v1377 = vsel %vm163, %v1375, %v1153
    %v1378 = vld [vmem:[%s384] sm:$0xff]
    %v1379 = vld [vmem:[%s384 + $0x8] sm:$0xff]
    %v1380 = vld [vmem:[%s384 + $0x10] sm:$0xff]
    %v1381 = vld [vmem:[%s384 + $0x18] sm:$0xff]
    %v1382 = vld [vmem:[%s384 + $0x20] sm:$0xff]
    %v1383 = vld [vmem:[%s384 + $0x28] sm:$0xff]
    %v1384 = vld [vmem:[%s384 + $0x30] sm:$0xff]
    %v1385 = vld [vmem:[%s384 + $0x38] sm:$0xff]
    %v1387 = vsel %vm279, %v1377, 0
    %1389 = vmatprep.subr.mxu0 0.0
    %1390 = vmatpush1.msra.mxu0 %v1378
    %1391 = vmatprep.subr.mxu0 0.0
    %1392 = vmatpush1.msra.mxu0 %v1379
    %1393 = vmatprep.subr.mxu0 0.0
    %1394 = vmatpush1.msra.mxu0 %v1380
    %1395 = vmatprep.subr.mxu0 0.0
    %1396 = vmatpush1.msra.mxu0 %v1381
    %1397 = vmatprep.subr.mxu0 0.0
    %1398 = vmatpush1.msra.mxu0 %v1382
    %1399 = vmatprep.subr.mxu0 0.0
    %1400 = vmatpush1.msra.mxu0 %v1383
    %1401 = vmatprep.subr.mxu0 0.0
    %1402 = vmatpush1.msra.mxu0 %v1384
    %1403 = vmatprep.subr.mxu0 0.0
    %1404 = vmatpush1.msra.mxu0 %v1385
    %1405 = vmatprep.subr.mxu0 0.0
    %1406 = vmatpush1.msra.mxu0 0.0
    %1407 = vmatprep.subr.mxu0 0.0
    %1408 = vmatpush1.msra.mxu0 0.0
    %1409 = vmatprep.subr.mxu0 0.0
    %1410 = vmatpush1.msra.mxu0 0.0
    %1411 = vmatprep.subr.mxu0 0.0
    %1412 = vmatpush1.msra.mxu0 0.0
    %1413 = vmatprep.subr.mxu0 0.0
    %1414 = vmatpush1.msra.mxu0 0.0
    %1415 = vmatprep.subr.mxu0 0.0
    %1416 = vmatpush1.msra.mxu0 0.0
    %1417 = vmatprep.subr.mxu0 0.0
    %1418 = vmatpush1.msra.mxu0 0.0
    %1419 = vmatprep.subr.mxu0 0.0
    %1420 = vmatpush1.msra.mxu0 0.0
    %1421 = vmatprep.subr.mxu0 0.0
    %1422 = vmatpush1.msra.mxu0 0.0
    %1423 = vmatprep.subr.mxu0 0.0
    %1424 = vmatpush1.msra.mxu0 0.0
    %1425 = vmatprep.subr.mxu0 0.0
    %1426 = vmatpush1.msra.mxu0 0.0
    %1427 = vmatprep.subr.mxu0 0.0
    %1428 = vmatpush1.msra.mxu0 0.0
    %1429 = vmatprep.subr.mxu0 0.0
    %1430 = vmatpush1.msra.mxu0 0.0
    %1431 = vmatprep.subr.mxu0 0.0
    %1432 = vmatpush1.msra.mxu0 0.0
    %1433 = vmatprep.subr.mxu0 0.0
    %1434 = vmatpush1.msra.mxu0 0.0
    %1435 = vmatprep.subr.mxu0 0.0
    %1436 = vmatpush1.msra.mxu0 0.0
    %1437 = vmatprep.subr.mxu0 0.0
    %1438 = vmatpush1.msra.mxu0 0.0
    %1439 = vmatprep.subr.mxu0 0.0
    %1440 = vmatpush1.msra.mxu0 0.0
    %1441 = vmatprep.subr.mxu0 0.0
    %1442 = vmatpush1.msra.mxu0 0.0
    %1443 = vmatprep.subr.mxu0 0.0
    %1444 = vmatpush1.msra.mxu0 0.0
    %1445 = vmatprep.subr.mxu0 0.0
    %1446 = vmatpush1.msra.mxu0 0.0
    %1447 = vmatprep.subr.mxu0 0.0
    %1448 = vmatpush1.msra.mxu0 0.0
    %1449 = vmatprep.subr.mxu0 0.0
    %1450 = vmatpush1.msra.mxu0 0.0
    %1451 = vmatprep.subr.mxu0 0.0
    %1452 = vmatpush1.msra.mxu0 0.0
    %1453 = vmatprep.mubr.f32.mxu0 0.0
    %1454 = vmatmul.mubr.f32.gmra.mrb[0].mxu0 %v1387
    %v1455 = vpop.f32.mrb[0].mxu0
    %v1456 = vadd.f32 0.0, %v1455
    %v1457 = vpop.f32.mrb[0].mxu0
    %1458 = vdwg.mxu0
    %v1459 = vadd.f32 %v1456, %v158
    %v1460 = vxor.u32 %v1459, 2147483648
    %v1461 = vmul.f32 %v1460, 1.442695
    %v1462 = vpow.pop %v1461
    %v1463 = vadd.f32 %v1462, 1.0
    %v1464 = vrcp.pop %v1463
    %v1465 = vmul.f32 1.0, %v1464
    %1467 = vrot.lane.b32.xlu0 %v1459, 32
    %v1468 = vpop.permute.xlu0 %1467
    %v1470 = vmul.f32 %v1465, %v1468
    %1472 = vrot.lane.b32.xlu0 %v1470, 64
    %v1473 = vpop.permute.xlu0 %1472
    %v1475 = vadd.f32 %v1459, %v1473
    %v1476 = vtanh.pop %v1475
    %v1477 = vsub.f32 1.0, %v1465
    %1479 = vrot.lane.b32.xlu0 %v1476, 96
    %v1480 = vpop.permute.xlu0 %1479
    %v1482 = vmul.f32 %v1477, %v1480
    %v1483 = vmul.f32 %v1465, %v1153
    %v1484 = vadd.f32 %v1482, %v1483
    %1486 = vrot.lane.b32.xlu0 %v1484, 96
    %v1487 = vpop.permute.xlu0 %1486
    %1489 = vst.msk [vmem:[#allocation2 + $0x18] sm:$0xff] %vm163, %v1487
    %v1490 = vld [vmem:[%s3] sm:$0xff]
    %v1491 = vld [vmem:[%s3 + $0x8] sm:$0xff]
    %v1492 = vld [vmem:[%s3 + $0x10] sm:$0xff]
    %v1493 = vld [vmem:[%s3 + $0x18] sm:$0xff]
    %v1494 = vsel %vm163, %v1263, 0
    %1496 = vmatprep.subr.mxu0 0.0
    %1497 = vmatpush1.msra.mxu0 %v1490
    %1498 = vmatprep.subr.mxu0 0.0
    %1499 = vmatpush1.msra.mxu0 %v1491
    %1500 = vmatprep.subr.mxu0 0.0
    %1501 = vmatpush1.msra.mxu0 %v1492
    %1502 = vmatprep.subr.mxu0 0.0
    %1503 = vmatpush1.msra.mxu0 %v1493
    %1504 = vmatprep.subr.mxu0 0.0
    %1505 = vmatpush1.msra.mxu0 0.0
    %1506 = vmatprep.subr.mxu0 0.0
    %1507 = vmatpush1.msra.mxu0 0.0
    %1508 = vmatprep.subr.mxu0 0.0
    %1509 = vmatpush1.msra.mxu0 0.0
    %1510 = vmatprep.subr.mxu0 0.0
    %1511 = vmatpush1.msra.mxu0 0.0
    %1512 = vmatprep.subr.mxu0 0.0
    %1513 = vmatpush1.msra.mxu0 0.0
    %1514 = vmatprep.subr.mxu0 0.0
    %1515 = vmatpush1.msra.mxu0 0.0
    %1516 = vmatprep.subr.mxu0 0.0
    %1517 = vmatpush1.msra.mxu0 0.0
    %1518 = vmatprep.subr.mxu0 0.0
    %1519 = vmatpush1.msra.mxu0 0.0
    %1520 = vmatprep.subr.mxu0 0.0
    %1521 = vmatpush1.msra.mxu0 0.0
    %1522 = vmatprep.subr.mxu0 0.0
    %1523 = vmatpush1.msra.mxu0 0.0
    %1524 = vmatprep.subr.mxu0 0.0
    %1525 = vmatpush1.msra.mxu0 0.0
    %1526 = vmatprep.subr.mxu0 0.0
    %1527 = vmatpush1.msra.mxu0 0.0
    %1528 = vmatprep.subr.mxu0 0.0
    %1529 = vmatpush1.msra.mxu0 0.0
    %1530 = vmatprep.subr.mxu0 0.0
    %1531 = vmatpush1.msra.mxu0 0.0
    %1532 = vmatprep.subr.mxu0 0.0
    %1533 = vmatpush1.msra.mxu0 0.0
    %1534 = vmatprep.subr.mxu0 0.0
    %1535 = vmatpush1.msra.mxu0 0.0
    %1536 = vmatprep.subr.mxu0 0.0
    %1537 = vmatpush1.msra.mxu0 0.0
    %1538 = vmatprep.subr.mxu0 0.0
    %1539 = vmatpush1.msra.mxu0 0.0
    %1540 = vmatprep.subr.mxu0 0.0
    %1541 = vmatpush1.msra.mxu0 0.0
    %1542 = vmatprep.subr.mxu0 0.0
    %1543 = vmatpush1.msra.mxu0 0.0
    %1544 = vmatprep.subr.mxu0 0.0
    %1545 = vmatpush1.msra.mxu0 0.0
    %1546 = vmatprep.subr.mxu0 0.0
    %1547 = vmatpush1.msra.mxu0 0.0
    %1548 = vmatprep.subr.mxu0 0.0
    %1549 = vmatpush1.msra.mxu0 0.0
    %1550 = vmatprep.subr.mxu0 0.0
    %1551 = vmatpush1.msra.mxu0 0.0
    %1552 = vmatprep.subr.mxu0 0.0
    %1553 = vmatpush1.msra.mxu0 0.0
    %1554 = vmatprep.subr.mxu0 0.0
    %1555 = vmatpush1.msra.mxu0 0.0
    %1556 = vmatprep.subr.mxu0 0.0
    %1557 = vmatpush1.msra.mxu0 0.0
    %1558 = vmatprep.subr.mxu0 0.0
    %1559 = vmatpush1.msra.mxu0 0.0
    %1560 = vmatprep.mubr.f32.mxu0 0.0
    %1561 = vmatmul.mubr.f32.gmra.mrb[0].mxu0 %v1494
    %v1562 = vpop.f32.mrb[0].mxu0
    %v1563 = vadd.f32 0.0, %v1562
    %v1564 = vpop.f32.mrb[0].mxu0
    %1565 = vdwg.mxu0
    %v1566 = vadd.f32 %v1563, %v150
    %v1567 = vxor.u32 %v1566, 2147483648
    %v1568 = vmul.f32 %v1567, 1.442695
    %v1569 = vpow.pop %v1568
    %v1570 = vadd.f32 %v1569, 1.0
    %v1571 = vrcp.pop %v1570
    %v1572 = vmul.f32 1.0, %v1571
    %1574 = vrot.lane.b32.xlu0 %v1566, 32
    %v1575 = vpop.permute.xlu0 %1574
    %v1577 = vmul.f32 %v1572, %v1575
    %1579 = vrot.lane.b32.xlu0 %v1577, 64
    %v1580 = vpop.permute.xlu0 %1579
    %v1582 = vadd.f32 %v150, %v1580
    %v1583 = vtanh.pop %v1582
    %v1584 = vsub.f32 1.0, %v1572
    %1586 = vrot.lane.b32.xlu0 %v1583, 96
    %v1587 = vpop.permute.xlu0 %1586
    %v1589 = vmul.f32 %v1584, %v1587
    %v1590 = vmul.f32 %v1572, %v1260
    %v1591 = vadd.f32 %v1589, %v1590
    %1593 = vrot.lane.b32.xlu0 %v1591, 96
    %v1594 = vpop.permute.xlu0 %1593
    %v1596 = vsel %vm163, %v1594, %v1372
    %v1597 = vld [vmem:[#allocation5] sm:$0xff]
    %v1598 = vld [vmem:[#allocation5 + $0x8] sm:$0xff]
    %v1599 = vld [vmem:[#allocation5 + $0x10] sm:$0xff]
    %v1600 = vld [vmem:[#allocation5 + $0x18] sm:$0xff]
    %v1601 = vld [vmem:[#allocation5 + $0x20] sm:$0xff]
    %v1602 = vld [vmem:[#allocation5 + $0x28] sm:$0xff]
    %v1603 = vld [vmem:[#allocation5 + $0x30] sm:$0xff]
    %v1604 = vld [vmem:[#allocation5 + $0x38] sm:$0xff]
    %v1606 = vsel %vm279, %v1596, 0
    %1608 = vmatprep.subr.mxu0 0.0
    %1609 = vmatpush1.msra.mxu0 %v1597
    %1610 = vmatprep.subr.mxu0 0.0
    %1611 = vmatpush1.msra.mxu0 %v1598
    %1612 = vmatprep.subr.mxu0 0.0
    %1613 = vmatpush1.msra.mxu0 %v1599
    %1614 = vmatprep.subr.mxu0 0.0
    %1615 = vmatpush1.msra.mxu0 %v1600
    %1616 = vmatprep.subr.mxu0 0.0
    %1617 = vmatpush1.msra.mxu0 %v1601
    %1618 = vmatprep.subr.mxu0 0.0
    %1619 = vmatpush1.msra.mxu0 %v1602
    %1620 = vmatprep.subr.mxu0 0.0
    %1621 = vmatpush1.msra.mxu0 %v1603
    %1622 = vmatprep.subr.mxu0 0.0
    %1623 = vmatpush1.msra.mxu0 %v1604
    %1624 = vmatprep.subr.mxu0 0.0
    %1625 = vmatpush1.msra.mxu0 0.0
    %1626 = vmatprep.subr.mxu0 0.0
    %1627 = vmatpush1.msra.mxu0 0.0
    %1628 = vmatprep.subr.mxu0 0.0
    %1629 = vmatpush1.msra.mxu0 0.0
    %1630 = vmatprep.subr.mxu0 0.0
    %1631 = vmatpush1.msra.mxu0 0.0
    %1632 = vmatprep.subr.mxu0 0.0
    %1633 = vmatpush1.msra.mxu0 0.0
    %1634 = vmatprep.subr.mxu0 0.0
    %1635 = vmatpush1.msra.mxu0 0.0
    %1636 = vmatprep.subr.mxu0 0.0
    %1637 = vmatpush1.msra.mxu0 0.0
    %1638 = vmatprep.subr.mxu0 0.0
    %1639 = vmatpush1.msra.mxu0 0.0
    %1640 = vmatprep.subr.mxu0 0.0
    %1641 = vmatpush1.msra.mxu0 0.0
    %1642 = vmatprep.subr.mxu0 0.0
    %1643 = vmatpush1.msra.mxu0 0.0
    %1644 = vmatprep.subr.mxu0 0.0
    %1645 = vmatpush1.msra.mxu0 0.0
    %1646 = vmatprep.subr.mxu0 0.0
    %1647 = vmatpush1.msra.mxu0 0.0
    %1648 = vmatprep.subr.mxu0 0.0
    %1649 = vmatpush1.msra.mxu0 0.0
    %1650 = vmatprep.subr.mxu0 0.0
    %1651 = vmatpush1.msra.mxu0 0.0
    %1652 = vmatprep.subr.mxu0 0.0
    %1653 = vmatpush1.msra.mxu0 0.0
    %1654 = vmatprep.subr.mxu0 0.0
    %1655 = vmatpush1.msra.mxu0 0.0
    %1656 = vmatprep.subr.mxu0 0.0
    %1657 = vmatpush1.msra.mxu0 0.0
    %1658 = vmatprep.subr.mxu0 0.0
    %1659 = vmatpush1.msra.mxu0 0.0
    %1660 = vmatprep.subr.mxu0 0.0
    %1661 = vmatpush1.msra.mxu0 0.0
    %1662 = vmatprep.subr.mxu0 0.0
    %1663 = vmatpush1.msra.mxu0 0.0
    %1664 = vmatprep.subr.mxu0 0.0
    %1665 = vmatpush1.msra.mxu0 0.0
    %1666 = vmatprep.subr.mxu0 0.0
    %1667 = vmatpush1.msra.mxu0 0.0
    %1668 = vmatprep.subr.mxu0 0.0
    %1669 = vmatpush1.msra.mxu0 0.0
    %1670 = vmatprep.subr.mxu0 0.0
    %1671 = vmatpush1.msra.mxu0 0.0
    %1672 = vmatprep.mubr.f32.mxu0 0.0
    %1673 = vmatmul.mubr.f32.gmra.mrb[0].mxu0 %v1606
    %v1674 = vpop.f32.mrb[0].mxu0
    %v1675 = vadd.f32 0.0, %v1674
    %v1676 = vpop.f32.mrb[0].mxu0
    %1677 = vdwg.mxu0
    %v1678 = vadd.f32 %v1675, %v154
    %v1679 = vxor.u32 %v1678, 2147483648
    %v1680 = vmul.f32 %v1679, 1.442695
    %v1681 = vpow.pop %v1680
    %v1682 = vadd.f32 %v1681, 1.0
    %v1683 = vrcp.pop %v1682
    %v1684 = vmul.f32 1.0, %v1683
    %1686 = vrot.lane.b32.xlu0 %v1678, 32
    %v1687 = vpop.permute.xlu0 %1686
    %v1689 = vmul.f32 %v1684, %v1687
    %1691 = vrot.lane.b32.xlu0 %v1689, 64
    %v1692 = vpop.permute.xlu0 %1691
    %v1694 = vadd.f32 %v1678, %v1692
    %v1695 = vtanh.pop %v1694
    %v1696 = vsub.f32 1.0, %v1684
    %1698 = vrot.lane.b32.xlu0 %v1695, 96
    %v1699 = vpop.permute.xlu0 %1698
    %v1701 = vmul.f32 %v1696, %v1699
    %v1702 = vmul.f32 %v1684, %v1372
    %v1703 = vadd.f32 %v1701, %v1702
    %1705 = vrot.lane.b32.xlu0 %v1703, 96
    %v1706 = vpop.permute.xlu0 %1705
    %v1708 = vsel %vm163, %v1706, %v1484
    %v1709 = vld [vmem:[%s384] sm:$0xff]
    %v1710 = vld [vmem:[%s384 + $0x8] sm:$0xff]
    %v1711 = vld [vmem:[%s384 + $0x10] sm:$0xff]
    %v1712 = vld [vmem:[%s384 + $0x18] sm:$0xff]
    %v1713 = vld [vmem:[%s384 + $0x20] sm:$0xff]
    %v1714 = vld [vmem:[%s384 + $0x28] sm:$0xff]
    %v1715 = vld [vmem:[%s384 + $0x30] sm:$0xff]
    %v1716 = vld [vmem:[%s384 + $0x38] sm:$0xff]
    %v1718 = vsel %vm279, %v1708, 0
    %1720 = vmatprep.subr.mxu0 0.0
    %1721 = vmatpush1.msra.mxu0 %v1709
    %1722 = vmatprep.subr.mxu0 0.0
    %1723 = vmatpush1.msra.mxu0 %v1710
    %1724 = vmatprep.subr.mxu0 0.0
    %1725 = vmatpush1.msra.mxu0 %v1711
    %1726 = vmatprep.subr.mxu0 0.0
    %1727 = vmatpush1.msra.mxu0 %v1712
    %1728 = vmatprep.subr.mxu0 0.0
    %1729 = vmatpush1.msra.mxu0 %v1713
    %1730 = vmatprep.subr.mxu0 0.0
    %1731 = vmatpush1.msra.mxu0 %v1714
    %1732 = vmatprep.subr.mxu0 0.0
    %1733 = vmatpush1.msra.mxu0 %v1715
    %1734 = vmatprep.subr.mxu0 0.0
    %1735 = vmatpush1.msra.mxu0 %v1716
    %1736 = vmatprep.subr.mxu0 0.0
    %1737 = vmatpush1.msra.mxu0 0.0
    %1738 = vmatprep.subr.mxu0 0.0
    %1739 = vmatpush1.msra.mxu0 0.0
    %1740 = vmatprep.subr.mxu0 0.0
    %1741 = vmatpush1.msra.mxu0 0.0
    %1742 = vmatprep.subr.mxu0 0.0
    %1743 = vmatpush1.msra.mxu0 0.0
    %1744 = vmatprep.subr.mxu0 0.0
    %1745 = vmatpush1.msra.mxu0 0.0
    %1746 = vmatprep.subr.mxu0 0.0
    %1747 = vmatpush1.msra.mxu0 0.0
    %1748 = vmatprep.subr.mxu0 0.0
    %1749 = vmatpush1.msra.mxu0 0.0
    %1750 = vmatprep.subr.mxu0 0.0
    %1751 = vmatpush1.msra.mxu0 0.0
    %1752 = vmatprep.subr.mxu0 0.0
    %1753 = vmatpush1.msra.mxu0 0.0
    %1754 = vmatprep.subr.mxu0 0.0
    %1755 = vmatpush1.msra.mxu0 0.0
    %1756 = vmatprep.subr.mxu0 0.0
    %1757 = vmatpush1.msra.mxu0 0.0
    %1758 = vmatprep.subr.mxu0 0.0
    %1759 = vmatpush1.msra.mxu0 0.0
    %1760 = vmatprep.subr.mxu0 0.0
    %1761 = vmatpush1.msra.mxu0 0.0
    %1762 = vmatprep.subr.mxu0 0.0
    %1763 = vmatpush1.msra.mxu0 0.0
    %1764 = vmatprep.subr.mxu0 0.0
    %1765 = vmatpush1.msra.mxu0 0.0
    %1766 = vmatprep.subr.mxu0 0.0
    %1767 = vmatpush1.msra.mxu0 0.0
    %1768 = vmatprep.subr.mxu0 0.0
    %1769 = vmatpush1.msra.mxu0 0.0
    %1770 = vmatprep.subr.mxu0 0.0
    %1771 = vmatpush1.msra.mxu0 0.0
    %1772 = vmatprep.subr.mxu0 0.0
    %1773 = vmatpush1.msra.mxu0 0.0
    %1774 = vmatprep.subr.mxu0 0.0
    %1775 = vmatpush1.msra.mxu0 0.0
    %1776 = vmatprep.subr.mxu0 0.0
    %1777 = vmatpush1.msra.mxu0 0.0
    %1778 = vmatprep.subr.mxu0 0.0
    %1779 = vmatpush1.msra.mxu0 0.0
    %1780 = vmatprep.subr.mxu0 0.0
    %1781 = vmatpush1.msra.mxu0 0.0
    %1782 = vmatprep.subr.mxu0 0.0
    %1783 = vmatpush1.msra.mxu0 0.0
    %1784 = vmatprep.mubr.f32.mxu0 0.0
    %1785 = vmatmul.mubr.f32.gmra.mrb[0].mxu0 %v1718
    %v1786 = vpop.f32.mrb[0].mxu0
    %v1787 = vadd.f32 0.0, %v1786
    %v1788 = vpop.f32.mrb[0].mxu0
    %1789 = vdwg.mxu0
    %v1790 = vadd.f32 %v1787, %v158
    %v1791 = vxor.u32 %v1790, 2147483648
    %v1792 = vmul.f32 %v1791, 1.442695
    %v1793 = vpow.pop %v1792
    %v1794 = vadd.f32 %v1793, 1.0
    %v1795 = vrcp.pop %v1794
    %v1796 = vmul.f32 1.0, %v1795
    %1798 = vrot.lane.b32.xlu0 %v1790, 32
    %v1799 = vpop.permute.xlu0 %1798
    %v1801 = vmul.f32 %v1796, %v1799
    %1803 = vrot.lane.b32.xlu0 %v1801, 64
    %v1804 = vpop.permute.xlu0 %1803
    %v1806 = vadd.f32 %v1790, %v1804
    %v1807 = vtanh.pop %v1806
    %v1808 = vsub.f32 1.0, %v1796
    %1810 = vrot.lane.b32.xlu0 %v1807, 96
    %v1811 = vpop.permute.xlu0 %1810
    %v1813 = vmul.f32 %v1808, %v1811
    %v1814 = vmul.f32 %v1796, %v1484
    %v1815 = vadd.f32 %v1813, %v1814
    %1817 = vrot.lane.b32.xlu0 %v1815, 96
    %v1818 = vpop.permute.xlu0 %1817
    %1820 = vst.msk [vmem:[#allocation2 + $0x20] sm:$0xff] %vm163, %v1818
    %v1821 = vld [vmem:[%s3] sm:$0xff]
    %v1822 = vld [vmem:[%s3 + $0x8] sm:$0xff]
    %v1823 = vld [vmem:[%s3 + $0x10] sm:$0xff]
    %v1824 = vld [vmem:[%s3 + $0x18] sm:$0xff]
    %v1825 = vsel %vm163, %v1594, 0
    %1827 = vmatprep.subr.mxu0 0.0
    %1828 = vmatpush1.msra.mxu0 %v1821
    %1829 = vmatprep.subr.mxu0 0.0
    %1830 = vmatpush1.msra.mxu0 %v1822
    %1831 = vmatprep.subr.mxu0 0.0
    %1832 = vmatpush1.msra.mxu0 %v1823
    %1833 = vmatprep.subr.mxu0 0.0
    %1834 = vmatpush1.msra.mxu0 %v1824
    %1835 = vmatprep.subr.mxu0 0.0
    %1836 = vmatpush1.msra.mxu0 0.0
    %1837 = vmatprep.subr.mxu0 0.0
    %1838 = vmatpush1.msra.mxu0 0.0
    %1839 = vmatprep.subr.mxu0 0.0
    %1840 = vmatpush1.msra.mxu0 0.0
    %1841 = vmatprep.subr.mxu0 0.0
    %1842 = vmatpush1.msra.mxu0 0.0
    %1843 = vmatprep.subr.mxu0 0.0
    %1844 = vmatpush1.msra.mxu0 0.0
    %1845 = vmatprep.subr.mxu0 0.0
    %1846 = vmatpush1.msra.mxu0 0.0
    %1847 = vmatprep.subr.mxu0 0.0
    %1848 = vmatpush1.msra.mxu0 0.0
    %1849 = vmatprep.subr.mxu0 0.0
    %1850 = vmatpush1.msra.mxu0 0.0
    %1851 = vmatprep.subr.mxu0 0.0
    %1852 = vmatpush1.msra.mxu0 0.0
    %1853 = vmatprep.subr.mxu0 0.0
    %1854 = vmatpush1.msra.mxu0 0.0
    %1855 = vmatprep.subr.mxu0 0.0
    %1856 = vmatpush1.msra.mxu0 0.0
    %1857 = vmatprep.subr.mxu0 0.0
    %1858 = vmatpush1.msra.mxu0 0.0
    %1859 = vmatprep.subr.mxu0 0.0
    %1860 = vmatpush1.msra.mxu0 0.0
    %1861 = vmatprep.subr.mxu0 0.0
    %1862 = vmatpush1.msra.mxu0 0.0
    %1863 = vmatprep.subr.mxu0 0.0
    %1864 = vmatpush1.msra.mxu0 0.0
    %1865 = vmatprep.subr.mxu0 0.0
    %1866 = vmatpush1.msra.mxu0 0.0
    %1867 = vmatprep.subr.mxu0 0.0
    %1868 = vmatpush1.msra.mxu0 0.0
    %1869 = vmatprep.subr.mxu0 0.0
    %1870 = vmatpush1.msra.mxu0 0.0
    %1871 = vmatprep.subr.mxu0 0.0
    %1872 = vmatpush1.msra.mxu0 0.0
    %1873 = vmatprep.subr.mxu0 0.0
    %1874 = vmatpush1.msra.mxu0 0.0
    %1875 = vmatprep.subr.mxu0 0.0
    %1876 = vmatpush1.msra.mxu0 0.0
    %1877 = vmatprep.subr.mxu0 0.0
    %1878 = vmatpush1.msra.mxu0 0.0
    %1879 = vmatprep.subr.mxu0 0.0
    %1880 = vmatpush1.msra.mxu0 0.0
    %1881 = vmatprep.subr.mxu0 0.0
    %1882 = vmatpush1.msra.mxu0 0.0
    %1883 = vmatprep.subr.mxu0 0.0
    %1884 = vmatpush1.msra.mxu0 0.0
    %1885 = vmatprep.subr.mxu0 0.0
    %1886 = vmatpush1.msra.mxu0 0.0
    %1887 = vmatprep.subr.mxu0 0.0
    %1888 = vmatpush1.msra.mxu0 0.0
    %1889 = vmatprep.subr.mxu0 0.0
    %1890 = vmatpush1.msra.mxu0 0.0
    %1891 = vmatprep.mubr.f32.mxu0 0.0
    %1892 = vmatmul.mubr.f32.gmra.mrb[0].mxu0 %v1825
    %v1893 = vpop.f32.mrb[0].mxu0
    %v1894 = vadd.f32 0.0, %v1893
    %v1895 = vpop.f32.mrb[0].mxu0
    %1896 = vdwg.mxu0
    %v1897 = vadd.f32 %v1894, %v150
    %v1898 = vxor.u32 %v1897, 2147483648
    %v1899 = vmul.f32 %v1898, 1.442695
    %v1900 = vpow.pop %v1899
    %v1901 = vadd.f32 %v1900, 1.0
    %v1902 = vrcp.pop %v1901
    %v1903 = vmul.f32 1.0, %v1902
    %1905 = vrot.lane.b32.xlu0 %v1897, 32
    %v1906 = vpop.permute.xlu0 %1905
    %v1908 = vmul.f32 %v1903, %v1906
    %1910 = vrot.lane.b32.xlu0 %v1908, 64
    %v1911 = vpop.permute.xlu0 %1910
    %v1913 = vadd.f32 %v150, %v1911
    %v1914 = vtanh.pop %v1913
    %v1915 = vsub.f32 1.0, %v1903
    %1917 = vrot.lane.b32.xlu0 %v1914, 96
    %v1918 = vpop.permute.xlu0 %1917
    %v1920 = vmul.f32 %v1915, %v1918
    %v1921 = vmul.f32 %v1903, %v1591
    %v1922 = vadd.f32 %v1920, %v1921
    %1924 = vrot.lane.b32.xlu0 %v1922, 96
    %v1925 = vpop.permute.xlu0 %1924
    %v1927 = vsel %vm163, %v1925, %v1703
    %v1928 = vld [vmem:[#allocation5] sm:$0xff]
    %v1929 = vld [vmem:[#allocation5 + $0x8] sm:$0xff]
    %v1930 = vld [vmem:[#allocation5 + $0x10] sm:$0xff]
    %v1931 = vld [vmem:[#allocation5 + $0x18] sm:$0xff]
    %v1932 = vld [vmem:[#allocation5 + $0x20] sm:$0xff]
    %v1933 = vld [vmem:[#allocation5 + $0x28] sm:$0xff]
    %v1934 = vld [vmem:[#allocation5 + $0x30] sm:$0xff]
    %v1935 = vld [vmem:[#allocation5 + $0x38] sm:$0xff]
    %v1937 = vsel %vm279, %v1927, 0
    %1939 = vmatprep.subr.mxu0 0.0
    %1940 = vmatpush1.msra.mxu0 %v1928
    %1941 = vmatprep.subr.mxu0 0.0
    %1942 = vmatpush1.msra.mxu0 %v1929
    %1943 = vmatprep.subr.mxu0 0.0
    %1944 = vmatpush1.msra.mxu0 %v1930
    %1945 = vmatprep.subr.mxu0 0.0
    %1946 = vmatpush1.msra.mxu0 %v1931
    %1947 = vmatprep.subr.mxu0 0.0
    %1948 = vmatpush1.msra.mxu0 %v1932
    %1949 = vmatprep.subr.mxu0 0.0
    %1950 = vmatpush1.msra.mxu0 %v1933
    %1951 = vmatprep.subr.mxu0 0.0
    %1952 = vmatpush1.msra.mxu0 %v1934
    %1953 = vmatprep.subr.mxu0 0.0
    %1954 = vmatpush1.msra.mxu0 %v1935
    %1955 = vmatprep.subr.mxu0 0.0
    %1956 = vmatpush1.msra.mxu0 0.0
    %1957 = vmatprep.subr.mxu0 0.0
    %1958 = vmatpush1.msra.mxu0 0.0
    %1959 = vmatprep.subr.mxu0 0.0
    %1960 = vmatpush1.msra.mxu0 0.0
    %1961 = vmatprep.subr.mxu0 0.0
    %1962 = vmatpush1.msra.mxu0 0.0
    %1963 = vmatprep.subr.mxu0 0.0
    %1964 = vmatpush1.msra.mxu0 0.0
    %1965 = vmatprep.subr.mxu0 0.0
    %1966 = vmatpush1.msra.mxu0 0.0
    %1967 = vmatprep.subr.mxu0 0.0
    %1968 = vmatpush1.msra.mxu0 0.0
    %1969 = vmatprep.subr.mxu0 0.0
    %1970 = vmatpush1.msra.mxu0 0.0
    %1971 = vmatprep.subr.mxu0 0.0
    %1972 = vmatpush1.msra.mxu0 0.0
    %1973 = vmatprep.subr.mxu0 0.0
    %1974 = vmatpush1.msra.mxu0 0.0
    %1975 = vmatprep.subr.mxu0 0.0
    %1976 = vmatpush1.msra.mxu0 0.0
    %1977 = vmatprep.subr.mxu0 0.0
    %1978 = vmatpush1.msra.mxu0 0.0
    %1979 = vmatprep.subr.mxu0 0.0
    %1980 = vmatpush1.msra.mxu0 0.0
    %1981 = vmatprep.subr.mxu0 0.0
    %1982 = vmatpush1.msra.mxu0 0.0
    %1983 = vmatprep.subr.mxu0 0.0
    %1984 = vmatpush1.msra.mxu0 0.0
    %1985 = vmatprep.subr.mxu0 0.0
    %1986 = vmatpush1.msra.mxu0 0.0
    %1987 = vmatprep.subr.mxu0 0.0
    %1988 = vmatpush1.msra.mxu0 0.0
    %1989 = vmatprep.subr.mxu0 0.0
    %1990 = vmatpush1.msra.mxu0 0.0
    %1991 = vmatprep.subr.mxu0 0.0
    %1992 = vmatpush1.msra.mxu0 0.0
    %1993 = vmatprep.subr.mxu0 0.0
    %1994 = vmatpush1.msra.mxu0 0.0
    %1995 = vmatprep.subr.mxu0 0.0
    %1996 = vmatpush1.msra.mxu0 0.0
    %1997 = vmatprep.subr.mxu0 0.0
    %1998 = vmatpush1.msra.mxu0 0.0
    %1999 = vmatprep.subr.mxu0 0.0
    %2000 = vmatpush1.msra.mxu0 0.0
    %2001 = vmatprep.subr.mxu0 0.0
    %2002 = vmatpush1.msra.mxu0 0.0
    %2003 = vmatprep.mubr.f32.mxu0 0.0
    %2004 = vmatmul.mubr.f32.gmra.mrb[0].mxu0 %v1937
    %v2005 = vpop.f32.mrb[0].mxu0
    %v2006 = vadd.f32 0.0, %v2005
    %v2007 = vpop.f32.mrb[0].mxu0
    %2008 = vdwg.mxu0
    %v2009 = vadd.f32 %v2006, %v154
    %v2010 = vxor.u32 %v2009, 2147483648
    %v2011 = vmul.f32 %v2010, 1.442695
    %v2012 = vpow.pop %v2011
    %v2013 = vadd.f32 %v2012, 1.0
    %v2014 = vrcp.pop %v2013
    %v2015 = vmul.f32 1.0, %v2014
    %2017 = vrot.lane.b32.xlu0 %v2009, 32
    %v2018 = vpop.permute.xlu0 %2017
    %v2020 = vmul.f32 %v2015, %v2018
    %2022 = vrot.lane.b32.xlu0 %v2020, 64
    %v2023 = vpop.permute.xlu0 %2022
    %v2025 = vadd.f32 %v2009, %v2023
    %v2026 = vtanh.pop %v2025
    %v2027 = vsub.f32 1.0, %v2015
    %2029 = vrot.lane.b32.xlu0 %v2026, 96
    %v2030 = vpop.permute.xlu0 %2029
    %v2032 = vmul.f32 %v2027, %v2030
    %v2033 = vmul.f32 %v2015, %v1703
    %v2034 = vadd.f32 %v2032, %v2033
    %2036 = vrot.lane.b32.xlu0 %v2034, 96
    %v2037 = vpop.permute.xlu0 %2036
    %v2039 = vsel %vm163, %v2037, %v1815
    %v2040 = vld [vmem:[%s384] sm:$0xff]
    %v2041 = vld [vmem:[%s384 + $0x8] sm:$0xff]
    %v2042 = vld [vmem:[%s384 + $0x10] sm:$0xff]
    %v2043 = vld [vmem:[%s384 + $0x18] sm:$0xff]
    %v2044 = vld [vmem:[%s384 + $0x20] sm:$0xff]
    %v2045 = vld [vmem:[%s384 + $0x28] sm:$0xff]
    %v2046 = vld [vmem:[%s384 + $0x30] sm:$0xff]
    %v2047 = vld [vmem:[%s384 + $0x38] sm:$0xff]
    %v2049 = vsel %vm279, %v2039, 0
    %2051 = vmatprep.subr.mxu0 0.0
    %2052 = vmatpush1.msra.mxu0 %v2040
    %2053 = vmatprep.subr.mxu0 0.0
    %2054 = vmatpush1.msra.mxu0 %v2041
    %2055 = vmatprep.subr.mxu0 0.0
    %2056 = vmatpush1.msra.mxu0 %v2042
    %2057 = vmatprep.subr.mxu0 0.0
    %2058 = vmatpush1.msra.mxu0 %v2043
    %2059 = vmatprep.subr.mxu0 0.0
    %2060 = vmatpush1.msra.mxu0 %v2044
    %2061 = vmatprep.subr.mxu0 0.0
    %2062 = vmatpush1.msra.mxu0 %v2045
    %2063 = vmatprep.subr.mxu0 0.0
    %2064 = vmatpush1.msra.mxu0 %v2046
    %2065 = vmatprep.subr.mxu0 0.0
    %2066 = vmatpush1.msra.mxu0 %v2047
    %2067 = vmatprep.subr.mxu0 0.0
    %2068 = vmatpush1.msra.mxu0 0.0
    %2069 = vmatprep.subr.mxu0 0.0
    %2070 = vmatpush1.msra.mxu0 0.0
    %2071 = vmatprep.subr.mxu0 0.0
    %2072 = vmatpush1.msra.mxu0 0.0
    %2073 = vmatprep.subr.mxu0 0.0
    %2074 = vmatpush1.msra.mxu0 0.0
    %2075 = vmatprep.subr.mxu0 0.0
    %2076 = vmatpush1.msra.mxu0 0.0
    %2077 = vmatprep.subr.mxu0 0.0
    %2078 = vmatpush1.msra.mxu0 0.0
    %2079 = vmatprep.subr.mxu0 0.0
    %2080 = vmatpush1.msra.mxu0 0.0
    %2081 = vmatprep.subr.mxu0 0.0
    %2082 = vmatpush1.msra.mxu0 0.0
    %2083 = vmatprep.subr.mxu0 0.0
    %2084 = vmatpush1.msra.mxu0 0.0
    %2085 = vmatprep.subr.mxu0 0.0
    %2086 = vmatpush1.msra.mxu0 0.0
    %2087 = vmatprep.subr.mxu0 0.0
    %2088 = vmatpush1.msra.mxu0 0.0
    %2089 = vmatprep.subr.mxu0 0.0
    %2090 = vmatpush1.msra.mxu0 0.0
    %2091 = vmatprep.subr.mxu0 0.0
    %2092 = vmatpush1.msra.mxu0 0.0
    %2093 = vmatprep.subr.mxu0 0.0
    %2094 = vmatpush1.msra.mxu0 0.0
    %2095 = vmatprep.subr.mxu0 0.0
    %2096 = vmatpush1.msra.mxu0 0.0
    %2097 = vmatprep.subr.mxu0 0.0
    %2098 = vmatpush1.msra.mxu0 0.0
    %2099 = vmatprep.subr.mxu0 0.0
    %2100 = vmatpush1.msra.mxu0 0.0
    %2101 = vmatprep.subr.mxu0 0.0
    %2102 = vmatpush1.msra.mxu0 0.0
    %2103 = vmatprep.subr.mxu0 0.0
    %2104 = vmatpush1.msra.mxu0 0.0
    %2105 = vmatprep.subr.mxu0 0.0
    %2106 = vmatpush1.msra.mxu0 0.0
    %2107 = vmatprep.subr.mxu0 0.0
    %2108 = vmatpush1.msra.mxu0 0.0
    %2109 = vmatprep.subr.mxu0 0.0
    %2110 = vmatpush1.msra.mxu0 0.0
    %2111 = vmatprep.subr.mxu0 0.0
    %2112 = vmatpush1.msra.mxu0 0.0
    %2113 = vmatprep.subr.mxu0 0.0
    %2114 = vmatpush1.msra.mxu0 0.0
    %2115 = vmatprep.mubr.f32.mxu0 0.0
    %2116 = vmatmul.mubr.f32.gmra.mrb[0].mxu0 %v2049
    %v2117 = vpop.f32.mrb[0].mxu0
    %v2118 = vadd.f32 0.0, %v2117
    %v2119 = vpop.f32.mrb[0].mxu0
    %2120 = vdwg.mxu0
    %v2121 = vadd.f32 %v2118, %v158
    %v2122 = vxor.u32 %v2121, 2147483648
    %v2123 = vmul.f32 %v2122, 1.442695
    %v2124 = vpow.pop %v2123
    %v2125 = vadd.f32 %v2124, 1.0
    %v2126 = vrcp.pop %v2125
    %v2127 = vmul.f32 1.0, %v2126
    %2129 = vrot.lane.b32.xlu0 %v2121, 32
    %v2130 = vpop.permute.xlu0 %2129
    %v2132 = vmul.f32 %v2127, %v2130
    %2134 = vrot.lane.b32.xlu0 %v2132, 64
    %v2135 = vpop.permute.xlu0 %2134
    %v2137 = vadd.f32 %v2121, %v2135
    %v2138 = vtanh.pop %v2137
    %v2139 = vsub.f32 1.0, %v2127
    %2141 = vrot.lane.b32.xlu0 %v2138, 96
    %v2142 = vpop.permute.xlu0 %2141
    %v2144 = vmul.f32 %v2139, %v2142
    %v2145 = vmul.f32 %v2127, %v1815
    %v2146 = vadd.f32 %v2144, %v2145
    %2148 = vrot.lane.b32.xlu0 %v2146, 96
    %v2149 = vpop.permute.xlu0 %2148
    %2151 = vst.msk [vmem:[#allocation2 + $0x28] sm:$0xff] %vm163, %v2149
    %v2152 = vld [vmem:[%s3] sm:$0xff]
    %v2153 = vld [vmem:[%s3 + $0x8] sm:$0xff]
    %v2154 = vld [vmem:[%s3 + $0x10] sm:$0xff]
    %v2155 = vld [vmem:[%s3 + $0x18] sm:$0xff]
    %v2156 = vsel %vm163, %v1925, 0
    %2158 = vmatprep.subr.mxu0 0.0
    %2159 = vmatpush1.msra.mxu0 %v2152
    %2160 = vmatprep.subr.mxu0 0.0
    %2161 = vmatpush1.msra.mxu0 %v2153
    %2162 = vmatprep.subr.mxu0 0.0
    %2163 = vmatpush1.msra.mxu0 %v2154
    %2164 = vmatprep.subr.mxu0 0.0
    %2165 = vmatpush1.msra.mxu0 %v2155
    %2166 = vmatprep.subr.mxu0 0.0
    %2167 = vmatpush1.msra.mxu0 0.0
    %2168 = vmatprep.subr.mxu0 0.0
    %2169 = vmatpush1.msra.mxu0 0.0
    %2170 = vmatprep.subr.mxu0 0.0
    %2171 = vmatpush1.msra.mxu0 0.0
    %2172 = vmatprep.subr.mxu0 0.0
    %2173 = vmatpush1.msra.mxu0 0.0
    %2174 = vmatprep.subr.mxu0 0.0
    %2175 = vmatpush1.msra.mxu0 0.0
    %2176 = vmatprep.subr.mxu0 0.0
    %2177 = vmatpush1.msra.mxu0 0.0
    %2178 = vmatprep.subr.mxu0 0.0
    %2179 = vmatpush1.msra.mxu0 0.0
    %2180 = vmatprep.subr.mxu0 0.0
    %2181 = vmatpush1.msra.mxu0 0.0
    %2182 = vmatprep.subr.mxu0 0.0
    %2183 = vmatpush1.msra.mxu0 0.0
    %2184 = vmatprep.subr.mxu0 0.0
    %2185 = vmatpush1.msra.mxu0 0.0
    %2186 = vmatprep.subr.mxu0 0.0
    %2187 = vmatpush1.msra.mxu0 0.0
    %2188 = vmatprep.subr.mxu0 0.0
    %2189 = vmatpush1.msra.mxu0 0.0
    %2190 = vmatprep.subr.mxu0 0.0
    %2191 = vmatpush1.msra.mxu0 0.0
    %2192 = vmatprep.subr.mxu0 0.0
    %2193 = vmatpush1.msra.mxu0 0.0
    %2194 = vmatprep.subr.mxu0 0.0
    %2195 = vmatpush1.msra.mxu0 0.0
    %2196 = vmatprep.subr.mxu0 0.0
    %2197 = vmatpush1.msra.mxu0 0.0
    %2198 = vmatprep.subr.mxu0 0.0
    %2199 = vmatpush1.msra.mxu0 0.0
    %2200 = vmatprep.subr.mxu0 0.0
    %2201 = vmatpush1.msra.mxu0 0.0
    %2202 = vmatprep.subr.mxu0 0.0
    %2203 = vmatpush1.msra.mxu0 0.0
    %2204 = vmatprep.subr.mxu0 0.0
    %2205 = vmatpush1.msra.mxu0 0.0
    %2206 = vmatprep.subr.mxu0 0.0
    %2207 = vmatpush1.msra.mxu0 0.0
    %2208 = vmatprep.subr.mxu0 0.0
    %2209 = vmatpush1.msra.mxu0 0.0
    %2210 = vmatprep.subr.mxu0 0.0
    %2211 = vmatpush1.msra.mxu0 0.0
    %2212 = vmatprep.subr.mxu0 0.0
    %2213 = vmatpush1.msra.mxu0 0.0
    %2214 = vmatprep.subr.mxu0 0.0
    %2215 = vmatpush1.msra.mxu0 0.0
    %2216 = vmatprep.subr.mxu0 0.0
    %2217 = vmatpush1.msra.mxu0 0.0
    %2218 = vmatprep.subr.mxu0 0.0
    %2219 = vmatpush1.msra.mxu0 0.0
    %2220 = vmatprep.subr.mxu0 0.0
    %2221 = vmatpush1.msra.mxu0 0.0
    %2222 = vmatprep.mubr.f32.mxu0 0.0
    %2223 = vmatmul.mubr.f32.gmra.mrb[0].mxu0 %v2156
    %v2224 = vpop.f32.mrb[0].mxu0
    %v2225 = vadd.f32 0.0, %v2224
    %v2226 = vpop.f32.mrb[0].mxu0
    %2227 = vdwg.mxu0
    %v2228 = vadd.f32 %v2225, %v150
    %v2229 = vxor.u32 %v2228, 2147483648
    %v2230 = vmul.f32 %v2229, 1.442695
    %v2231 = vpow.pop %v2230
    %v2232 = vadd.f32 %v2231, 1.0
    %v2233 = vrcp.pop %v2232
    %v2234 = vmul.f32 1.0, %v2233
    %2236 = vrot.lane.b32.xlu0 %v2228, 32
    %v2237 = vpop.permute.xlu0 %2236
    %v2239 = vmul.f32 %v2234, %v2237
    %2241 = vrot.lane.b32.xlu0 %v2239, 64
    %v2242 = vpop.permute.xlu0 %2241
    %v2244 = vadd.f32 %v150, %v2242
    %v2245 = vtanh.pop %v2244
    %v2246 = vsub.f32 1.0, %v2234
    %2248 = vrot.lane.b32.xlu0 %v2245, 96
    %v2249 = vpop.permute.xlu0 %2248
    %v2251 = vmul.f32 %v2246, %v2249
    %v2252 = vmul.f32 %v2234, %v1922
    %v2253 = vadd.f32 %v2251, %v2252
    %2255 = vrot.lane.b32.xlu0 %v2253, 96
    %v2256 = vpop.permute.xlu0 %2255
    %v2258 = vsel %vm163, %v2256, %v2034
    %v2259 = vld [vmem:[#allocation5] sm:$0xff]
    %v2260 = vld [vmem:[#allocation5 + $0x8] sm:$0xff]
    %v2261 = vld [vmem:[#allocation5 + $0x10] sm:$0xff]
    %v2262 = vld [vmem:[#allocation5 + $0x18] sm:$0xff]
    %v2263 = vld [vmem:[#allocation5 + $0x20] sm:$0xff]
    %v2264 = vld [vmem:[#allocation5 + $0x28] sm:$0xff]
    %v2265 = vld [vmem:[#allocation5 + $0x30] sm:$0xff]
    %v2266 = vld [vmem:[#allocation5 + $0x38] sm:$0xff]
    %v2268 = vsel %vm279, %v2258, 0
    %2270 = vmatprep.subr.mxu0 0.0
    %2271 = vmatpush1.msra.mxu0 %v2259
    %2272 = vmatprep.subr.mxu0 0.0
    %2273 = vmatpush1.msra.mxu0 %v2260
    %2274 = vmatprep.subr.mxu0 0.0
    %2275 = vmatpush1.msra.mxu0 %v2261
    %2276 = vmatprep.subr.mxu0 0.0
    %2277 = vmatpush1.msra.mxu0 %v2262
    %2278 = vmatprep.subr.mxu0 0.0
    %2279 = vmatpush1.msra.mxu0 %v2263
    %2280 = vmatprep.subr.mxu0 0.0
    %2281 = vmatpush1.msra.mxu0 %v2264
    %2282 = vmatprep.subr.mxu0 0.0
    %2283 = vmatpush1.msra.mxu0 %v2265
    %2284 = vmatprep.subr.mxu0 0.0
    %2285 = vmatpush1.msra.mxu0 %v2266
    %2286 = vmatprep.subr.mxu0 0.0
    %2287 = vmatpush1.msra.mxu0 0.0
    %2288 = vmatprep.subr.mxu0 0.0
    %2289 = vmatpush1.msra.mxu0 0.0
    %2290 = vmatprep.subr.mxu0 0.0
    %2291 = vmatpush1.msra.mxu0 0.0
    %2292 = vmatprep.subr.mxu0 0.0
    %2293 = vmatpush1.msra.mxu0 0.0
    %2294 = vmatprep.subr.mxu0 0.0
    %2295 = vmatpush1.msra.mxu0 0.0
    %2296 = vmatprep.subr.mxu0 0.0
    %2297 = vmatpush1.msra.mxu0 0.0
    %2298 = vmatprep.subr.mxu0 0.0
    %2299 = vmatpush1.msra.mxu0 0.0
    %2300 = vmatprep.subr.mxu0 0.0
    %2301 = vmatpush1.msra.mxu0 0.0
    %2302 = vmatprep.subr.mxu0 0.0
    %2303 = vmatpush1.msra.mxu0 0.0
    %2304 = vmatprep.subr.mxu0 0.0
    %2305 = vmatpush1.msra.mxu0 0.0
    %2306 = vmatprep.subr.mxu0 0.0
    %2307 = vmatpush1.msra.mxu0 0.0
    %2308 = vmatprep.subr.mxu0 0.0
    %2309 = vmatpush1.msra.mxu0 0.0
    %2310 = vmatprep.subr.mxu0 0.0
    %2311 = vmatpush1.msra.mxu0 0.0
    %2312 = vmatprep.subr.mxu0 0.0
    %2313 = vmatpush1.msra.mxu0 0.0
    %2314 = vmatprep.subr.mxu0 0.0
    %2315 = vmatpush1.msra.mxu0 0.0
    %2316 = vmatprep.subr.mxu0 0.0
    %2317 = vmatpush1.msra.mxu0 0.0
    %2318 = vmatprep.subr.mxu0 0.0
    %2319 = vmatpush1.msra.mxu0 0.0
    %2320 = vmatprep.subr.mxu0 0.0
    %2321 = vmatpush1.msra.mxu0 0.0
    %2322 = vmatprep.subr.mxu0 0.0
    %2323 = vmatpush1.msra.mxu0 0.0
    %2324 = vmatprep.subr.mxu0 0.0
    %2325 = vmatpush1.msra.mxu0 0.0
    %2326 = vmatprep.subr.mxu0 0.0
    %2327 = vmatpush1.msra.mxu0 0.0
    %2328 = vmatprep.subr.mxu0 0.0
    %2329 = vmatpush1.msra.mxu0 0.0
    %2330 = vmatprep.subr.mxu0 0.0
    %2331 = vmatpush1.msra.mxu0 0.0
    %2332 = vmatprep.subr.mxu0 0.0
    %2333 = vmatpush1.msra.mxu0 0.0
    %2334 = vmatprep.mubr.f32.mxu0 0.0
    %2335 = vmatmul.mubr.f32.gmra.mrb[0].mxu0 %v2268
    %v2336 = vpop.f32.mrb[0].mxu0
    %v2337 = vadd.f32 0.0, %v2336
    %v2338 = vpop.f32.mrb[0].mxu0
    %2339 = vdwg.mxu0
    %v2340 = vadd.f32 %v2337, %v154
    %v2341 = vxor.u32 %v2340, 2147483648
    %v2342 = vmul.f32 %v2341, 1.442695
    %v2343 = vpow.pop %v2342
    %v2344 = vadd.f32 %v2343, 1.0
    %v2345 = vrcp.pop %v2344
    %v2346 = vmul.f32 1.0, %v2345
    %2348 = vrot.lane.b32.xlu0 %v2340, 32
    %v2349 = vpop.permute.xlu0 %2348
    %v2351 = vmul.f32 %v2346, %v2349
    %2353 = vrot.lane.b32.xlu0 %v2351, 64
    %v2354 = vpop.permute.xlu0 %2353
    %v2356 = vadd.f32 %v2340, %v2354
    %v2357 = vtanh.pop %v2356
    %v2358 = vsub.f32 1.0, %v2346
    %2360 = vrot.lane.b32.xlu0 %v2357, 96
    %v2361 = vpop.permute.xlu0 %2360
    %v2363 = vmul.f32 %v2358, %v2361
    %v2364 = vmul.f32 %v2346, %v2034
    %v2365 = vadd.f32 %v2363, %v2364
    %2367 = vrot.lane.b32.xlu0 %v2365, 96
    %v2368 = vpop.permute.xlu0 %2367
    %v2370 = vsel %vm163, %v2368, %v2146
    %v2371 = vld [vmem:[%s384] sm:$0xff]
    %v2372 = vld [vmem:[%s384 + $0x8] sm:$0xff]
    %v2373 = vld [vmem:[%s384 + $0x10] sm:$0xff]
    %v2374 = vld [vmem:[%s384 + $0x18] sm:$0xff]
    %v2375 = vld [vmem:[%s384 + $0x20] sm:$0xff]
    %v2376 = vld [vmem:[%s384 + $0x28] sm:$0xff]
    %v2377 = vld [vmem:[%s384 + $0x30] sm:$0xff]
    %v2378 = vld [vmem:[%s384 + $0x38] sm:$0xff]
    %v2380 = vsel %vm279, %v2370, 0
    %2382 = vmatprep.subr.mxu0 0.0
    %2383 = vmatpush1.msra.mxu0 %v2371
    %2384 = vmatprep.subr.mxu0 0.0
    %2385 = vmatpush1.msra.mxu0 %v2372
    %2386 = vmatprep.subr.mxu0 0.0
    %2387 = vmatpush1.msra.mxu0 %v2373
    %2388 = vmatprep.subr.mxu0 0.0
    %2389 = vmatpush1.msra.mxu0 %v2374
    %2390 = vmatprep.subr.mxu0 0.0
    %2391 = vmatpush1.msra.mxu0 %v2375
    %2392 = vmatprep.subr.mxu0 0.0
    %2393 = vmatpush1.msra.mxu0 %v2376
    %2394 = vmatprep.subr.mxu0 0.0
    %2395 = vmatpush1.msra.mxu0 %v2377
    %2396 = vmatprep.subr.mxu0 0.0
    %2397 = vmatpush1.msra.mxu0 %v2378
    %2398 = vmatprep.subr.mxu0 0.0
    %2399 = vmatpush1.msra.mxu0 0.0
    %2400 = vmatprep.subr.mxu0 0.0
    %2401 = vmatpush1.msra.mxu0 0.0
    %2402 = vmatprep.subr.mxu0 0.0
    %2403 = vmatpush1.msra.mxu0 0.0
    %2404 = vmatprep.subr.mxu0 0.0
    %2405 = vmatpush1.msra.mxu0 0.0
    %2406 = vmatprep.subr.mxu0 0.0
    %2407 = vmatpush1.msra.mxu0 0.0
    %2408 = vmatprep.subr.mxu0 0.0
    %2409 = vmatpush1.msra.mxu0 0.0
    %2410 = vmatprep.subr.mxu0 0.0
    %2411 = vmatpush1.msra.mxu0 0.0
    %2412 = vmatprep.subr.mxu0 0.0
    %2413 = vmatpush1.msra.mxu0 0.0
    %2414 = vmatprep.subr.mxu0 0.0
    %2415 = vmatpush1.msra.mxu0 0.0
    %2416 = vmatprep.subr.mxu0 0.0
    %2417 = vmatpush1.msra.mxu0 0.0
    %2418 = vmatprep.subr.mxu0 0.0
    %2419 = vmatpush1.msra.mxu0 0.0
    %2420 = vmatprep.subr.mxu0 0.0
    %2421 = vmatpush1.msra.mxu0 0.0
    %2422 = vmatprep.subr.mxu0 0.0
    %2423 = vmatpush1.msra.mxu0 0.0
    %2424 = vmatprep.subr.mxu0 0.0
    %2425 = vmatpush1.msra.mxu0 0.0
    %2426 = vmatprep.subr.mxu0 0.0
    %2427 = vmatpush1.msra.mxu0 0.0
    %2428 = vmatprep.subr.mxu0 0.0
    %2429 = vmatpush1.msra.mxu0 0.0
    %2430 = vmatprep.subr.mxu0 0.0
    %2431 = vmatpush1.msra.mxu0 0.0
    %2432 = vmatprep.subr.mxu0 0.0
    %2433 = vmatpush1.msra.mxu0 0.0
    %2434 = vmatprep.subr.mxu0 0.0
    %2435 = vmatpush1.msra.mxu0 0.0
    %2436 = vmatprep.subr.mxu0 0.0
    %2437 = vmatpush1.msra.mxu0 0.0
    %2438 = vmatprep.subr.mxu0 0.0
    %2439 = vmatpush1.msra.mxu0 0.0
    %2440 = vmatprep.subr.mxu0 0.0
    %2441 = vmatpush1.msra.mxu0 0.0
    %2442 = vmatprep.subr.mxu0 0.0
    %2443 = vmatpush1.msra.mxu0 0.0
    %2444 = vmatprep.subr.mxu0 0.0
    %2445 = vmatpush1.msra.mxu0 0.0
    %2446 = vmatprep.mubr.f32.mxu0 0.0
    %2447 = vmatmul.mubr.f32.gmra.mrb[0].mxu0 %v2380
    %v2448 = vpop.f32.mrb[0].mxu0
    %v2449 = vadd.f32 0.0, %v2448
    %v2450 = vpop.f32.mrb[0].mxu0
    %2451 = vdwg.mxu0
    %v2452 = vadd.f32 %v2449, %v158
    %v2453 = vxor.u32 %v2452, 2147483648
    %v2454 = vmul.f32 %v2453, 1.442695
    %v2455 = vpow.pop %v2454
    %v2456 = vadd.f32 %v2455, 1.0
    %v2457 = vrcp.pop %v2456
    %v2458 = vmul.f32 1.0, %v2457
    %2460 = vrot.lane.b32.xlu0 %v2452, 32
    %v2461 = vpop.permute.xlu0 %2460
    %v2463 = vmul.f32 %v2458, %v2461
    %2465 = vrot.lane.b32.xlu0 %v2463, 64
    %v2466 = vpop.permute.xlu0 %2465
    %v2468 = vadd.f32 %v2452, %v2466
    %v2469 = vtanh.pop %v2468
    %v2470 = vsub.f32 1.0, %v2458
    %2472 = vrot.lane.b32.xlu0 %v2469, 96
    %v2473 = vpop.permute.xlu0 %2472
    %v2475 = vmul.f32 %v2470, %v2473
    %v2476 = vmul.f32 %v2458, %v2146
    %v2477 = vadd.f32 %v2475, %v2476
    %2479 = vrot.lane.b32.xlu0 %v2477, 96
    %v2480 = vpop.permute.xlu0 %2479
    %2482 = vst.msk [vmem:[#allocation2 + $0x30] sm:$0xff] %vm163, %v2480
    %v2483 = vld [vmem:[%s3] sm:$0xff]
    %v2484 = vld [vmem:[%s3 + $0x8] sm:$0xff]
    %v2485 = vld [vmem:[%s3 + $0x10] sm:$0xff]
    %v2486 = vld [vmem:[%s3 + $0x18] sm:$0xff]
    %v2487 = vsel %vm163, %v2256, 0
    %2489 = vmatprep.subr.mxu0 0.0
    %2490 = vmatpush1.msra.mxu0 %v2483
    %2491 = vmatprep.subr.mxu0 0.0
    %2492 = vmatpush1.msra.mxu0 %v2484
    %2493 = vmatprep.subr.mxu0 0.0
    %2494 = vmatpush1.msra.mxu0 %v2485
    %2495 = vmatprep.subr.mxu0 0.0
    %2496 = vmatpush1.msra.mxu0 %v2486
    %2497 = vmatprep.subr.mxu0 0.0
    %2498 = vmatpush1.msra.mxu0 0.0
    %2499 = vmatprep.subr.mxu0 0.0
    %2500 = vmatpush1.msra.mxu0 0.0
    %2501 = vmatprep.subr.mxu0 0.0
    %2502 = vmatpush1.msra.mxu0 0.0
    %2503 = vmatprep.subr.mxu0 0.0
    %2504 = vmatpush1.msra.mxu0 0.0
    %2505 = vmatprep.subr.mxu0 0.0
    %2506 = vmatpush1.msra.mxu0 0.0
    %2507 = vmatprep.subr.mxu0 0.0
    %2508 = vmatpush1.msra.mxu0 0.0
    %2509 = vmatprep.subr.mxu0 0.0
    %2510 = vmatpush1.msra.mxu0 0.0
    %2511 = vmatprep.subr.mxu0 0.0
    %2512 = vmatpush1.msra.mxu0 0.0
    %2513 = vmatprep.subr.mxu0 0.0
    %2514 = vmatpush1.msra.mxu0 0.0
    %2515 = vmatprep.subr.mxu0 0.0
    %2516 = vmatpush1.msra.mxu0 0.0
    %2517 = vmatprep.subr.mxu0 0.0
    %2518 = vmatpush1.msra.mxu0 0.0
    %2519 = vmatprep.subr.mxu0 0.0
    %2520 = vmatpush1.msra.mxu0 0.0
    %2521 = vmatprep.subr.mxu0 0.0
    %2522 = vmatpush1.msra.mxu0 0.0
    %2523 = vmatprep.subr.mxu0 0.0
    %2524 = vmatpush1.msra.mxu0 0.0
    %2525 = vmatprep.subr.mxu0 0.0
    %2526 = vmatpush1.msra.mxu0 0.0
    %2527 = vmatprep.subr.mxu0 0.0
    %2528 = vmatpush1.msra.mxu0 0.0
    %2529 = vmatprep.subr.mxu0 0.0
    %2530 = vmatpush1.msra.mxu0 0.0
    %2531 = vmatprep.subr.mxu0 0.0
    %2532 = vmatpush1.msra.mxu0 0.0
    %2533 = vmatprep.subr.mxu0 0.0
    %2534 = vmatpush1.msra.mxu0 0.0
    %2535 = vmatprep.subr.mxu0 0.0
    %2536 = vmatpush1.msra.mxu0 0.0
    %2537 = vmatprep.subr.mxu0 0.0
    %2538 = vmatpush1.msra.mxu0 0.0
    %2539 = vmatprep.subr.mxu0 0.0
    %2540 = vmatpush1.msra.mxu0 0.0
    %2541 = vmatprep.subr.mxu0 0.0
    %2542 = vmatpush1.msra.mxu0 0.0
    %2543 = vmatprep.subr.mxu0 0.0
    %2544 = vmatpush1.msra.mxu0 0.0
    %2545 = vmatprep.subr.mxu0 0.0
    %2546 = vmatpush1.msra.mxu0 0.0
    %2547 = vmatprep.subr.mxu0 0.0
    %2548 = vmatpush1.msra.mxu0 0.0
    %2549 = vmatprep.subr.mxu0 0.0
    %2550 = vmatpush1.msra.mxu0 0.0
    %2551 = vmatprep.subr.mxu0 0.0
    %2552 = vmatpush1.msra.mxu0 0.0
    %2553 = vmatprep.mubr.f32.mxu0 0.0
    %2554 = vmatmul.mubr.f32.gmra.mrb[0].mxu0 %v2487
    %v2555 = vpop.f32.mrb[0].mxu0
    %v2556 = vadd.f32 0.0, %v2555
    %v2557 = vpop.f32.mrb[0].mxu0
    %2558 = vdwg.mxu0
    %v2559 = vadd.f32 %v2556, %v150
    %v2560 = vxor.u32 %v2559, 2147483648
    %v2561 = vmul.f32 %v2560, 1.442695
    %v2562 = vpow.pop %v2561
    %v2563 = vadd.f32 %v2562, 1.0
    %v2564 = vrcp.pop %v2563
    %v2565 = vmul.f32 1.0, %v2564
    %2567 = vrot.lane.b32.xlu0 %v2559, 32
    %v2568 = vpop.permute.xlu0 %2567
    %v2570 = vmul.f32 %v2565, %v2568
    %2572 = vrot.lane.b32.xlu0 %v2570, 64
    %v2573 = vpop.permute.xlu0 %2572
    %v2575 = vadd.f32 %v150, %v2573
    %v2576 = vtanh.pop %v2575
    %v2577 = vsub.f32 1.0, %v2565
    %2579 = vrot.lane.b32.xlu0 %v2576, 96
    %v2580 = vpop.permute.xlu0 %2579
    %v2582 = vmul.f32 %v2577, %v2580
    %v2583 = vmul.f32 %v2565, %v2253
    %v2584 = vadd.f32 %v2582, %v2583
    %2586 = vrot.lane.b32.xlu0 %v2584, 96
    %v2587 = vpop.permute.xlu0 %2586
    %v2589 = vsel %vm163, %v2587, %v2365
    %v2590 = vld [vmem:[#allocation5] sm:$0xff]
    %v2591 = vld [vmem:[#allocation5 + $0x8] sm:$0xff]
    %v2592 = vld [vmem:[#allocation5 + $0x10] sm:$0xff]
    %v2593 = vld [vmem:[#allocation5 + $0x18] sm:$0xff]
    %v2594 = vld [vmem:[#allocation5 + $0x20] sm:$0xff]
    %v2595 = vld [vmem:[#allocation5 + $0x28] sm:$0xff]
    %v2596 = vld [vmem:[#allocation5 + $0x30] sm:$0xff]
    %v2597 = vld [vmem:[#allocation5 + $0x38] sm:$0xff]
    %v2599 = vsel %vm279, %v2589, 0
    %2601 = vmatprep.subr.mxu0 0.0
    %2602 = vmatpush1.msra.mxu0 %v2590
    %2603 = vmatprep.subr.mxu0 0.0
    %2604 = vmatpush1.msra.mxu0 %v2591
    %2605 = vmatprep.subr.mxu0 0.0
    %2606 = vmatpush1.msra.mxu0 %v2592
    %2607 = vmatprep.subr.mxu0 0.0
    %2608 = vmatpush1.msra.mxu0 %v2593
    %2609 = vmatprep.subr.mxu0 0.0
    %2610 = vmatpush1.msra.mxu0 %v2594
    %2611 = vmatprep.subr.mxu0 0.0
    %2612 = vmatpush1.msra.mxu0 %v2595
    %2613 = vmatprep.subr.mxu0 0.0
    %2614 = vmatpush1.msra.mxu0 %v2596
    %2615 = vmatprep.subr.mxu0 0.0
    %2616 = vmatpush1.msra.mxu0 %v2597
    %2617 = vmatprep.subr.mxu0 0.0
    %2618 = vmatpush1.msra.mxu0 0.0
    %2619 = vmatprep.subr.mxu0 0.0
    %2620 = vmatpush1.msra.mxu0 0.0
    %2621 = vmatprep.subr.mxu0 0.0
    %2622 = vmatpush1.msra.mxu0 0.0
    %2623 = vmatprep.subr.mxu0 0.0
    %2624 = vmatpush1.msra.mxu0 0.0
    %2625 = vmatprep.subr.mxu0 0.0
    %2626 = vmatpush1.msra.mxu0 0.0
    %2627 = vmatprep.subr.mxu0 0.0
    %2628 = vmatpush1.msra.mxu0 0.0
    %2629 = vmatprep.subr.mxu0 0.0
    %2630 = vmatpush1.msra.mxu0 0.0
    %2631 = vmatprep.subr.mxu0 0.0
    %2632 = vmatpush1.msra.mxu0 0.0
    %2633 = vmatprep.subr.mxu0 0.0
    %2634 = vmatpush1.msra.mxu0 0.0
    %2635 = vmatprep.subr.mxu0 0.0
    %2636 = vmatpush1.msra.mxu0 0.0
    %2637 = vmatprep.subr.mxu0 0.0
    %2638 = vmatpush1.msra.mxu0 0.0
    %2639 = vmatprep.subr.mxu0 0.0
    %2640 = vmatpush1.msra.mxu0 0.0
    %2641 = vmatprep.subr.mxu0 0.0
    %2642 = vmatpush1.msra.mxu0 0.0
    %2643 = vmatprep.subr.mxu0 0.0
    %2644 = vmatpush1.msra.mxu0 0.0
    %2645 = vmatprep.subr.mxu0 0.0
    %2646 = vmatpush1.msra.mxu0 0.0
    %2647 = vmatprep.subr.mxu0 0.0
    %2648 = vmatpush1.msra.mxu0 0.0
    %2649 = vmatprep.subr.mxu0 0.0
    %2650 = vmatpush1.msra.mxu0 0.0
    %2651 = vmatprep.subr.mxu0 0.0
    %2652 = vmatpush1.msra.mxu0 0.0
    %2653 = vmatprep.subr.mxu0 0.0
    %2654 = vmatpush1.msra.mxu0 0.0
    %2655 = vmatprep.subr.mxu0 0.0
    %2656 = vmatpush1.msra.mxu0 0.0
    %2657 = vmatprep.subr.mxu0 0.0
    %2658 = vmatpush1.msra.mxu0 0.0
    %2659 = vmatprep.subr.mxu0 0.0
    %2660 = vmatpush1.msra.mxu0 0.0
    %2661 = vmatprep.subr.mxu0 0.0
    %2662 = vmatpush1.msra.mxu0 0.0
    %2663 = vmatprep.subr.mxu0 0.0
    %2664 = vmatpush1.msra.mxu0 0.0
    %2665 = vmatprep.mubr.f32.mxu0 0.0
    %2666 = vmatmul.mubr.f32.gmra.mrb[0].mxu0 %v2599
    %v2667 = vpop.f32.mrb[0].mxu0
    %v2668 = vadd.f32 0.0, %v2667
    %v2669 = vpop.f32.mrb[0].mxu0
    %2670 = vdwg.mxu0
    %v2671 = vadd.f32 %v2668, %v154
    %v2672 = vxor.u32 %v2671, 2147483648
    %v2673 = vmul.f32 %v2672, 1.442695
    %v2674 = vpow.pop %v2673
    %v2675 = vadd.f32 %v2674, 1.0
    %v2676 = vrcp.pop %v2675
    %v2677 = vmul.f32 1.0, %v2676
    %2679 = vrot.lane.b32.xlu0 %v2671, 32
    %v2680 = vpop.permute.xlu0 %2679
    %v2682 = vmul.f32 %v2677, %v2680
    %2684 = vrot.lane.b32.xlu0 %v2682, 64
    %v2685 = vpop.permute.xlu0 %2684
    %v2687 = vadd.f32 %v2671, %v2685
    %v2688 = vtanh.pop %v2687
    %v2689 = vsub.f32 1.0, %v2677
    %2691 = vrot.lane.b32.xlu0 %v2688, 96
    %v2692 = vpop.permute.xlu0 %2691
    %v2694 = vmul.f32 %v2689, %v2692
    %v2695 = vmul.f32 %v2677, %v2365
    %v2696 = vadd.f32 %v2694, %v2695
    %2698 = vrot.lane.b32.xlu0 %v2696, 96
    %v2699 = vpop.permute.xlu0 %2698
    %v2701 = vsel %vm163, %v2699, %v2477
    %v2702 = vld [vmem:[%s384] sm:$0xff]
    %v2703 = vld [vmem:[%s384 + $0x8] sm:$0xff]
    %v2704 = vld [vmem:[%s384 + $0x10] sm:$0xff]
    %v2705 = vld [vmem:[%s384 + $0x18] sm:$0xff]
    %v2706 = vld [vmem:[%s384 + $0x20] sm:$0xff]
    %v2707 = vld [vmem:[%s384 + $0x28] sm:$0xff]
    %v2708 = vld [vmem:[%s384 + $0x30] sm:$0xff]
    %v2709 = vld [vmem:[%s384 + $0x38] sm:$0xff]
    %v2711 = vsel %vm279, %v2701, 0
    %2713 = vmatprep.subr.mxu0 0.0
    %2714 = vmatpush1.msra.mxu0 %v2702
    %2715 = vmatprep.subr.mxu0 0.0
    %2716 = vmatpush1.msra.mxu0 %v2703
    %2717 = vmatprep.subr.mxu0 0.0
    %2718 = vmatpush1.msra.mxu0 %v2704
    %2719 = vmatprep.subr.mxu0 0.0
    %2720 = vmatpush1.msra.mxu0 %v2705
    %2721 = vmatprep.subr.mxu0 0.0
    %2722 = vmatpush1.msra.mxu0 %v2706
    %2723 = vmatprep.subr.mxu0 0.0
    %2724 = vmatpush1.msra.mxu0 %v2707
    %2725 = vmatprep.subr.mxu0 0.0
    %2726 = vmatpush1.msra.mxu0 %v2708
    %2727 = vmatprep.subr.mxu0 0.0
    %2728 = vmatpush1.msra.mxu0 %v2709
    %2729 = vmatprep.subr.mxu0 0.0
    %2730 = vmatpush1.msra.mxu0 0.0
    %2731 = vmatprep.subr.mxu0 0.0
    %2732 = vmatpush1.msra.mxu0 0.0
    %2733 = vmatprep.subr.mxu0 0.0
    %2734 = vmatpush1.msra.mxu0 0.0
    %2735 = vmatprep.subr.mxu0 0.0
    %2736 = vmatpush1.msra.mxu0 0.0
    %2737 = vmatprep.subr.mxu0 0.0
    %2738 = vmatpush1.msra.mxu0 0.0
    %2739 = vmatprep.subr.mxu0 0.0
    %2740 = vmatpush1.msra.mxu0 0.0
    %2741 = vmatprep.subr.mxu0 0.0
    %2742 = vmatpush1.msra.mxu0 0.0
    %2743 = vmatprep.subr.mxu0 0.0
    %2744 = vmatpush1.msra.mxu0 0.0
    %2745 = vmatprep.subr.mxu0 0.0
    %2746 = vmatpush1.msra.mxu0 0.0
    %2747 = vmatprep.subr.mxu0 0.0
    %2748 = vmatpush1.msra.mxu0 0.0
    %2749 = vmatprep.subr.mxu0 0.0
    %2750 = vmatpush1.msra.mxu0 0.0
    %2751 = vmatprep.subr.mxu0 0.0
    %2752 = vmatpush1.msra.mxu0 0.0
    %2753 = vmatprep.subr.mxu0 0.0
    %2754 = vmatpush1.msra.mxu0 0.0
    %2755 = vmatprep.subr.mxu0 0.0
    %2756 = vmatpush1.msra.mxu0 0.0
    %2757 = vmatprep.subr.mxu0 0.0
    %2758 = vmatpush1.msra.mxu0 0.0
    %2759 = vmatprep.subr.mxu0 0.0
    %2760 = vmatpush1.msra.mxu0 0.0
    %2761 = vmatprep.subr.mxu0 0.0
    %2762 = vmatpush1.msra.mxu0 0.0
    %2763 = vmatprep.subr.mxu0 0.0
    %2764 = vmatpush1.msra.mxu0 0.0
    %2765 = vmatprep.subr.mxu0 0.0
    %2766 = vmatpush1.msra.mxu0 0.0
    %2767 = vmatprep.subr.mxu0 0.0
    %2768 = vmatpush1.msra.mxu0 0.0
    %2769 = vmatprep.subr.mxu0 0.0
    %2770 = vmatpush1.msra.mxu0 0.0
    %2771 = vmatprep.subr.mxu0 0.0
    %2772 = vmatpush1.msra.mxu0 0.0
    %2773 = vmatprep.subr.mxu0 0.0
    %2774 = vmatpush1.msra.mxu0 0.0
    %2775 = vmatprep.subr.mxu0 0.0
    %2776 = vmatpush1.msra.mxu0 0.0
    %2777 = vmatprep.mubr.f32.mxu0 0.0
    %2778 = vmatmul.mubr.f32.gmra.mrb[0].mxu0 %v2711
    %v2779 = vpop.f32.mrb[0].mxu0
    %v2780 = vadd.f32 0.0, %v2779
    %v2781 = vpop.f32.mrb[0].mxu0
    %2782 = vdwg.mxu0
    %v2783 = vadd.f32 %v2780, %v158
    %v2784 = vxor.u32 %v2783, 2147483648
    %v2785 = vmul.f32 %v2784, 1.442695
    %v2786 = vpow.pop %v2785
    %v2787 = vadd.f32 %v2786, 1.0
    %v2788 = vrcp.pop %v2787
    %v2789 = vmul.f32 1.0, %v2788
    %2791 = vrot.lane.b32.xlu0 %v2783, 32
    %v2792 = vpop.permute.xlu0 %2791
    %v2794 = vmul.f32 %v2789, %v2792
    %2796 = vrot.lane.b32.xlu0 %v2794, 64
    %v2797 = vpop.permute.xlu0 %2796
    %v2799 = vadd.f32 %v2783, %v2797
    %v2800 = vtanh.pop %v2799
    %v2801 = vsub.f32 1.0, %v2789
    %2803 = vrot.lane.b32.xlu0 %v2800, 96
    %v2804 = vpop.permute.xlu0 %2803
    %v2806 = vmul.f32 %v2801, %v2804
    %v2807 = vmul.f32 %v2789, %v2477
    %v2808 = vadd.f32 %v2806, %v2807
    %2810 = vrot.lane.b32.xlu0 %v2808, 96
    %v2811 = vpop.permute.xlu0 %2810
    %2813 = vst.msk [vmem:[#allocation2 + $0x38] sm:$0xff] %vm163, %v2811
    %v2814 = vld [vmem:[#allocation2] sm:$0xff]
    %v2815 = vld [vmem:[#allocation2 + $0x8] sm:$0xff]
    %v2816 = vld [vmem:[#allocation2 + $0x10] sm:$0xff]
    %v2817 = vld [vmem:[#allocation2 + $0x18] sm:$0xff]
    %v2818 = vld [vmem:[#allocation2 + $0x20] sm:$0xff]
    %v2819 = vld [vmem:[#allocation2 + $0x28] sm:$0xff]
    %v2820 = vld [vmem:[#allocation2 + $0x30] sm:$0xff]
    %v2821 = vld [vmem:[#allocation2 + $0x38] sm:$0xff]
    %v2822 = vld [vmem:[%s6] sm:$0xff]
    %v2823 = vld [vmem:[%s6 + $0x8] sm:$0xff]
    %v2824 = vld [vmem:[%s6 + $0x10] sm:$0xff]
    %v2825 = vld [vmem:[%s6 + $0x18] sm:$0xff]
    %v2826 = vld [vmem:[%s7] sm:$0x1]
    %v2828 = vlaneseq
    %v2829 = vshrl.u32 %v2828, 7
    %v2830 = vsub.s32 0, %v2829
    %v2831 = vrot.slane %v2826, %v2830
    %v2834 = vsel %vm163, %v2814, 0
    %v2837 = vsel %vm163, %v2815, 0
    %v2840 = vsel %vm163, %v2816, 0
    %v2843 = vsel %vm163, %v2817, 0
    %v2846 = vsel %vm163, %v2818, 0
    %v2849 = vsel %vm163, %v2819, 0
    %v2852 = vsel %vm163, %v2820, 0
    %v2855 = vsel %vm163, %v2821, 0
    %2857 = vmatprep.subr.mxu0 0.0
    %2858 = vmatpush1.msra.mxu0 %v2822
    %2859 = vmatprep.subr.mxu0 0.0
    %2860 = vmatpush1.msra.mxu0 %v2823
    %2861 = vmatprep.subr.mxu0 0.0
    %2862 = vmatpush1.msra.mxu0 %v2824
    %2863 = vmatprep.subr.mxu0 0.0
    %2864 = vmatpush1.msra.mxu0 %v2825
    %2865 = vmatprep.subr.mxu0 0.0
    %2866 = vmatpush1.msra.mxu0 0.0
    %2867 = vmatprep.subr.mxu0 0.0
    %2868 = vmatpush1.msra.mxu0 0.0
    %2869 = vmatprep.subr.mxu0 0.0
    %2870 = vmatpush1.msra.mxu0 0.0
    %2871 = vmatprep.subr.mxu0 0.0
    %2872 = vmatpush1.msra.mxu0 0.0
    %2873 = vmatprep.subr.mxu0 0.0
    %2874 = vmatpush1.msra.mxu0 0.0
    %2875 = vmatprep.subr.mxu0 0.0
    %2876 = vmatpush1.msra.mxu0 0.0
    %2877 = vmatprep.subr.mxu0 0.0
    %2878 = vmatpush1.msra.mxu0 0.0
    %2879 = vmatprep.subr.mxu0 0.0
    %2880 = vmatpush1.msra.mxu0 0.0
    %2881 = vmatprep.subr.mxu0 0.0
    %2882 = vmatpush1.msra.mxu0 0.0
    %2883 = vmatprep.subr.mxu0 0.0
    %2884 = vmatpush1.msra.mxu0 0.0
    %2885 = vmatprep.subr.mxu0 0.0
    %2886 = vmatpush1.msra.mxu0 0.0
    %2887 = vmatprep.subr.mxu0 0.0
    %2888 = vmatpush1.msra.mxu0 0.0
    %2889 = vmatprep.subr.mxu0 0.0
    %2890 = vmatpush1.msra.mxu0 0.0
    %2891 = vmatprep.subr.mxu0 0.0
    %2892 = vmatpush1.msra.mxu0 0.0
    %2893 = vmatprep.subr.mxu0 0.0
    %2894 = vmatpush1.msra.mxu0 0.0
    %2895 = vmatprep.subr.mxu0 0.0
    %2896 = vmatpush1.msra.mxu0 0.0
    %2897 = vmatprep.subr.mxu0 0.0
    %2898 = vmatpush1.msra.mxu0 0.0
    %2899 = vmatprep.subr.mxu0 0.0
    %2900 = vmatpush1.msra.mxu0 0.0
    %2901 = vmatprep.subr.mxu0 0.0
    %2902 = vmatpush1.msra.mxu0 0.0
    %2903 = vmatprep.subr.mxu0 0.0
    %2904 = vmatpush1.msra.mxu0 0.0
    %2905 = vmatprep.subr.mxu0 0.0
    %2906 = vmatpush1.msra.mxu0 0.0
    %2907 = vmatprep.subr.mxu0 0.0
    %2908 = vmatpush1.msra.mxu0 0.0
    %2909 = vmatprep.subr.mxu0 0.0
    %2910 = vmatpush1.msra.mxu0 0.0
    %2911 = vmatprep.subr.mxu0 0.0
    %2912 = vmatpush1.msra.mxu0 0.0
    %2913 = vmatprep.subr.mxu0 0.0
    %2914 = vmatpush1.msra.mxu0 0.0
    %2915 = vmatprep.subr.mxu0 0.0
    %2916 = vmatpush1.msra.mxu0 0.0
    %2917 = vmatprep.subr.mxu0 0.0
    %2918 = vmatpush1.msra.mxu0 0.0
    %2919 = vmatprep.subr.mxu0 0.0
    %2920 = vmatpush1.msra.mxu0 0.0
    %2921 = vmatprep.mubr.f32.mxu0 0.0
    %2922 = vmatmul.mubr.f32.gmra.mrb[0].mxu0 %v2834
    %v2923 = vpop.f32.mrb[0].mxu0
    %v2924 = vadd.f32 %v2831, %v2923
    %v2925 = vpop.f32.mrb[0].mxu0
    %2926 = vmatprep.mubr.f32.mxu0 0.0
    %2927 = vmatmul.mubr.f32.gmra.mrb[0].mxu0 %v2837
    %v2928 = vpop.f32.mrb[0].mxu0
    %v2929 = vadd.f32 %v2831, %v2928
    %v2930 = vpop.f32.mrb[0].mxu0
    %2931 = vmatprep.mubr.f32.mxu0 0.0
    %2932 = vmatmul.mubr.f32.gmra.mrb[0].mxu0 %v2840
    %v2933 = vpop.f32.mrb[0].mxu0
    %v2934 = vadd.f32 %v2831, %v2933
    %v2935 = vpop.f32.mrb[0].mxu0
    %2936 = vmatprep.mubr.f32.mxu0 0.0
    %2937 = vmatmul.mubr.f32.gmra.mrb[0].mxu0 %v2843
    %v2938 = vpop.f32.mrb[0].mxu0
    %v2939 = vadd.f32 %v2831, %v2938
    %v2940 = vpop.f32.mrb[0].mxu0
    %2941 = vmatprep.mubr.f32.mxu0 0.0
    %2942 = vmatmul.mubr.f32.gmra.mrb[0].mxu0 %v2846
    %v2943 = vpop.f32.mrb[0].mxu0
    %v2944 = vadd.f32 %v2831, %v2943
    %v2945 = vpop.f32.mrb[0].mxu0
    %2946 = vmatprep.mubr.f32.mxu0 0.0
    %2947 = vmatmul.mubr.f32.gmra.mrb[0].mxu0 %v2849
    %v2948 = vpop.f32.mrb[0].mxu0
    %v2949 = vadd.f32 %v2831, %v2948
    %v2950 = vpop.f32.mrb[0].mxu0
    %2951 = vmatprep.mubr.f32.mxu0 0.0
    %2952 = vmatmul.mubr.f32.gmra.mrb[0].mxu0 %v2852
    %v2953 = vpop.f32.mrb[0].mxu0
    %v2954 = vadd.f32 %v2831, %v2953
    %v2955 = vpop.f32.mrb[0].mxu0
    %2956 = vmatprep.mubr.f32.mxu0 0.0
    %2957 = vmatmul.mubr.f32.gmra.mrb[0].mxu0 %v2855
    %v2958 = vpop.f32.mrb[0].mxu0
    %v2959 = vadd.f32 %v2831, %v2958
    %v2960 = vpop.f32.mrb[0].mxu0
    %2961 = vdwg.mxu0
    %vm2962 = vcmask 15360
    %2963 = vst.msk [vmem:[%s8] sm:$0xff] %vm2962, %v2924
    %2964 = vst.msk [vmem:[%s8 + $0x8] sm:$0xff] %vm2962, %v2929
    %2965 = vst.msk [vmem:[%s8 + $0x10] sm:$0xff] %vm2962, %v2934
    %2966 = vst.msk [vmem:[%s8 + $0x18] sm:$0xff] %vm2962, %v2939
    %2967 = vst.msk [vmem:[%s8 + $0x20] sm:$0xff] %vm2962, %v2944
    %2968 = vst.msk [vmem:[%s8 + $0x28] sm:$0xff] %vm2962, %v2949
    %2969 = vst.msk [vmem:[%s8 + $0x30] sm:$0xff] %vm2962, %v2954
    %2970 = vst.msk [vmem:[%s8 + $0x38] sm:$0xff] %vm2962, %v2959
    // Predicated region
    $region42: #{decoder_forward.1} parent=1 // pred_check
      _
    $region43: #{decoder_forward.1} parent=1 // pred_check_branch
      %2972 = sbr.rel (0) target = $region45
    $region44: #{decoder_forward.1} parent=1 // pred_region
      _
    $region45: #{decoder_forward.1} parent=1 // pred_fallthru
      _
    // Predicated region
    $region46: #{decoder_forward.1} parent=1 // pred_check
      _
    $region47: #{decoder_forward.1} parent=1 // pred_check_branch
      %2974 = sbr.rel (0) target = $region49
    $region48: #{decoder_forward.1} parent=1 // pred_region
      _
    $region49: #{decoder_forward.1} parent=1 // pred_fallthru
      _
    %2975 = vsyncpa [#allocation4], 1
    %2976 = vsyncpa [#allocation6], 1

</llo_original>
